<compile_context>
chip_gen: v6e
topology: v6e:2x2x1
jax: 0.10.0
libtpu: 0.0.40
codegen_flags: <defaults>
</compile_context>

<pallas_src>
import numpy as np
import jax
import jax.numpy as jnp
from jax.experimental import pallas as pl
from jax.experimental.pallas import tpu as pltpu

EMB_SIZE = 32
NUM_HEADS = 4
HEAD_DIM = EMB_SIZE // NUM_HEADS
DIM_FF = 64
NUM_CLASSES = 5
SEQ_LEN = 64
BATCH = 2
IN_CHANNELS = 1          # X.unsqueeze(1) -> channel dim of 1

INV_SQRT2 = 0.7071067811865476
LN_EPS = 1e-5
BN_EPS = 1e-5
ATTN_SCALE = float(EMB_SIZE) ** -0.5          # ConvTran Attention: emb_size ** -0.5

# causal conv stack configuration: (kernel_size, stride, dilation)
CONV_CFG = ((8, 2, 1), (5, 2, 2), (3, 2, 2))


def _conv_out_len(lin, stride):
    return (lin - 1) // stride + 1


L0 = SEQ_LEN
L1 = _conv_out_len(L0, CONV_CFG[0][1])        # 32
L2 = _conv_out_len(L1, CONV_CFG[1][1])        # 16
L3 = _conv_out_len(L2, CONV_CFG[2][1])        # 8

# Row layout of the packed (VEC_ROWS, EMB_SIZE) parameter slab.
ROW_SH1, ROW_SH2, ROW_SH3 = 0, 1, 2           # folded conv bias+BN shifts
ROW_LNA_G, ROW_LNA_B = 3, 4                   # Attention.to_out LayerNorm
ROW_LN1_G, ROW_LN1_B = 5, 6                   # LayerNorm
ROW_LN2_G, ROW_LN2_B = 7, 8                   # LayerNorm2
ROW_B2, ROW_BO = 9, 10                        # FFN second bias / classifier bias (lane-padded)
ROW_PE = 16                                   # tAPE positional encoding (L3 rows)
ROW_WO = 24                                   # classifier weight, lane-padded (EMB_SIZE rows)
ROW_W2 = 64                                   # FFN second weight (DIM_FF rows)
VEC_ROWS = ROW_W2 + DIM_FF                    # 128


# ----------------------------------------------------------------------------
# Fused Pallas kernel (whole forward pass, per batch element)
# ----------------------------------------------------------------------------
def _gelu(y):
    # PyTorch nn.GELU default = exact erf formulation
    return 0.5 * y * (1.0 + jax.lax.erf(y * INV_SQRT2))


def _ln(x, g, b, eps=LN_EPS):
    mu = jnp.mean(x, axis=-1, keepdims=True)
    var = jnp.mean(jnp.square(x - mu), axis=-1, keepdims=True)
    return (x - mu) * jax.lax.rsqrt(var + eps) * g + b


def _row(ref, r):
    return ref[r:r + 1, :]


def _fused_convtran_kernel(x_ref, a1_ref, a2_ref, a3_ref,
                           w1f_ref, w2f_ref, w3f_ref,
                           vec_ref, qkv_ref, ffn1_ref, o_ref):
    f32 = jnp.float32

    # ---------------- causal conv stack ----------------
    x_col = x_ref[...]                                          # (L0, 1)
    xb = jnp.broadcast_to(x_col, (L0, EMB_SIZE))                # lane-broadcast once

    # conv1 (Cin == 1): gather matmul + per-output-channel row scale (outer product).
    acc = None
    for k in range(CONV_CFG[0][0]):
        g = jnp.dot(a1_ref[k], xb, preferred_element_type=f32)  # (L1, 32), identical columns
        t = g * w1f_ref[k]                                      # (1, 32) row broadcast
        acc = t if acc is None else acc + t
    h = _gelu(acc + _row(vec_ref, ROW_SH1))                     # (L1, 32)

    # conv2: per-tap (gather matmul) @ (BN-folded weight)
    acc = None
    for k in range(CONV_CFG[1][0]):
        g = jnp.dot(a2_ref[k], h, preferred_element_type=f32)   # (L2, 32)
        t = jnp.dot(g, w2f_ref[k], preferred_element_type=f32)
        acc = t if acc is None else acc + t
    h = _gelu(acc + _row(vec_ref, ROW_SH2))                     # (L2, 32)

    # conv3
    acc = None
    for k in range(CONV_CFG[2][0]):
        g = jnp.dot(a3_ref[k], h, preferred_element_type=f32)   # (L3, 32)
        t = jnp.dot(g, w3f_ref[k], preferred_element_type=f32)
        acc = t if acc is None else acc + t
    x_src = _gelu(acc + _row(vec_ref, ROW_SH3))                 # (L3, 32) == x_src.permute(0,2,1)

    # ---------------- tAPE + MHSA + FFN head ----------------
    pe = vec_ref[ROW_PE:ROW_PE + L3, :]
    xp = x_src + pe                                             # tAPE (dropout = identity)

    heads = []
    for hh in range(NUM_HEADS):
        q = jnp.dot(xp, qkv_ref[hh], preferred_element_type=f32)                   # (L3, hd)
        kk = jnp.dot(xp, qkv_ref[NUM_HEADS + hh], preferred_element_type=f32)
        v = jnp.dot(xp, qkv_ref[2 * NUM_HEADS + hh], preferred_element_type=f32)
        s = jnp.dot(q, kk.T, preferred_element_type=f32) * ATTN_SCALE              # (L3, L3)
        s = s - jnp.max(s, axis=-1, keepdims=True)
        e = jnp.exp(s)
        # softmax denominator on the (otherwise idle) EUP slot
        p = e * pl.reciprocal(jnp.sum(e, axis=-1, keepdims=True), approx=True)
        heads.append(jnp.dot(p, v, preferred_element_type=f32))
    attn = jnp.concatenate(heads, axis=-1)                                          # (L3, 32)
    attn = _ln(attn, _row(vec_ref, ROW_LNA_G), _row(vec_ref, ROW_LNA_B))            # to_out LN

    att = _ln(x_src + attn, _row(vec_ref, ROW_LN1_G), _row(vec_ref, ROW_LN1_B))     # res + LN

    w1 = ffn1_ref[0:EMB_SIZE, :]                                 # (32, 64)
    b1 = ffn1_ref[EMB_SIZE:EMB_SIZE + 1, :]                      # (1, 64)
    ff = jnp.maximum(jnp.dot(att, w1, preferred_element_type=f32) + b1, 0.0)
    w2 = vec_ref[ROW_W2:ROW_W2 + DIM_FF, :]                      # (64, 32)
    ff = jnp.dot(ff, w2, preferred_element_type=f32) + _row(vec_ref, ROW_B2)

    out2 = _ln(att + ff, _row(vec_ref, ROW_LN2_G), _row(vec_ref, ROW_LN2_B))        # res + LN2

    pooled = jnp.mean(out2, axis=0, keepdims=True)               # GAP over sequence -> (1, 32)
    wo = vec_ref[ROW_WO:ROW_WO + EMB_SIZE, :]                    # (32, 32) lane-padded classifier
    logits = jnp.dot(pooled, wo, preferred_element_type=f32) + _row(vec_ref, ROW_BO)
    o_ref[...] = logits[:, :NUM_CLASSES]                         # (1, num_classes)


# ----------------------------------------------------------------------------
# Host-side one-time parameter packing + wrapper
# ----------------------------------------------------------------------------
def _make_gather(lin, ksize, stride, dilation):
    """(K, Lout, Lin) 0/1 matrices: (A_k @ x)[t] = x_causal_pad[t*stride + k*dilation]."""
    pad = (ksize - 1) * dilation
    lout = _conv_out_len(lin, stride)
    a = np.zeros((ksize, lout, lin), dtype=np.float32)
    t = np.arange(lout)
    for k in range(ksize):
        j = t * stride + k * dilation - pad
        valid = j >= 0                      # negative index -> causal zero padding (row stays 0)
        a[k, t[valid], j[valid]] = 1.0
    return jnp.asarray(a)


def pack_params(p, pe_full):
    """One-time packing: fold eval-mode BatchNorm into conv weights, build constant
    gather matrices, and pack the small vectors/matrices into a few slabs."""
    def fold_conv(cp):
        sc = cp['gamma'] / jnp.sqrt(cp['var'] + BN_EPS)                   # (Cout,)
        wf = jnp.transpose(cp['w'], (2, 1, 0)) * sc[None, None, :]        # (K, Cin, Cout)
        shift = (cp['b'] - cp['mean']) * sc + cp['beta']                  # (Cout,)
        return wf.astype(jnp.float32), shift.astype(jnp.float32)

    w1f, sh1 = fold_conv(p['conv1'])       # (8, 1, 32)
    w2f, sh2 = fold_conv(p['conv2'])       # (5, 32, 32)
    w3f, sh3 = fold_conv(p['conv3'])       # (3, 32, 32)

    a1 = _make_gather(L0, *CONV_CFG[0])    # (8, 32, 64)
    a2 = _make_gather(L1, *CONV_CFG[1])    # (5, 16, 32)
    a3 = _make_gather(L2, *CONV_CFG[2])    # (3, 8, 16)

    # TODO(synk): tAPE is built with max_len=seq_len but added to the strided conv
    # output of length L3 < seq_len (the PyTorch forward as given is inconsistent);
    # we truncate pe to the first L3 positions.
    pe = pe_full[:L3]

    vec = jnp.zeros((VEC_ROWS, EMB_SIZE), jnp.float32)
    vec = vec.at[ROW_SH1].set(sh1).at[ROW_SH2].set(sh2).at[ROW_SH3].set(sh3)
    vec = vec.at[ROW_LNA_G].set(p['lna_g']).at[ROW_LNA_B].set(p['lna_b'])
    vec = vec.at[ROW_LN1_G].set(p['ln1_g']).at[ROW_LN1_B].set(p['ln1_b'])
    vec = vec.at[ROW_LN2_G].set(p['ln2_g']).at[ROW_LN2_B].set(p['ln2_b'])
    vec = vec.at[ROW_B2].set(p['b2'])
    vec = vec.at[ROW_BO, :NUM_CLASSES].set(p['bo'])
    vec = vec.at[ROW_PE:ROW_PE + L3].set(pe)
    vec = vec.at[ROW_WO:ROW_WO + EMB_SIZE, :NUM_CLASSES].set(p['wo'])
    vec = vec.at[ROW_W2:ROW_W2 + DIM_FF].set(p['w2'])

    def per_head(w):                                   # (D, D) -> (H, D, hd)
        return jnp.transpose(w.reshape(EMB_SIZE, NUM_HEADS, HEAD_DIM), (1, 0, 2))
    qkv = jnp.concatenate([per_head(p['wq']), per_head(p['wk']), per_head(p['wv'])],
                          axis=0).astype(jnp.float32)  # (3H, D, hd)

    ffn1 = jnp.zeros((40, DIM_FF), jnp.float32)        # rows 0..31: w1, row 32: b1
    ffn1 = ffn1.at[:EMB_SIZE].set(p['w1'])
    ffn1 = ffn1.at[EMB_SIZE].set(p['b1'])

    return (a1, a2, a3, w1f, w2f, w3f, vec, qkv, ffn1)


def convtran_forward(x_ncl, packed):
    # x_ncl: (B, 1, seq_len) -- PyTorch NCL layout with a single channel, so the
    # channels-last view is just a reshape (no data movement).
    B = x_ncl.shape[0]
    x_col = x_ncl.reshape(B, SEQ_LEN, IN_CHANNELS).astype(jnp.float32)
    a1, a2, a3, w1f, w2f, w3f, vec, qkv, ffn1 = packed

    def const(shape):
        return pl.BlockSpec(shape, lambda b: (0,) * len(shape))

    out = pl.pallas_call(
        _fused_convtran_kernel,
        out_shape=jax.ShapeDtypeStruct((B, 1, NUM_CLASSES), jnp.float32),
        grid=(B,),
        in_specs=[
            pl.BlockSpec((None, SEQ_LEN, IN_CHANNELS), lambda b: (b, 0, 0)),
            const(a1.shape), const(a2.shape), const(a3.shape),
            const(w1f.shape), const(w2f.shape), const(w3f.shape),
            const(vec.shape), const(qkv.shape), const(ffn1.shape),
        ],
        out_specs=pl.BlockSpec((None, 1, NUM_CLASSES), lambda b: (b, 0, 0)),
        compiler_params=pltpu.CompilerParams(dimension_semantics=("parallel",)),
    )(x_col, a1, a2, a3, w1f, w2f, w3f, vec, qkv, ffn1)
    return out.reshape(B, NUM_CLASSES)


def make_tape_pe(d_model, max_len):
    position = np.arange(max_len, dtype=np.float64)[:, None]
    div_term = np.exp(np.arange(0, d_model, 2, dtype=np.float64)
                      * (-np.log(10000.0) / d_model))
    pe = np.zeros((max_len, d_model), dtype=np.float64)
    pe[:, 0::2] = np.sin(position * div_term * (d_model / max_len))
    pe[:, 1::2] = np.cos(position * div_term * (d_model / max_len))
    return jnp.asarray(pe, dtype=jnp.float32)


# ----------------------------------------------------------------------------
# Deterministic parameters + pure-JAX reference (for correctness check only)
# ----------------------------------------------------------------------------
def init_params(key):
    ks = iter(jax.random.split(key, 48))

    def nrm(shape, s=0.1):
        return s * jax.random.normal(next(ks), shape, dtype=jnp.float32)

    def conv_p(cin, cout, k):
        return dict(w=nrm((cout, cin, k), 0.3), b=nrm((cout,), 0.1),
                    gamma=1.0 + nrm((cout,), 0.1), beta=nrm((cout,), 0.1),
                    mean=nrm((cout,), 0.05), var=1.0 + jnp.abs(nrm((cout,), 0.1)))

    p = {}
    p['conv1'] = conv_p(IN_CHANNELS, EMB_SIZE, 8)
    p['conv2'] = conv_p(EMB_SIZE, EMB_SIZE, 5)
    p['conv3'] = conv_p(EMB_SIZE, EMB_SIZE, 3)
    p['wq'] = nrm((EMB_SIZE, EMB_SIZE), 0.15)
    p['wk'] = nrm((EMB_SIZE, EMB_SIZE), 0.15)
    p['wv'] = nrm((EMB_SIZE, EMB_SIZE), 0.15)
    p['lna_g'] = 1.0 + nrm((EMB_SIZE,), 0.1); p['lna_b'] = nrm((EMB_SIZE,), 0.1)
    p['ln1_g'] = 1.0 + nrm((EMB_SIZE,), 0.1); p['ln1_b'] = nrm((EMB_SIZE,), 0.1)
    p['w1'] = nrm((EMB_SIZE, DIM_FF), 0.15);  p['b1'] = nrm((DIM_FF,), 0.1)
    p['w2'] = nrm((DIM_FF, EMB_SIZE), 0.15);  p['b2'] = nrm((EMB_SIZE,), 0.1)
    p['ln2_g'] = 1.0 + nrm((EMB_SIZE,), 0.1); p['ln2_b'] = nrm((EMB_SIZE,), 0.1)
    p['wo'] = nrm((EMB_SIZE, NUM_CLASSES), 0.2); p['bo'] = nrm((NUM_CLASSES,), 0.1)
    return p


def causal_im2col(x_blc, kernel_size, stride, dilation):
    """x: (B, L, Cin) channels-last -> (B*Lout, K*Cin), with causal left padding."""
    B, L, Cin = x_blc.shape
    pad = (kernel_size - 1) * dilation
    xp = jnp.pad(x_blc, ((0, 0), (pad, 0), (0, 0)))
    Lout = (L - 1) // stride + 1
    starts = jnp.arange(Lout) * stride
    taps = jnp.arange(kernel_size) * dilation
    idx = starts[:, None] + taps[None, :]
    cols = xp[:, idx, :]
    return cols.reshape(B * Lout, kernel_size * Cin), Lout


def _ref_ln(x, g, b):
    mu = jnp.mean(x, axis=-1, keepdims=True)
    var = jnp.mean(jnp.square(x - mu), axis=-1, keepdims=True)
    return (x - mu) * jax.lax.rsqrt(var + LN_EPS) * g + b


def reference_forward(x_ncl, p, pe_full):
    x = jnp.transpose(x_ncl, (0, 2, 1)).astype(jnp.float32)
    for name, (k, s, d) in zip(('conv1', 'conv2', 'conv3'), CONV_CFG):
        cp = p[name]
        cols, Lout = causal_im2col(x, k, s, d)
        Cout = cp['w'].shape[0]
        w_col = jnp.transpose(cp['w'], (2, 1, 0)).reshape(-1, Cout)
        y = cols @ w_col + cp['b'][None, :]
        sc = cp['gamma'] / jnp.sqrt(cp['var'] + BN_EPS)
        y = y * sc[None, :] + (cp['beta'] - cp['mean'] * sc)[None, :]
        y = 0.5 * y * (1.0 + jax.lax.erf(y * INV_SQRT2))
        x = y.reshape(x.shape[0], Lout, Cout)

    B, L, D = x.shape
    pe = pe_full[:L]
    xp = x + pe[None]
    q = xp @ p['wq']; k = xp @ p['wk']; v = xp @ p['wv']
    hd = D // NUM_HEADS
    qh = q.reshape(B, L, NUM_HEADS, hd).transpose(0, 2, 1, 3)
    kh = k.reshape(B, L, NUM_HEADS, hd).transpose(0, 2, 1, 3)
    vh = v.reshape(B, L, NUM_HEADS, hd).transpose(0, 2, 1, 3)
    s = jnp.einsum('bhqd,bhkd->bhqk', qh, kh) * ATTN_SCALE
    a = jax.nn.softmax(s, axis=-1)
    o = jnp.einsum('bhqk,bhkd->bhqd', a, vh).transpose(0, 2, 1, 3).reshape(B, L, D)
    o = _ref_ln(o, p['lna_g'], p['lna_b'])
    att = _ref_ln(x + o, p['ln1_g'], p['ln1_b'])
    ff = jnp.maximum(att @ p['w1'] + p['b1'], 0.0)
    ff = ff @ p['w2'] + p['b2']
    out2 = _ref_ln(att + ff, p['ln2_g'], p['ln2_b'])
    pooled = out2.mean(axis=1)
    return pooled @ p['wo'] + p['bo']


# ----------------------------------------------------------------------------
if __name__ == "__main__":
    root = jax.random.PRNGKey(0)
    k_param, k_data = jax.random.split(root)

    params = init_params(k_param)
    pe_full = make_tape_pe(EMB_SIZE, SEQ_LEN)
    x = jax.random.normal(k_data, (BATCH, IN_CHANNELS, SEQ_LEN), dtype=jnp.float32)

    packed = pack_params(params, pe_full)            # one-time parameter packing
    fwd = jax.jit(convtran_forward)
    logits = jax.block_until_ready(fwd(x, packed))

    ref = reference_forward(x, params, pe_full)
    # The in-kernel softmax uses the approximate EUP reciprocal, hence the slightly
    # looser tolerance than a bit-exact-division implementation would need.
    np.testing.assert_allclose(np.asarray(logits), np.asarray(ref),
                               rtol=2e-3, atol=2e-3)
    assert logits.shape == (BATCH, NUM_CLASSES)
    print("KERNEL_OK")
</pallas_src>

<mosaic_0001>
module attributes {stable_mosaic.version = 11 : i64} {
  func.func @_fused_convtran_kernel(%arg0: i32, %arg1: memref<1x64x1xf32, #tpu.memory_space<vmem>>, %arg2: memref<8x32x64xf32, #tpu.memory_space<vmem>>, %arg3: memref<5x16x32xf32, #tpu.memory_space<vmem>>, %arg4: memref<3x8x16xf32, #tpu.memory_space<vmem>>, %arg5: memref<8x1x32xf32, #tpu.memory_space<vmem>>, %arg6: memref<5x32x32xf32, #tpu.memory_space<vmem>>, %arg7: memref<3x32x32xf32, #tpu.memory_space<vmem>>, %arg8: memref<128x32xf32, #tpu.memory_space<vmem>>, %arg9: memref<12x32x8xf32, #tpu.memory_space<vmem>>, %arg10: memref<40x64xf32, #tpu.memory_space<vmem>>, %arg11: memref<1x1x5xf32, #tpu.memory_space<vmem>>) attributes {dimension_semantics = [#tpu.dimension_semantics<parallel>], iteration_bounds = array<i64: 2>, scalar_prefetch = 0 : i64, scratch_operands = 0 : i64, tpu.core_type = #tpu.core_type<tc>, window_params = [{transform_indices = @transform_0, window_bounds = array<i64: 1, 64, 1>}, {pipeline_mode = #tpu.pipeline_mode<synchronous>, transform_indices = @transform_1, window_bounds = array<i64: 8, 32, 64>}, {pipeline_mode = #tpu.pipeline_mode<synchronous>, transform_indices = @transform_2, window_bounds = array<i64: 5, 16, 32>}, {pipeline_mode = #tpu.pipeline_mode<synchronous>, transform_indices = @transform_3, window_bounds = array<i64: 3, 8, 16>}, {pipeline_mode = #tpu.pipeline_mode<synchronous>, transform_indices = @transform_4, window_bounds = array<i64: 8, 1, 32>}, {pipeline_mode = #tpu.pipeline_mode<synchronous>, transform_indices = @transform_5, window_bounds = array<i64: 5, 32, 32>}, {pipeline_mode = #tpu.pipeline_mode<synchronous>, transform_indices = @transform_6, window_bounds = array<i64: 3, 32, 32>}, {pipeline_mode = #tpu.pipeline_mode<synchronous>, transform_indices = @transform_7, window_bounds = array<i64: 128, 32>}, {pipeline_mode = #tpu.pipeline_mode<synchronous>, transform_indices = @transform_8, window_bounds = array<i64: 12, 32, 8>}, {pipeline_mode = #tpu.pipeline_mode<synchronous>, transform_indices = @transform_9, window_bounds = array<i64: 40, 64>}, {transform_indices = @transform_10, window_bounds = array<i64: 1, 1, 5>}]} {
    %c0 = arith.constant 0 : index
    %c0_0 = arith.constant 0 : index
    %c0_1 = arith.constant 0 : index
    %0 = vector.load %arg1[%c0, %c0_0, %c0_1] : memref<1x64x1xf32, #tpu.memory_space<vmem>>, vector<1x64x1xf32>
    %1 = vector.shape_cast %0 : vector<1x64x1xf32> to vector<64x1xf32>
    %2 = vector.shape_cast %1 : vector<64x1xf32> to vector<64x1xf32>
    %3 = vector.broadcast %2 : vector<64x1xf32> to vector<64x32xf32>
    %c0_2 = arith.constant 0 : index
    %c0_3 = arith.constant 0 : index
    %c0_4 = arith.constant 0 : index
    %4 = vector.load %arg2[%c0_2, %c0_3, %c0_4] : memref<8x32x64xf32, #tpu.memory_space<vmem>>, vector<1x32x64xf32>
    %5 = vector.shape_cast %4 : vector<1x32x64xf32> to vector<32x64xf32>
    %cst = arith.constant dense<0.000000e+00> : vector<32x32xf32>
    %6 = tpu.matmul %5, %3, %cst {dimension_numbers = #tpu.dot_dimension_numbers<[1], [0], [0], [1], [0, 0, 1, 1], [], []>} : vector<32x64xf32>, vector<64x32xf32>, vector<32x32xf32> -> vector<32x32xf32>
    %c0_5 = arith.constant 0 : index
    %c0_6 = arith.constant 0 : index
    %c0_7 = arith.constant 0 : index
    %7 = vector.load %arg5[%c0_5, %c0_6, %c0_7] : memref<8x1x32xf32, #tpu.memory_space<vmem>>, vector<1x1x32xf32>
    %8 = vector.shape_cast %7 : vector<1x1x32xf32> to vector<1x32xf32>
    %9 = vector.broadcast %8 : vector<1x32xf32> to vector<32x32xf32>
    %10 = arith.mulf %6, %9 : vector<32x32xf32>
    %c1 = arith.constant 1 : index
    %c0_8 = arith.constant 0 : index
    %c0_9 = arith.constant 0 : index
    %11 = vector.load %arg2[%c1, %c0_8, %c0_9] : memref<8x32x64xf32, #tpu.memory_space<vmem>>, vector<1x32x64xf32>
    %12 = vector.shape_cast %11 : vector<1x32x64xf32> to vector<32x64xf32>
    %cst_10 = arith.constant dense<0.000000e+00> : vector<32x32xf32>
    %13 = tpu.matmul %12, %3, %cst_10 {dimension_numbers = #tpu.dot_dimension_numbers<[1], [0], [0], [1], [0, 0, 1, 1], [], []>} : vector<32x64xf32>, vector<64x32xf32>, vector<32x32xf32> -> vector<32x32xf32>
    %c1_11 = arith.constant 1 : index
    %c0_12 = arith.constant 0 : index
    %c0_13 = arith.constant 0 : index
    %14 = vector.load %arg5[%c1_11, %c0_12, %c0_13] : memref<8x1x32xf32, #tpu.memory_space<vmem>>, vector<1x1x32xf32>
    %15 = vector.shape_cast %14 : vector<1x1x32xf32> to vector<1x32xf32>
    %16 = vector.broadcast %15 : vector<1x32xf32> to vector<32x32xf32>
    %17 = arith.mulf %13, %16 : vector<32x32xf32>
    %18 = arith.addf %10, %17 : vector<32x32xf32>
    %c2 = arith.constant 2 : index
    %c0_14 = arith.constant 0 : index
    %c0_15 = arith.constant 0 : index
    %19 = vector.load %arg2[%c2, %c0_14, %c0_15] : memref<8x32x64xf32, #tpu.memory_space<vmem>>, vector<1x32x64xf32>
    %20 = vector.shape_cast %19 : vector<1x32x64xf32> to vector<32x64xf32>
    %cst_16 = arith.constant dense<0.000000e+00> : vector<32x32xf32>
    %21 = tpu.matmul %20, %3, %cst_16 {dimension_numbers = #tpu.dot_dimension_numbers<[1], [0], [0], [1], [0, 0, 1, 1], [], []>} : vector<32x64xf32>, vector<64x32xf32>, vector<32x32xf32> -> vector<32x32xf32>
    %c2_17 = arith.constant 2 : index
    %c0_18 = arith.constant 0 : index
    %c0_19 = arith.constant 0 : index
    %22 = vector.load %arg5[%c2_17, %c0_18, %c0_19] : memref<8x1x32xf32, #tpu.memory_space<vmem>>, vector<1x1x32xf32>
    %23 = vector.shape_cast %22 : vector<1x1x32xf32> to vector<1x32xf32>
    %24 = vector.broadcast %23 : vector<1x32xf32> to vector<32x32xf32>
    %25 = arith.mulf %21, %24 : vector<32x32xf32>
    %26 = arith.addf %18, %25 : vector<32x32xf32>
    %c3 = arith.constant 3 : index
    %c0_20 = arith.constant 0 : index
    %c0_21 = arith.constant 0 : index
    %27 = vector.load %arg2[%c3, %c0_20, %c0_21] : memref<8x32x64xf32, #tpu.memory_space<vmem>>, vector<1x32x64xf32>
    %28 = vector.shape_cast %27 : vector<1x32x64xf32> to vector<32x64xf32>
    %cst_22 = arith.constant dense<0.000000e+00> : vector<32x32xf32>
    %29 = tpu.matmul %28, %3, %cst_22 {dimension_numbers = #tpu.dot_dimension_numbers<[1], [0], [0], [1], [0, 0, 1, 1], [], []>} : vector<32x64xf32>, vector<64x32xf32>, vector<32x32xf32> -> vector<32x32xf32>
    %c3_23 = arith.constant 3 : index
    %c0_24 = arith.constant 0 : index
    %c0_25 = arith.constant 0 : index
    %30 = vector.load %arg5[%c3_23, %c0_24, %c0_25] : memref<8x1x32xf32, #tpu.memory_space<vmem>>, vector<1x1x32xf32>
    %31 = vector.shape_cast %30 : vector<1x1x32xf32> to vector<1x32xf32>
    %32 = vector.broadcast %31 : vector<1x32xf32> to vector<32x32xf32>
    %33 = arith.mulf %29, %32 : vector<32x32xf32>
    %34 = arith.addf %26, %33 : vector<32x32xf32>
    %c4 = arith.constant 4 : index
    %c0_26 = arith.constant 0 : index
    %c0_27 = arith.constant 0 : index
    %35 = vector.load %arg2[%c4, %c0_26, %c0_27] : memref<8x32x64xf32, #tpu.memory_space<vmem>>, vector<1x32x64xf32>
    %36 = vector.shape_cast %35 : vector<1x32x64xf32> to vector<32x64xf32>
    %cst_28 = arith.constant dense<0.000000e+00> : vector<32x32xf32>
    %37 = tpu.matmul %36, %3, %cst_28 {dimension_numbers = #tpu.dot_dimension_numbers<[1], [0], [0], [1], [0, 0, 1, 1], [], []>} : vector<32x64xf32>, vector<64x32xf32>, vector<32x32xf32> -> vector<32x32xf32>
    %c4_29 = arith.constant 4 : index
    %c0_30 = arith.constant 0 : index
    %c0_31 = arith.constant 0 : index
    %38 = vector.load %arg5[%c4_29, %c0_30, %c0_31] : memref<8x1x32xf32, #tpu.memory_space<vmem>>, vector<1x1x32xf32>
    %39 = vector.shape_cast %38 : vector<1x1x32xf32> to vector<1x32xf32>
    %40 = vector.broadcast %39 : vector<1x32xf32> to vector<32x32xf32>
    %41 = arith.mulf %37, %40 : vector<32x32xf32>
    %42 = arith.addf %34, %41 : vector<32x32xf32>
    %c5 = arith.constant 5 : index
    %c0_32 = arith.constant 0 : index
    %c0_33 = arith.constant 0 : index
    %43 = vector.load %arg2[%c5, %c0_32, %c0_33] : memref<8x32x64xf32, #tpu.memory_space<vmem>>, vector<1x32x64xf32>
    %44 = vector.shape_cast %43 : vector<1x32x64xf32> to vector<32x64xf32>
    %cst_34 = arith.constant dense<0.000000e+00> : vector<32x32xf32>
    %45 = tpu.matmul %44, %3, %cst_34 {dimension_numbers = #tpu.dot_dimension_numbers<[1], [0], [0], [1], [0, 0, 1, 1], [], []>} : vector<32x64xf32>, vector<64x32xf32>, vector<32x32xf32> -> vector<32x32xf32>
    %c5_35 = arith.constant 5 : index
    %c0_36 = arith.constant 0 : index
    %c0_37 = arith.constant 0 : index
    %46 = vector.load %arg5[%c5_35, %c0_36, %c0_37] : memref<8x1x32xf32, #tpu.memory_space<vmem>>, vector<1x1x32xf32>
    %47 = vector.shape_cast %46 : vector<1x1x32xf32> to vector<1x32xf32>
    %48 = vector.broadcast %47 : vector<1x32xf32> to vector<32x32xf32>
    %49 = arith.mulf %45, %48 : vector<32x32xf32>
    %50 = arith.addf %42, %49 : vector<32x32xf32>
    %c6 = arith.constant 6 : index
    %c0_38 = arith.constant 0 : index
    %c0_39 = arith.constant 0 : index
    %51 = vector.load %arg2[%c6, %c0_38, %c0_39] : memref<8x32x64xf32, #tpu.memory_space<vmem>>, vector<1x32x64xf32>
    %52 = vector.shape_cast %51 : vector<1x32x64xf32> to vector<32x64xf32>
    %cst_40 = arith.constant dense<0.000000e+00> : vector<32x32xf32>
    %53 = tpu.matmul %52, %3, %cst_40 {dimension_numbers = #tpu.dot_dimension_numbers<[1], [0], [0], [1], [0, 0, 1, 1], [], []>} : vector<32x64xf32>, vector<64x32xf32>, vector<32x32xf32> -> vector<32x32xf32>
    %c6_41 = arith.constant 6 : index
    %c0_42 = arith.constant 0 : index
    %c0_43 = arith.constant 0 : index
    %54 = vector.load %arg5[%c6_41, %c0_42, %c0_43] : memref<8x1x32xf32, #tpu.memory_space<vmem>>, vector<1x1x32xf32>
    %55 = vector.shape_cast %54 : vector<1x1x32xf32> to vector<1x32xf32>
    %56 = vector.broadcast %55 : vector<1x32xf32> to vector<32x32xf32>
    %57 = arith.mulf %53, %56 : vector<32x32xf32>
    %58 = arith.addf %50, %57 : vector<32x32xf32>
    %c7 = arith.constant 7 : index
    %c0_44 = arith.constant 0 : index
    %c0_45 = arith.constant 0 : index
    %59 = vector.load %arg2[%c7, %c0_44, %c0_45] : memref<8x32x64xf32, #tpu.memory_space<vmem>>, vector<1x32x64xf32>
    %60 = vector.shape_cast %59 : vector<1x32x64xf32> to vector<32x64xf32>
    %cst_46 = arith.constant dense<0.000000e+00> : vector<32x32xf32>
    %61 = tpu.matmul %60, %3, %cst_46 {dimension_numbers = #tpu.dot_dimension_numbers<[1], [0], [0], [1], [0, 0, 1, 1], [], []>} : vector<32x64xf32>, vector<64x32xf32>, vector<32x32xf32> -> vector<32x32xf32>
    %c7_47 = arith.constant 7 : index
    %c0_48 = arith.constant 0 : index
    %c0_49 = arith.constant 0 : index
    %62 = vector.load %arg5[%c7_47, %c0_48, %c0_49] : memref<8x1x32xf32, #tpu.memory_space<vmem>>, vector<1x1x32xf32>
    %63 = vector.shape_cast %62 : vector<1x1x32xf32> to vector<1x32xf32>
    %64 = vector.broadcast %63 : vector<1x32xf32> to vector<32x32xf32>
    %65 = arith.mulf %61, %64 : vector<32x32xf32>
    %66 = arith.addf %58, %65 : vector<32x32xf32>
    %c0_50 = arith.constant 0 : index
    %c0_51 = arith.constant 0 : index
    %67 = vector.load %arg8[%c0_50, %c0_51] : memref<128x32xf32, #tpu.memory_space<vmem>>, vector<1x32xf32>
    %68 = vector.broadcast %67 : vector<1x32xf32> to vector<32x32xf32>
    %69 = arith.addf %66, %68 : vector<32x32xf32>
    %cst_52 = arith.constant 5.000000e-01 : f32
    %70 = vector.broadcast %cst_52 : f32 to vector<32x32xf32>
    %71 = arith.mulf %70, %69 : vector<32x32xf32>
    %cst_53 = arith.constant 0.707106769 : f32
    %72 = vector.broadcast %cst_53 : f32 to vector<32x32xf32>
    %73 = arith.mulf %69, %72 : vector<32x32xf32>
    %74 = math.erf %73 : vector<32x32xf32>
    %cst_54 = arith.constant 1.000000e+00 : f32
    %75 = vector.broadcast %cst_54 : f32 to vector<32x32xf32>
    %76 = arith.addf %75, %74 : vector<32x32xf32>
    %77 = arith.mulf %71, %76 : vector<32x32xf32>
    %c0_55 = arith.constant 0 : index
    %c0_56 = arith.constant 0 : index
    %c0_57 = arith.constant 0 : index
    %78 = vector.load %arg3[%c0_55, %c0_56, %c0_57] : memref<5x16x32xf32, #tpu.memory_space<vmem>>, vector<1x16x32xf32>
    %79 = vector.shape_cast %78 : vector<1x16x32xf32> to vector<16x32xf32>
    %cst_58 = arith.constant dense<0.000000e+00> : vector<16x32xf32>
    %80 = tpu.matmul %79, %77, %cst_58 {dimension_numbers = #tpu.dot_dimension_numbers<[1], [0], [0], [1], [0, 0, 1, 1], [], []>} : vector<16x32xf32>, vector<32x32xf32>, vector<16x32xf32> -> vector<16x32xf32>
    %c0_59 = arith.constant 0 : index
    %c0_60 = arith.constant 0 : index
    %c0_61 = arith.constant 0 : index
    %81 = vector.load %arg6[%c0_59, %c0_60, %c0_61] : memref<5x32x32xf32, #tpu.memory_space<vmem>>, vector<1x32x32xf32>
    %82 = vector.shape_cast %81 : vector<1x32x32xf32> to vector<32x32xf32>
    %cst_62 = arith.constant dense<0.000000e+00> : vector<16x32xf32>
    %83 = tpu.matmul %80, %82, %cst_62 {dimension_numbers = #tpu.dot_dimension_numbers<[1], [0], [0], [1], [0, 0, 1, 1], [], []>} : vector<16x32xf32>, vector<32x32xf32>, vector<16x32xf32> -> vector<16x32xf32>
    %c1_63 = arith.constant 1 : index
    %c0_64 = arith.constant 0 : index
    %c0_65 = arith.constant 0 : index
    %84 = vector.load %arg3[%c1_63, %c0_64, %c0_65] : memref<5x16x32xf32, #tpu.memory_space<vmem>>, vector<1x16x32xf32>
    %85 = vector.shape_cast %84 : vector<1x16x32xf32> to vector<16x32xf32>
    %cst_66 = arith.constant dense<0.000000e+00> : vector<16x32xf32>
    %86 = tpu.matmul %85, %77, %cst_66 {dimension_numbers = #tpu.dot_dimension_numbers<[1], [0], [0], [1], [0, 0, 1, 1], [], []>} : vector<16x32xf32>, vector<32x32xf32>, vector<16x32xf32> -> vector<16x32xf32>
    %c1_67 = arith.constant 1 : index
    %c0_68 = arith.constant 0 : index
    %c0_69 = arith.constant 0 : index
    %87 = vector.load %arg6[%c1_67, %c0_68, %c0_69] : memref<5x32x32xf32, #tpu.memory_space<vmem>>, vector<1x32x32xf32>
    %88 = vector.shape_cast %87 : vector<1x32x32xf32> to vector<32x32xf32>
    %cst_70 = arith.constant dense<0.000000e+00> : vector<16x32xf32>
    %89 = tpu.matmul %86, %88, %cst_70 {dimension_numbers = #tpu.dot_dimension_numbers<[1], [0], [0], [1], [0, 0, 1, 1], [], []>} : vector<16x32xf32>, vector<32x32xf32>, vector<16x32xf32> -> vector<16x32xf32>
    %90 = arith.addf %83, %89 : vector<16x32xf32>
    %c2_71 = arith.constant 2 : index
    %c0_72 = arith.constant 0 : index
    %c0_73 = arith.constant 0 : index
    %91 = vector.load %arg3[%c2_71, %c0_72, %c0_73] : memref<5x16x32xf32, #tpu.memory_space<vmem>>, vector<1x16x32xf32>
    %92 = vector.shape_cast %91 : vector<1x16x32xf32> to vector<16x32xf32>
    %cst_74 = arith.constant dense<0.000000e+00> : vector<16x32xf32>
    %93 = tpu.matmul %92, %77, %cst_74 {dimension_numbers = #tpu.dot_dimension_numbers<[1], [0], [0], [1], [0, 0, 1, 1], [], []>} : vector<16x32xf32>, vector<32x32xf32>, vector<16x32xf32> -> vector<16x32xf32>
    %c2_75 = arith.constant 2 : index
    %c0_76 = arith.constant 0 : index
    %c0_77 = arith.constant 0 : index
    %94 = vector.load %arg6[%c2_75, %c0_76, %c0_77] : memref<5x32x32xf32, #tpu.memory_space<vmem>>, vector<1x32x32xf32>
    %95 = vector.shape_cast %94 : vector<1x32x32xf32> to vector<32x32xf32>
    %cst_78 = arith.constant dense<0.000000e+00> : vector<16x32xf32>
    %96 = tpu.matmul %93, %95, %cst_78 {dimension_numbers = #tpu.dot_dimension_numbers<[1], [0], [0], [1], [0, 0, 1, 1], [], []>} : vector<16x32xf32>, vector<32x32xf32>, vector<16x32xf32> -> vector<16x32xf32>
    %97 = arith.addf %90, %96 : vector<16x32xf32>
    %c3_79 = arith.constant 3 : index
    %c0_80 = arith.constant 0 : index
    %c0_81 = arith.constant 0 : index
    %98 = vector.load %arg3[%c3_79, %c0_80, %c0_81] : memref<5x16x32xf32, #tpu.memory_space<vmem>>, vector<1x16x32xf32>
    %99 = vector.shape_cast %98 : vector<1x16x32xf32> to vector<16x32xf32>
    %cst_82 = arith.constant dense<0.000000e+00> : vector<16x32xf32>
    %100 = tpu.matmul %99, %77, %cst_82 {dimension_numbers = #tpu.dot_dimension_numbers<[1], [0], [0], [1], [0, 0, 1, 1], [], []>} : vector<16x32xf32>, vector<32x32xf32>, vector<16x32xf32> -> vector<16x32xf32>
    %c3_83 = arith.constant 3 : index
    %c0_84 = arith.constant 0 : index
    %c0_85 = arith.constant 0 : index
    %101 = vector.load %arg6[%c3_83, %c0_84, %c0_85] : memref<5x32x32xf32, #tpu.memory_space<vmem>>, vector<1x32x32xf32>
    %102 = vector.shape_cast %101 : vector<1x32x32xf32> to vector<32x32xf32>
    %cst_86 = arith.constant dense<0.000000e+00> : vector<16x32xf32>
    %103 = tpu.matmul %100, %102, %cst_86 {dimension_numbers = #tpu.dot_dimension_numbers<[1], [0], [0], [1], [0, 0, 1, 1], [], []>} : vector<16x32xf32>, vector<32x32xf32>, vector<16x32xf32> -> vector<16x32xf32>
    %104 = arith.addf %97, %103 : vector<16x32xf32>
    %c4_87 = arith.constant 4 : index
    %c0_88 = arith.constant 0 : index
    %c0_89 = arith.constant 0 : index
    %105 = vector.load %arg3[%c4_87, %c0_88, %c0_89] : memref<5x16x32xf32, #tpu.memory_space<vmem>>, vector<1x16x32xf32>
    %106 = vector.shape_cast %105 : vector<1x16x32xf32> to vector<16x32xf32>
    %cst_90 = arith.constant dense<0.000000e+00> : vector<16x32xf32>
    %107 = tpu.matmul %106, %77, %cst_90 {dimension_numbers = #tpu.dot_dimension_numbers<[1], [0], [0], [1], [0, 0, 1, 1], [], []>} : vector<16x32xf32>, vector<32x32xf32>, vector<16x32xf32> -> vector<16x32xf32>
    %c4_91 = arith.constant 4 : index
    %c0_92 = arith.constant 0 : index
    %c0_93 = arith.constant 0 : index
    %108 = vector.load %arg6[%c4_91, %c0_92, %c0_93] : memref<5x32x32xf32, #tpu.memory_space<vmem>>, vector<1x32x32xf32>
    %109 = vector.shape_cast %108 : vector<1x32x32xf32> to vector<32x32xf32>
    %cst_94 = arith.constant dense<0.000000e+00> : vector<16x32xf32>
    %110 = tpu.matmul %107, %109, %cst_94 {dimension_numbers = #tpu.dot_dimension_numbers<[1], [0], [0], [1], [0, 0, 1, 1], [], []>} : vector<16x32xf32>, vector<32x32xf32>, vector<16x32xf32> -> vector<16x32xf32>
    %111 = arith.addf %104, %110 : vector<16x32xf32>
    %c1_95 = arith.constant 1 : index
    %c0_96 = arith.constant 0 : index
    %112 = vector.load %arg8[%c1_95, %c0_96] : memref<128x32xf32, #tpu.memory_space<vmem>>, vector<1x32xf32>
    %113 = vector.broadcast %112 : vector<1x32xf32> to vector<16x32xf32>
    %114 = arith.addf %111, %113 : vector<16x32xf32>
    %cst_97 = arith.constant 5.000000e-01 : f32
    %115 = vector.broadcast %cst_97 : f32 to vector<16x32xf32>
    %116 = arith.mulf %115, %114 : vector<16x32xf32>
    %cst_98 = arith.constant 0.707106769 : f32
    %117 = vector.broadcast %cst_98 : f32 to vector<16x32xf32>
    %118 = arith.mulf %114, %117 : vector<16x32xf32>
    %119 = math.erf %118 : vector<16x32xf32>
    %cst_99 = arith.constant 1.000000e+00 : f32
    %120 = vector.broadcast %cst_99 : f32 to vector<16x32xf32>
    %121 = arith.addf %120, %119 : vector<16x32xf32>
    %122 = arith.mulf %116, %121 : vector<16x32xf32>
    %c0_100 = arith.constant 0 : index
    %c0_101 = arith.constant 0 : index
    %c0_102 = arith.constant 0 : index
    %123 = vector.load %arg4[%c0_100, %c0_101, %c0_102] : memref<3x8x16xf32, #tpu.memory_space<vmem>>, vector<1x8x16xf32>
    %124 = vector.shape_cast %123 : vector<1x8x16xf32> to vector<8x16xf32>
    %cst_103 = arith.constant dense<0.000000e+00> : vector<8x32xf32>
    %125 = tpu.matmul %124, %122, %cst_103 {dimension_numbers = #tpu.dot_dimension_numbers<[1], [0], [0], [1], [0, 0, 1, 1], [], []>} : vector<8x16xf32>, vector<16x32xf32>, vector<8x32xf32> -> vector<8x32xf32>
    %c0_104 = arith.constant 0 : index
    %c0_105 = arith.constant 0 : index
    %c0_106 = arith.constant 0 : index
    %126 = vector.load %arg7[%c0_104, %c0_105, %c0_106] : memref<3x32x32xf32, #tpu.memory_space<vmem>>, vector<1x32x32xf32>
    %127 = vector.shape_cast %126 : vector<1x32x32xf32> to vector<32x32xf32>
    %cst_107 = arith.constant dense<0.000000e+00> : vector<8x32xf32>
    %128 = tpu.matmul %125, %127, %cst_107 {dimension_numbers = #tpu.dot_dimension_numbers<[1], [0], [0], [1], [0, 0, 1, 1], [], []>} : vector<8x32xf32>, vector<32x32xf32>, vector<8x32xf32> -> vector<8x32xf32>
    %c1_108 = arith.constant 1 : index
    %c0_109 = arith.constant 0 : index
    %c0_110 = arith.constant 0 : index
    %129 = vector.load %arg4[%c1_108, %c0_109, %c0_110] : memref<3x8x16xf32, #tpu.memory_space<vmem>>, vector<1x8x16xf32>
    %130 = vector.shape_cast %129 : vector<1x8x16xf32> to vector<8x16xf32>
    %cst_111 = arith.constant dense<0.000000e+00> : vector<8x32xf32>
    %131 = tpu.matmul %130, %122, %cst_111 {dimension_numbers = #tpu.dot_dimension_numbers<[1], [0], [0], [1], [0, 0, 1, 1], [], []>} : vector<8x16xf32>, vector<16x32xf32>, vector<8x32xf32> -> vector<8x32xf32>
    %c1_112 = arith.constant 1 : index
    %c0_113 = arith.constant 0 : index
    %c0_114 = arith.constant 0 : index
    %132 = vector.load %arg7[%c1_112, %c0_113, %c0_114] : memref<3x32x32xf32, #tpu.memory_space<vmem>>, vector<1x32x32xf32>
    %133 = vector.shape_cast %132 : vector<1x32x32xf32> to vector<32x32xf32>
    %cst_115 = arith.constant dense<0.000000e+00> : vector<8x32xf32>
    %134 = tpu.matmul %131, %133, %cst_115 {dimension_numbers = #tpu.dot_dimension_numbers<[1], [0], [0], [1], [0, 0, 1, 1], [], []>} : vector<8x32xf32>, vector<32x32xf32>, vector<8x32xf32> -> vector<8x32xf32>
    %135 = arith.addf %128, %134 : vector<8x32xf32>
    %c2_116 = arith.constant 2 : index
    %c0_117 = arith.constant 0 : index
    %c0_118 = arith.constant 0 : index
    %136 = vector.load %arg4[%c2_116, %c0_117, %c0_118] : memref<3x8x16xf32, #tpu.memory_space<vmem>>, vector<1x8x16xf32>
    %137 = vector.shape_cast %136 : vector<1x8x16xf32> to vector<8x16xf32>
    %cst_119 = arith.constant dense<0.000000e+00> : vector<8x32xf32>
    %138 = tpu.matmul %137, %122, %cst_119 {dimension_numbers = #tpu.dot_dimension_numbers<[1], [0], [0], [1], [0, 0, 1, 1], [], []>} : vector<8x16xf32>, vector<16x32xf32>, vector<8x32xf32> -> vector<8x32xf32>
    %c2_120 = arith.constant 2 : index
    %c0_121 = arith.constant 0 : index
    %c0_122 = arith.constant 0 : index
    %139 = vector.load %arg7[%c2_120, %c0_121, %c0_122] : memref<3x32x32xf32, #tpu.memory_space<vmem>>, vector<1x32x32xf32>
    %140 = vector.shape_cast %139 : vector<1x32x32xf32> to vector<32x32xf32>
    %cst_123 = arith.constant dense<0.000000e+00> : vector<8x32xf32>
    %141 = tpu.matmul %138, %140, %cst_123 {dimension_numbers = #tpu.dot_dimension_numbers<[1], [0], [0], [1], [0, 0, 1, 1], [], []>} : vector<8x32xf32>, vector<32x32xf32>, vector<8x32xf32> -> vector<8x32xf32>
    %142 = arith.addf %135, %141 : vector<8x32xf32>
    %c2_124 = arith.constant 2 : index
    %c0_125 = arith.constant 0 : index
    %143 = vector.load %arg8[%c2_124, %c0_125] : memref<128x32xf32, #tpu.memory_space<vmem>>, vector<1x32xf32>
    %144 = vector.broadcast %143 : vector<1x32xf32> to vector<8x32xf32>
    %145 = arith.addf %142, %144 : vector<8x32xf32>
    %cst_126 = arith.constant 5.000000e-01 : f32
    %146 = vector.broadcast %cst_126 : f32 to vector<8x32xf32>
    %147 = arith.mulf %146, %145 : vector<8x32xf32>
    %cst_127 = arith.constant 0.707106769 : f32
    %148 = vector.broadcast %cst_127 : f32 to vector<8x32xf32>
    %149 = arith.mulf %145, %148 : vector<8x32xf32>
    %150 = math.erf %149 : vector<8x32xf32>
    %cst_128 = arith.constant 1.000000e+00 : f32
    %151 = vector.broadcast %cst_128 : f32 to vector<8x32xf32>
    %152 = arith.addf %151, %150 : vector<8x32xf32>
    %153 = arith.mulf %147, %152 : vector<8x32xf32>
    %c16 = arith.constant 16 : index
    %c0_129 = arith.constant 0 : index
    %154 = vector.load %arg8[%c16, %c0_129] : memref<128x32xf32, #tpu.memory_space<vmem>>, vector<8x32xf32>
    %155 = arith.addf %153, %154 : vector<8x32xf32>
    %c0_130 = arith.constant 0 : index
    %c0_131 = arith.constant 0 : index
    %c0_132 = arith.constant 0 : index
    %156 = vector.load %arg9[%c0_130, %c0_131, %c0_132] : memref<12x32x8xf32, #tpu.memory_space<vmem>>, vector<1x32x8xf32>
    %157 = vector.shape_cast %156 : vector<1x32x8xf32> to vector<32x8xf32>
    %cst_133 = arith.constant dense<0.000000e+00> : vector<8x8xf32>
    %158 = tpu.matmul %155, %157, %cst_133 {dimension_numbers = #tpu.dot_dimension_numbers<[1], [0], [0], [1], [0, 0, 1, 1], [], []>} : vector<8x32xf32>, vector<32x8xf32>, vector<8x8xf32> -> vector<8x8xf32>
    %c4_134 = arith.constant 4 : index
    %c0_135 = arith.constant 0 : index
    %c0_136 = arith.constant 0 : index
    %159 = vector.load %arg9[%c4_134, %c0_135, %c0_136] : memref<12x32x8xf32, #tpu.memory_space<vmem>>, vector<1x32x8xf32>
    %160 = vector.shape_cast %159 : vector<1x32x8xf32> to vector<32x8xf32>
    %cst_137 = arith.constant dense<0.000000e+00> : vector<8x8xf32>
    %161 = tpu.matmul %155, %160, %cst_137 {dimension_numbers = #tpu.dot_dimension_numbers<[1], [0], [0], [1], [0, 0, 1, 1], [], []>} : vector<8x32xf32>, vector<32x8xf32>, vector<8x8xf32> -> vector<8x8xf32>
    %c8 = arith.constant 8 : index
    %c0_138 = arith.constant 0 : index
    %c0_139 = arith.constant 0 : index
    %162 = vector.load %arg9[%c8, %c0_138, %c0_139] : memref<12x32x8xf32, #tpu.memory_space<vmem>>, vector<1x32x8xf32>
    %163 = vector.shape_cast %162 : vector<1x32x8xf32> to vector<32x8xf32>
    %cst_140 = arith.constant dense<0.000000e+00> : vector<8x8xf32>
    %164 = tpu.matmul %155, %163, %cst_140 {dimension_numbers = #tpu.dot_dimension_numbers<[1], [0], [0], [1], [0, 0, 1, 1], [], []>} : vector<8x32xf32>, vector<32x8xf32>, vector<8x8xf32> -> vector<8x8xf32>
    %165 = tpu.transpose %161, [1, 0] : vector<8x8xf32> -> vector<8x8xf32>
    %cst_141 = arith.constant dense<0.000000e+00> : vector<8x8xf32>
    %166 = tpu.matmul %158, %165, %cst_141 {dimension_numbers = #tpu.dot_dimension_numbers<[1], [0], [0], [1], [0, 0, 1, 1], [], []>} : vector<8x8xf32>, vector<8x8xf32>, vector<8x8xf32> -> vector<8x8xf32>
    %cst_142 = arith.constant 0.176776692 : f32
    %167 = vector.broadcast %cst_142 : f32 to vector<8x8xf32>
    %168 = arith.mulf %166, %167 : vector<8x8xf32>
    %cst_143 = arith.constant dense<0xFF800000> : vector<8xf32>
    %169 = vector.multi_reduction <maximumf>, %168, %cst_143 [1] : vector<8x8xf32> to vector<8xf32>
    %170 = vector.shape_cast %169 : vector<8xf32> to vector<8x1xf32>
    %171 = vector.broadcast %170 : vector<8x1xf32> to vector<8x8xf32>
    %172 = arith.subf %168, %171 : vector<8x8xf32>
    %173 = math.exp %172 : vector<8x8xf32>
    %cst_144 = arith.constant dense<0.000000e+00> : vector<8xf32>
    %174 = vector.multi_reduction <add>, %173, %cst_144 [1] : vector<8x8xf32> to vector<8xf32>
    %175 = vector.shape_cast %174 : vector<8xf32> to vector<8x1xf32>
    %176 = tpu.reciprocal %175 {approx = true} : vector<8x1xf32> -> vector<8x1xf32>
    %177 = vector.broadcast %176 : vector<8x1xf32> to vector<8x8xf32>
    %178 = arith.mulf %173, %177 : vector<8x8xf32>
    %cst_145 = arith.constant dense<0.000000e+00> : vector<8x8xf32>
    %179 = tpu.matmul %178, %164, %cst_145 {dimension_numbers = #tpu.dot_dimension_numbers<[1], [0], [0], [1], [0, 0, 1, 1], [], []>} : vector<8x8xf32>, vector<8x8xf32>, vector<8x8xf32> -> vector<8x8xf32>
    %c1_146 = arith.constant 1 : index
    %c0_147 = arith.constant 0 : index
    %c0_148 = arith.constant 0 : index
    %180 = vector.load %arg9[%c1_146, %c0_147, %c0_148] : memref<12x32x8xf32, #tpu.memory_space<vmem>>, vector<1x32x8xf32>
    %181 = vector.shape_cast %180 : vector<1x32x8xf32> to vector<32x8xf32>
    %cst_149 = arith.constant dense<0.000000e+00> : vector<8x8xf32>
    %182 = tpu.matmul %155, %181, %cst_149 {dimension_numbers = #tpu.dot_dimension_numbers<[1], [0], [0], [1], [0, 0, 1, 1], [], []>} : vector<8x32xf32>, vector<32x8xf32>, vector<8x8xf32> -> vector<8x8xf32>
    %c5_150 = arith.constant 5 : index
    %c0_151 = arith.constant 0 : index
    %c0_152 = arith.constant 0 : index
    %183 = vector.load %arg9[%c5_150, %c0_151, %c0_152] : memref<12x32x8xf32, #tpu.memory_space<vmem>>, vector<1x32x8xf32>
    %184 = vector.shape_cast %183 : vector<1x32x8xf32> to vector<32x8xf32>
    %cst_153 = arith.constant dense<0.000000e+00> : vector<8x8xf32>
    %185 = tpu.matmul %155, %184, %cst_153 {dimension_numbers = #tpu.dot_dimension_numbers<[1], [0], [0], [1], [0, 0, 1, 1], [], []>} : vector<8x32xf32>, vector<32x8xf32>, vector<8x8xf32> -> vector<8x8xf32>
    %c9 = arith.constant 9 : index
    %c0_154 = arith.constant 0 : index
    %c0_155 = arith.constant 0 : index
    %186 = vector.load %arg9[%c9, %c0_154, %c0_155] : memref<12x32x8xf32, #tpu.memory_space<vmem>>, vector<1x32x8xf32>
    %187 = vector.shape_cast %186 : vector<1x32x8xf32> to vector<32x8xf32>
    %cst_156 = arith.constant dense<0.000000e+00> : vector<8x8xf32>
    %188 = tpu.matmul %155, %187, %cst_156 {dimension_numbers = #tpu.dot_dimension_numbers<[1], [0], [0], [1], [0, 0, 1, 1], [], []>} : vector<8x32xf32>, vector<32x8xf32>, vector<8x8xf32> -> vector<8x8xf32>
    %189 = tpu.transpose %185, [1, 0] : vector<8x8xf32> -> vector<8x8xf32>
    %cst_157 = arith.constant dense<0.000000e+00> : vector<8x8xf32>
    %190 = tpu.matmul %182, %189, %cst_157 {dimension_numbers = #tpu.dot_dimension_numbers<[1], [0], [0], [1], [0, 0, 1, 1], [], []>} : vector<8x8xf32>, vector<8x8xf32>, vector<8x8xf32> -> vector<8x8xf32>
    %cst_158 = arith.constant 0.176776692 : f32
    %191 = vector.broadcast %cst_158 : f32 to vector<8x8xf32>
    %192 = arith.mulf %190, %191 : vector<8x8xf32>
    %cst_159 = arith.constant dense<0xFF800000> : vector<8xf32>
    %193 = vector.multi_reduction <maximumf>, %192, %cst_159 [1] : vector<8x8xf32> to vector<8xf32>
    %194 = vector.shape_cast %193 : vector<8xf32> to vector<8x1xf32>
    %195 = vector.broadcast %194 : vector<8x1xf32> to vector<8x8xf32>
    %196 = arith.subf %192, %195 : vector<8x8xf32>
    %197 = math.exp %196 : vector<8x8xf32>
    %cst_160 = arith.constant dense<0.000000e+00> : vector<8xf32>
    %198 = vector.multi_reduction <add>, %197, %cst_160 [1] : vector<8x8xf32> to vector<8xf32>
    %199 = vector.shape_cast %198 : vector<8xf32> to vector<8x1xf32>
    %200 = tpu.reciprocal %199 {approx = true} : vector<8x1xf32> -> vector<8x1xf32>
    %201 = vector.broadcast %200 : vector<8x1xf32> to vector<8x8xf32>
    %202 = arith.mulf %197, %201 : vector<8x8xf32>
    %cst_161 = arith.constant dense<0.000000e+00> : vector<8x8xf32>
    %203 = tpu.matmul %202, %188, %cst_161 {dimension_numbers = #tpu.dot_dimension_numbers<[1], [0], [0], [1], [0, 0, 1, 1], [], []>} : vector<8x8xf32>, vector<8x8xf32>, vector<8x8xf32> -> vector<8x8xf32>
    %c2_162 = arith.constant 2 : index
    %c0_163 = arith.constant 0 : index
    %c0_164 = arith.constant 0 : index
    %204 = vector.load %arg9[%c2_162, %c0_163, %c0_164] : memref<12x32x8xf32, #tpu.memory_space<vmem>>, vector<1x32x8xf32>
    %205 = vector.shape_cast %204 : vector<1x32x8xf32> to vector<32x8xf32>
    %cst_165 = arith.constant dense<0.000000e+00> : vector<8x8xf32>
    %206 = tpu.matmul %155, %205, %cst_165 {dimension_numbers = #tpu.dot_dimension_numbers<[1], [0], [0], [1], [0, 0, 1, 1], [], []>} : vector<8x32xf32>, vector<32x8xf32>, vector<8x8xf32> -> vector<8x8xf32>
    %c6_166 = arith.constant 6 : index
    %c0_167 = arith.constant 0 : index
    %c0_168 = arith.constant 0 : index
    %207 = vector.load %arg9[%c6_166, %c0_167, %c0_168] : memref<12x32x8xf32, #tpu.memory_space<vmem>>, vector<1x32x8xf32>
    %208 = vector.shape_cast %207 : vector<1x32x8xf32> to vector<32x8xf32>
    %cst_169 = arith.constant dense<0.000000e+00> : vector<8x8xf32>
    %209 = tpu.matmul %155, %208, %cst_169 {dimension_numbers = #tpu.dot_dimension_numbers<[1], [0], [0], [1], [0, 0, 1, 1], [], []>} : vector<8x32xf32>, vector<32x8xf32>, vector<8x8xf32> -> vector<8x8xf32>
    %c10 = arith.constant 10 : index
    %c0_170 = arith.constant 0 : index
    %c0_171 = arith.constant 0 : index
    %210 = vector.load %arg9[%c10, %c0_170, %c0_171] : memref<12x32x8xf32, #tpu.memory_space<vmem>>, vector<1x32x8xf32>
    %211 = vector.shape_cast %210 : vector<1x32x8xf32> to vector<32x8xf32>
    %cst_172 = arith.constant dense<0.000000e+00> : vector<8x8xf32>
    %212 = tpu.matmul %155, %211, %cst_172 {dimension_numbers = #tpu.dot_dimension_numbers<[1], [0], [0], [1], [0, 0, 1, 1], [], []>} : vector<8x32xf32>, vector<32x8xf32>, vector<8x8xf32> -> vector<8x8xf32>
    %213 = tpu.transpose %209, [1, 0] : vector<8x8xf32> -> vector<8x8xf32>
    %cst_173 = arith.constant dense<0.000000e+00> : vector<8x8xf32>
    %214 = tpu.matmul %206, %213, %cst_173 {dimension_numbers = #tpu.dot_dimension_numbers<[1], [0], [0], [1], [0, 0, 1, 1], [], []>} : vector<8x8xf32>, vector<8x8xf32>, vector<8x8xf32> -> vector<8x8xf32>
    %cst_174 = arith.constant 0.176776692 : f32
    %215 = vector.broadcast %cst_174 : f32 to vector<8x8xf32>
    %216 = arith.mulf %214, %215 : vector<8x8xf32>
    %cst_175 = arith.constant dense<0xFF800000> : vector<8xf32>
    %217 = vector.multi_reduction <maximumf>, %216, %cst_175 [1] : vector<8x8xf32> to vector<8xf32>
    %218 = vector.shape_cast %217 : vector<8xf32> to vector<8x1xf32>
    %219 = vector.broadcast %218 : vector<8x1xf32> to vector<8x8xf32>
    %220 = arith.subf %216, %219 : vector<8x8xf32>
    %221 = math.exp %220 : vector<8x8xf32>
    %cst_176 = arith.constant dense<0.000000e+00> : vector<8xf32>
    %222 = vector.multi_reduction <add>, %221, %cst_176 [1] : vector<8x8xf32> to vector<8xf32>
    %223 = vector.shape_cast %222 : vector<8xf32> to vector<8x1xf32>
    %224 = tpu.reciprocal %223 {approx = true} : vector<8x1xf32> -> vector<8x1xf32>
    %225 = vector.broadcast %224 : vector<8x1xf32> to vector<8x8xf32>
    %226 = arith.mulf %221, %225 : vector<8x8xf32>
    %cst_177 = arith.constant dense<0.000000e+00> : vector<8x8xf32>
    %227 = tpu.matmul %226, %212, %cst_177 {dimension_numbers = #tpu.dot_dimension_numbers<[1], [0], [0], [1], [0, 0, 1, 1], [], []>} : vector<8x8xf32>, vector<8x8xf32>, vector<8x8xf32> -> vector<8x8xf32>
    %c3_178 = arith.constant 3 : index
    %c0_179 = arith.constant 0 : index
    %c0_180 = arith.constant 0 : index
    %228 = vector.load %arg9[%c3_178, %c0_179, %c0_180] : memref<12x32x8xf32, #tpu.memory_space<vmem>>, vector<1x32x8xf32>
    %229 = vector.shape_cast %228 : vector<1x32x8xf32> to vector<32x8xf32>
    %cst_181 = arith.constant dense<0.000000e+00> : vector<8x8xf32>
    %230 = tpu.matmul %155, %229, %cst_181 {dimension_numbers = #tpu.dot_dimension_numbers<[1], [0], [0], [1], [0, 0, 1, 1], [], []>} : vector<8x32xf32>, vector<32x8xf32>, vector<8x8xf32> -> vector<8x8xf32>
    %c7_182 = arith.constant 7 : index
    %c0_183 = arith.constant 0 : index
    %c0_184 = arith.constant 0 : index
    %231 = vector.load %arg9[%c7_182, %c0_183, %c0_184] : memref<12x32x8xf32, #tpu.memory_space<vmem>>, vector<1x32x8xf32>
    %232 = vector.shape_cast %231 : vector<1x32x8xf32> to vector<32x8xf32>
    %cst_185 = arith.constant dense<0.000000e+00> : vector<8x8xf32>
    %233 = tpu.matmul %155, %232, %cst_185 {dimension_numbers = #tpu.dot_dimension_numbers<[1], [0], [0], [1], [0, 0, 1, 1], [], []>} : vector<8x32xf32>, vector<32x8xf32>, vector<8x8xf32> -> vector<8x8xf32>
    %c11 = arith.constant 11 : index
    %c0_186 = arith.constant 0 : index
    %c0_187 = arith.constant 0 : index
    %234 = vector.load %arg9[%c11, %c0_186, %c0_187] : memref<12x32x8xf32, #tpu.memory_space<vmem>>, vector<1x32x8xf32>
    %235 = vector.shape_cast %234 : vector<1x32x8xf32> to vector<32x8xf32>
    %cst_188 = arith.constant dense<0.000000e+00> : vector<8x8xf32>
    %236 = tpu.matmul %155, %235, %cst_188 {dimension_numbers = #tpu.dot_dimension_numbers<[1], [0], [0], [1], [0, 0, 1, 1], [], []>} : vector<8x32xf32>, vector<32x8xf32>, vector<8x8xf32> -> vector<8x8xf32>
    %237 = tpu.transpose %233, [1, 0] : vector<8x8xf32> -> vector<8x8xf32>
    %cst_189 = arith.constant dense<0.000000e+00> : vector<8x8xf32>
    %238 = tpu.matmul %230, %237, %cst_189 {dimension_numbers = #tpu.dot_dimension_numbers<[1], [0], [0], [1], [0, 0, 1, 1], [], []>} : vector<8x8xf32>, vector<8x8xf32>, vector<8x8xf32> -> vector<8x8xf32>
    %cst_190 = arith.constant 0.176776692 : f32
    %239 = vector.broadcast %cst_190 : f32 to vector<8x8xf32>
    %240 = arith.mulf %238, %239 : vector<8x8xf32>
    %cst_191 = arith.constant dense<0xFF800000> : vector<8xf32>
    %241 = vector.multi_reduction <maximumf>, %240, %cst_191 [1] : vector<8x8xf32> to vector<8xf32>
    %242 = vector.shape_cast %241 : vector<8xf32> to vector<8x1xf32>
    %243 = vector.broadcast %242 : vector<8x1xf32> to vector<8x8xf32>
    %244 = arith.subf %240, %243 : vector<8x8xf32>
    %245 = math.exp %244 : vector<8x8xf32>
    %cst_192 = arith.constant dense<0.000000e+00> : vector<8xf32>
    %246 = vector.multi_reduction <add>, %245, %cst_192 [1] : vector<8x8xf32> to vector<8xf32>
    %247 = vector.shape_cast %246 : vector<8xf32> to vector<8x1xf32>
    %248 = tpu.reciprocal %247 {approx = true} : vector<8x1xf32> -> vector<8x1xf32>
    %249 = vector.broadcast %248 : vector<8x1xf32> to vector<8x8xf32>
    %250 = arith.mulf %245, %249 : vector<8x8xf32>
    %cst_193 = arith.constant dense<0.000000e+00> : vector<8x8xf32>
    %251 = tpu.matmul %250, %236, %cst_193 {dimension_numbers = #tpu.dot_dimension_numbers<[1], [0], [0], [1], [0, 0, 1, 1], [], []>} : vector<8x8xf32>, vector<8x8xf32>, vector<8x8xf32> -> vector<8x8xf32>
    %252 = tpu.concatenate %179, %203, %227, %251 in 1 : vector<8x8xf32>, vector<8x8xf32>, vector<8x8xf32>, vector<8x8xf32> -> vector<8x32xf32>
    %c3_194 = arith.constant 3 : index
    %c0_195 = arith.constant 0 : index
    %253 = vector.load %arg8[%c3_194, %c0_195] : memref<128x32xf32, #tpu.memory_space<vmem>>, vector<1x32xf32>
    %c4_196 = arith.constant 4 : index
    %c0_197 = arith.constant 0 : index
    %254 = vector.load %arg8[%c4_196, %c0_197] : memref<128x32xf32, #tpu.memory_space<vmem>>, vector<1x32xf32>
    %cst_198 = arith.constant dense<0.000000e+00> : vector<8xf32>
    %255 = vector.multi_reduction <add>, %252, %cst_198 [1] : vector<8x32xf32> to vector<8xf32>
    %256 = vector.shape_cast %255 : vector<8xf32> to vector<8x1xf32>
    %cst_199 = arith.constant 3.200000e+01 : f32
    %257 = vector.broadcast %cst_199 : f32 to vector<8x1xf32>
    %258 = arith.divf %256, %257 : vector<8x1xf32>
    %259 = vector.broadcast %258 : vector<8x1xf32> to vector<8x32xf32>
    %260 = arith.subf %252, %259 : vector<8x32xf32>
    %261 = arith.mulf %260, %260 : vector<8x32xf32>
    %cst_200 = arith.constant dense<0.000000e+00> : vector<8xf32>
    %262 = vector.multi_reduction <add>, %261, %cst_200 [1] : vector<8x32xf32> to vector<8xf32>
    %263 = vector.shape_cast %262 : vector<8xf32> to vector<8x1xf32>
    %cst_201 = arith.constant 3.200000e+01 : f32
    %264 = vector.broadcast %cst_201 : f32 to vector<8x1xf32>
    %265 = arith.divf %263, %264 : vector<8x1xf32>
    %266 = vector.broadcast %258 : vector<8x1xf32> to vector<8x32xf32>
    %267 = arith.subf %252, %266 : vector<8x32xf32>
    %cst_202 = arith.constant 9.99999974E-6 : f32
    %268 = vector.broadcast %cst_202 : f32 to vector<8x1xf32>
    %269 = arith.addf %265, %268 : vector<8x1xf32>
    %270 = math.rsqrt %269 : vector<8x1xf32>
    %271 = vector.broadcast %270 : vector<8x1xf32> to vector<8x32xf32>
    %272 = arith.mulf %267, %271 : vector<8x32xf32>
    %273 = vector.broadcast %253 : vector<1x32xf32> to vector<8x32xf32>
    %274 = arith.mulf %272, %273 : vector<8x32xf32>
    %275 = vector.broadcast %254 : vector<1x32xf32> to vector<8x32xf32>
    %276 = arith.addf %274, %275 : vector<8x32xf32>
    %277 = arith.addf %153, %276 : vector<8x32xf32>
    %c5_203 = arith.constant 5 : index
    %c0_204 = arith.constant 0 : index
    %278 = vector.load %arg8[%c5_203, %c0_204] : memref<128x32xf32, #tpu.memory_space<vmem>>, vector<1x32xf32>
    %c6_205 = arith.constant 6 : index
    %c0_206 = arith.constant 0 : index
    %279 = vector.load %arg8[%c6_205, %c0_206] : memref<128x32xf32, #tpu.memory_space<vmem>>, vector<1x32xf32>
    %cst_207 = arith.constant dense<0.000000e+00> : vector<8xf32>
    %280 = vector.multi_reduction <add>, %277, %cst_207 [1] : vector<8x32xf32> to vector<8xf32>
    %281 = vector.shape_cast %280 : vector<8xf32> to vector<8x1xf32>
    %cst_208 = arith.constant 3.200000e+01 : f32
    %282 = vector.broadcast %cst_208 : f32 to vector<8x1xf32>
    %283 = arith.divf %281, %282 : vector<8x1xf32>
    %284 = vector.broadcast %283 : vector<8x1xf32> to vector<8x32xf32>
    %285 = arith.subf %277, %284 : vector<8x32xf32>
    %286 = arith.mulf %285, %285 : vector<8x32xf32>
    %cst_209 = arith.constant dense<0.000000e+00> : vector<8xf32>
    %287 = vector.multi_reduction <add>, %286, %cst_209 [1] : vector<8x32xf32> to vector<8xf32>
    %288 = vector.shape_cast %287 : vector<8xf32> to vector<8x1xf32>
    %cst_210 = arith.constant 3.200000e+01 : f32
    %289 = vector.broadcast %cst_210 : f32 to vector<8x1xf32>
    %290 = arith.divf %288, %289 : vector<8x1xf32>
    %291 = vector.broadcast %283 : vector<8x1xf32> to vector<8x32xf32>
    %292 = arith.subf %277, %291 : vector<8x32xf32>
    %cst_211 = arith.constant 9.99999974E-6 : f32
    %293 = vector.broadcast %cst_211 : f32 to vector<8x1xf32>
    %294 = arith.addf %290, %293 : vector<8x1xf32>
    %295 = math.rsqrt %294 : vector<8x1xf32>
    %296 = vector.broadcast %295 : vector<8x1xf32> to vector<8x32xf32>
    %297 = arith.mulf %292, %296 : vector<8x32xf32>
    %298 = vector.broadcast %278 : vector<1x32xf32> to vector<8x32xf32>
    %299 = arith.mulf %297, %298 : vector<8x32xf32>
    %300 = vector.broadcast %279 : vector<1x32xf32> to vector<8x32xf32>
    %301 = arith.addf %299, %300 : vector<8x32xf32>
    %c0_212 = arith.constant 0 : index
    %c0_213 = arith.constant 0 : index
    %302 = vector.load %arg10[%c0_212, %c0_213] : memref<40x64xf32, #tpu.memory_space<vmem>>, vector<32x64xf32>
    %c32 = arith.constant 32 : index
    %c0_214 = arith.constant 0 : index
    %303 = vector.load %arg10[%c32, %c0_214] : memref<40x64xf32, #tpu.memory_space<vmem>>, vector<1x64xf32>
    %cst_215 = arith.constant dense<0.000000e+00> : vector<8x64xf32>
    %304 = tpu.matmul %301, %302, %cst_215 {dimension_numbers = #tpu.dot_dimension_numbers<[1], [0], [0], [1], [0, 0, 1, 1], [], []>} : vector<8x32xf32>, vector<32x64xf32>, vector<8x64xf32> -> vector<8x64xf32>
    %305 = vector.broadcast %303 : vector<1x64xf32> to vector<8x64xf32>
    %306 = arith.addf %304, %305 : vector<8x64xf32>
    %cst_216 = arith.constant 0.000000e+00 : f32
    %307 = vector.broadcast %cst_216 : f32 to vector<8x64xf32>
    %308 = arith.maximumf %306, %307 : vector<8x64xf32>
    %c64 = arith.constant 64 : index
    %c0_217 = arith.constant 0 : index
    %309 = vector.load %arg8[%c64, %c0_217] : memref<128x32xf32, #tpu.memory_space<vmem>>, vector<64x32xf32>
    %cst_218 = arith.constant dense<0.000000e+00> : vector<8x32xf32>
    %310 = tpu.matmul %308, %309, %cst_218 {dimension_numbers = #tpu.dot_dimension_numbers<[1], [0], [0], [1], [0, 0, 1, 1], [], []>} : vector<8x64xf32>, vector<64x32xf32>, vector<8x32xf32> -> vector<8x32xf32>
    %c9_219 = arith.constant 9 : index
    %c0_220 = arith.constant 0 : index
    %311 = vector.load %arg8[%c9_219, %c0_220] : memref<128x32xf32, #tpu.memory_space<vmem>>, vector<1x32xf32>
    %312 = vector.broadcast %311 : vector<1x32xf32> to vector<8x32xf32>
    %313 = arith.addf %310, %312 : vector<8x32xf32>
    %314 = arith.addf %301, %313 : vector<8x32xf32>
    %c7_221 = arith.constant 7 : index
    %c0_222 = arith.constant 0 : index
    %315 = vector.load %arg8[%c7_221, %c0_222] : memref<128x32xf32, #tpu.memory_space<vmem>>, vector<1x32xf32>
    %c8_223 = arith.constant 8 : index
    %c0_224 = arith.constant 0 : index
    %316 = vector.load %arg8[%c8_223, %c0_224] : memref<128x32xf32, #tpu.memory_space<vmem>>, vector<1x32xf32>
    %cst_225 = arith.constant dense<0.000000e+00> : vector<8xf32>
    %317 = vector.multi_reduction <add>, %314, %cst_225 [1] : vector<8x32xf32> to vector<8xf32>
    %318 = vector.shape_cast %317 : vector<8xf32> to vector<8x1xf32>
    %cst_226 = arith.constant 3.200000e+01 : f32
    %319 = vector.broadcast %cst_226 : f32 to vector<8x1xf32>
    %320 = arith.divf %318, %319 : vector<8x1xf32>
    %321 = vector.broadcast %320 : vector<8x1xf32> to vector<8x32xf32>
    %322 = arith.subf %314, %321 : vector<8x32xf32>
    %323 = arith.mulf %322, %322 : vector<8x32xf32>
    %cst_227 = arith.constant dense<0.000000e+00> : vector<8xf32>
    %324 = vector.multi_reduction <add>, %323, %cst_227 [1] : vector<8x32xf32> to vector<8xf32>
    %325 = vector.shape_cast %324 : vector<8xf32> to vector<8x1xf32>
    %cst_228 = arith.constant 3.200000e+01 : f32
    %326 = vector.broadcast %cst_228 : f32 to vector<8x1xf32>
    %327 = arith.divf %325, %326 : vector<8x1xf32>
    %328 = vector.broadcast %320 : vector<8x1xf32> to vector<8x32xf32>
    %329 = arith.subf %314, %328 : vector<8x32xf32>
    %cst_229 = arith.constant 9.99999974E-6 : f32
    %330 = vector.broadcast %cst_229 : f32 to vector<8x1xf32>
    %331 = arith.addf %327, %330 : vector<8x1xf32>
    %332 = math.rsqrt %331 : vector<8x1xf32>
    %333 = vector.broadcast %332 : vector<8x1xf32> to vector<8x32xf32>
    %334 = arith.mulf %329, %333 : vector<8x32xf32>
    %335 = vector.broadcast %315 : vector<1x32xf32> to vector<8x32xf32>
    %336 = arith.mulf %334, %335 : vector<8x32xf32>
    %337 = vector.broadcast %316 : vector<1x32xf32> to vector<8x32xf32>
    %338 = arith.addf %336, %337 : vector<8x32xf32>
    %cst_230 = arith.constant dense<0.000000e+00> : vector<32xf32>
    %339 = vector.multi_reduction <add>, %338, %cst_230 [0] : vector<8x32xf32> to vector<32xf32>
    %340 = vector.shape_cast %339 : vector<32xf32> to vector<1x32xf32>
    %cst_231 = arith.constant 8.000000e+00 : f32
    %341 = vector.broadcast %cst_231 : f32 to vector<1x32xf32>
    %342 = arith.divf %340, %341 : vector<1x32xf32>
    %c24 = arith.constant 24 : index
    %c0_232 = arith.constant 0 : index
    %343 = vector.load %arg8[%c24, %c0_232] : memref<128x32xf32, #tpu.memory_space<vmem>>, vector<32x32xf32>
    %cst_233 = arith.constant dense<0.000000e+00> : vector<1x32xf32>
    %344 = tpu.matmul %342, %343, %cst_233 {dimension_numbers = #tpu.dot_dimension_numbers<[1], [0], [0], [1], [0, 0, 1, 1], [], []>} : vector<1x32xf32>, vector<32x32xf32>, vector<1x32xf32> -> vector<1x32xf32>
    %c10_234 = arith.constant 10 : index
    %c0_235 = arith.constant 0 : index
    %345 = vector.load %arg8[%c10_234, %c0_235] : memref<128x32xf32, #tpu.memory_space<vmem>>, vector<1x32xf32>
    %346 = arith.addf %344, %345 : vector<1x32xf32>
    %347 = vector.extract_strided_slice %346 {offsets = [0, 0], sizes = [1, 5], strides = [1, 1]} : vector<1x32xf32> to vector<1x5xf32>
    %c0_236 = arith.constant 0 : index
    %c0_237 = arith.constant 0 : index
    %c0_238 = arith.constant 0 : index
    %348 = vector.load %arg11[%c0_236, %c0_237, %c0_238] : memref<1x1x5xf32, #tpu.memory_space<vmem>>, vector<1x1x5xf32>
    %349 = vector.shape_cast %348 : vector<1x1x5xf32> to vector<1x5xf32>
    %350 = vector.shape_cast %347 : vector<1x5xf32> to vector<1x1x5xf32>
    tpu.vector_store %arg11[%c0_236, %c0_237, %c0_238], %350 {strides = array<i32>} : memref<1x1x5xf32, #tpu.memory_space<vmem>>, vector<1x1x5xf32>,
    return
  }
  func.func @transform_0(%arg0: i32) -> (i32, i32, i32) {
    %c0_i32 = arith.constant 0 : i32
    %c0_i32_0 = arith.constant 0 : i32
    %c0_i32_1 = arith.constant 0 : i32
    return %arg0, %c0_i32, %c0_i32_0 : i32, i32, i32
  }
  func.func @transform_1(%arg0: i32) -> (i32, i32, i32) {
    %c0_i32 = arith.constant 0 : i32
    %c0_i32_0 = arith.constant 0 : i32
    %c0_i32_1 = arith.constant 0 : i32
    %c0_i32_2 = arith.constant 0 : i32
    return %c0_i32, %c0_i32_0, %c0_i32_1 : i32, i32, i32
  }
  func.func @transform_2(%arg0: i32) -> (i32, i32, i32) {
    %c0_i32 = arith.constant 0 : i32
    %c0_i32_0 = arith.constant 0 : i32
    %c0_i32_1 = arith.constant 0 : i32
    %c0_i32_2 = arith.constant 0 : i32
    return %c0_i32, %c0_i32_0, %c0_i32_1 : i32, i32, i32
  }
  func.func @transform_3(%arg0: i32) -> (i32, i32, i32) {
    %c0_i32 = arith.constant 0 : i32
    %c0_i32_0 = arith.constant 0 : i32
    %c0_i32_1 = arith.constant 0 : i32
    %c0_i32_2 = arith.constant 0 : i32
    return %c0_i32, %c0_i32_0, %c0_i32_1 : i32, i32, i32
  }
  func.func @transform_4(%arg0: i32) -> (i32, i32, i32) {
    %c0_i32 = arith.constant 0 : i32
    %c0_i32_0 = arith.constant 0 : i32
    %c0_i32_1 = arith.constant 0 : i32
    %c0_i32_2 = arith.constant 0 : i32
    return %c0_i32, %c0_i32_0, %c0_i32_1 : i32, i32, i32
  }
  func.func @transform_5(%arg0: i32) -> (i32, i32, i32) {
    %c0_i32 = arith.constant 0 : i32
    %c0_i32_0 = arith.constant 0 : i32
    %c0_i32_1 = arith.constant 0 : i32
    %c0_i32_2 = arith.constant 0 : i32
    return %c0_i32, %c0_i32_0, %c0_i32_1 : i32, i32, i32
  }
  func.func @transform_6(%arg0: i32) -> (i32, i32, i32) {
    %c0_i32 = arith.constant 0 : i32
    %c0_i32_0 = arith.constant 0 : i32
    %c0_i32_1 = arith.constant 0 : i32
    %c0_i32_2 = arith.constant 0 : i32
    return %c0_i32, %c0_i32_0, %c0_i32_1 : i32, i32, i32
  }
  func.func @transform_7(%arg0: i32) -> (i32, i32) {
    %c0_i32 = arith.constant 0 : i32
    %c0_i32_0 = arith.constant 0 : i32
    %c0_i32_1 = arith.constant 0 : i32
    return %c0_i32, %c0_i32_0 : i32, i32
  }
  func.func @transform_8(%arg0: i32) -> (i32, i32, i32) {
    %c0_i32 = arith.constant 0 : i32
    %c0_i32_0 = arith.constant 0 : i32
    %c0_i32_1 = arith.constant 0 : i32
    %c0_i32_2 = arith.constant 0 : i32
    return %c0_i32, %c0_i32_0, %c0_i32_1 : i32, i32, i32
  }
  func.func @transform_9(%arg0: i32) -> (i32, i32) {
    %c0_i32 = arith.constant 0 : i32
    %c0_i32_0 = arith.constant 0 : i32
    %c0_i32_1 = arith.constant 0 : i32
    return %c0_i32, %c0_i32_0 : i32, i32
  }
  func.func @transform_10(%arg0: i32) -> (i32, i32, i32) {
    %c0_i32 = arith.constant 0 : i32
    %c0_i32_0 = arith.constant 0 : i32
    %c0_i32_1 = arith.constant 0 : i32
    return %arg0, %c0_i32, %c0_i32_0 : i32, i32, i32
  }
}

</mosaic_0001>

<llo_original>
// kernel: convtran_forward.1
$region0: #{convtran_forward.1}
  #allocation0 [shape = 'u32[]', space=smem, size = 0x4, offset = 0x4, fixed_abs, tag = 'smem constant byte address 0x4 - core index']
  #allocation1 [shape = 'u32[144,128]{1,0:T(1,128)}', space=vmem, size = 0x12000, scoped, tag = 'internal scratch']
  %s0 = inlined_call_operand.vmem [shape: f32[2,64,1], index: 0, kind: input, shape index: {}]
  %s1 = inlined_call_operand.vmem [shape: f32[8,32,64], index: 1, kind: input, shape index: {}]
  %s2 = inlined_call_operand.vmem [shape: f32[5,16,32], index: 2, kind: input, shape index: {}]
  %s3 = inlined_call_operand.hbm [shape: f32[3,8,16], index: 3, kind: input, shape index: {}]
  %s4 = inlined_call_operand.vmem [shape: f32[8,1,32], index: 4, kind: input, shape index: {}]
  %s5 = inlined_call_operand.vmem [shape: f32[5,32,32], index: 5, kind: input, shape index: {}]
  %s6 = inlined_call_operand.vmem [shape: f32[3,32,32], index: 6, kind: input, shape index: {}]
  %s7 = inlined_call_operand.vmem [shape: f32[128,32], index: 7, kind: input, shape index: {}]
  %s8 = inlined_call_operand.vmem [shape: f32[12,32,8], index: 8, kind: input, shape index: {}]
  %s9 = inlined_call_operand.vmem [shape: f32[40,64], index: 9, kind: input, shape index: {}]
  %s10 = inlined_call_operand.hbm [shape: f32[2,1,5], index: 10, kind: output, shape index: {}]
  %s11 = sld [smem:[#allocation0]]
  $region77: #{convtran_forward.1} parent=0
    _
  %s13 = ssub.s32 1, %s11
  %s14 = scalar_select 0, %s13, %s11
  $region1: #{convtran_forward.1} parent=0
    #allocation2 [shape = 'u8[12288]{0}', space=vmem, size = 0x3000, scoped, tag = 'input window, operand 3, single buffered']
    #allocation3 [shape = 's32[2]{0}', space=sflag, size = 0x8, scoped, tag = 'scoped memory for convtran_forward.1']
    #allocation4 [shape = 's32[2]{0}', space=sflag, size = 0x8, scoped, tag = 'scoped memory for convtran_forward.1']
    #allocation5 [shape = 'u8[1024]{0}', space=vmem, size = 0x400, scoped, tag = 'output window, operand 0']
    %15 = vsyncpa [#allocation3], 0
    %16 = vsyncpa [#allocation4], 0
    %s17 = scalar_lea.sflag [#allocation4], 1
    %18 = vsyncpa %s17, 0
    loop: start=0, step=1, limit=4
    $region2: #{convtran_forward.1} parent=1 // loop_pre_header
      _
    $region3: #{convtran_forward.1} parent=1 // loop_header
      %s20 = sphi 0, %s24
      %p21 = scmp.ge.s32.totalorder %s20, 4
      %s30 = sphi 0, %s32
      %s33 = sphi 0, %s30
      %s34 = sphi 0, %s33
      %s50 = sphi 0, %s34
      %s54 = sphi 0, %s54
      %s56 = sphi 0, %s54
      %s57 = sphi 0, %s56
      %s71 = sphi 0, %s57
      %s75 = sphi 0, %s75
      %s77 = sphi 0, %s75
      %s78 = sphi 0, %s77
      %s92 = sphi 0, %s78
      %s96 = sphi 0, %s96
      %s98 = sphi 0, %s96
      %s99 = sphi 0, %s98
      %s113 = sphi 0, %s99
      %s117 = sphi 0, %s117
      %s119 = sphi 0, %s117
      %s120 = sphi 0, %s119
      %s134 = sphi 0, %s120
      %s138 = sphi 0, %s138
      %s140 = sphi 0, %s138
      %s141 = sphi 0, %s140
      %s155 = sphi 0, %s141
      %s159 = sphi 0, %s159
      %s161 = sphi 0, %s159
      %s162 = sphi 0, %s161
      %s176 = sphi 0, %s162
      %s180 = sphi 0, %s180
      %s182 = sphi 0, %s180
      %s183 = sphi 0, %s182
      %s197 = sphi 0, %s183
      %s201 = sphi 0, %s201
      %s203 = sphi 0, %s201
      %s204 = sphi 0, %s203
      %s218 = sphi 0, %s204
      %s222 = sphi 0, %s222
      %s224 = sphi 0, %s222
      %s225 = sphi 0, %s224
      %s239 = sphi 0, %s225
      %s245 = sphi 0, %s247
      %s248 = sphi 0, %s245
      %s249 = sphi 0, %s248
      %s265 = sphi 0, %s249
    $region4: #{convtran_forward.1} parent=1 // loop_header_branch
      %23 = sbr.rel (%p21) target = $region8
    $region5: #{convtran_forward.1} parent=1 // loop_body
      %s25 = ssub.s32 %s20, 1
      %s26 = ssub.s32 %s20, 2
      %s27 = sadd.s32 %s20, 1
      %s28 = ssub.s32 %s20, %s27
      %p29 = scmp.eq.s32.totalorder %s28, 0
      %s31 = sadd.s32 %s30, 1
      %s32 = scalar_select %p29, %s30, %s31
      %p35 = pneg %p29
      %p36 = scmp.eq.s32.totalorder %s20, 1
      %p37 = por %p35, %p36
      %p38 = scmp.ne.s32.totalorder %s30, %s33
      %p39 = scmp.eq.s32.totalorder %s20, 0
      %p40 = por %p38, %p39
      %p41 = scmp.ne.s32.totalorder %s30, %s33
      %p42 = scmp.eq.s32.totalorder %s25, 1
      %p43 = por %p41, %p42
      %p44 = scmp.ne.s32.totalorder %s33, %s34
      %p45 = scmp.eq.s32.totalorder %s25, 0
      %p46 = por %p44, %p45
      %p47 = scmp.ne.s32.totalorder %s33, %s34
      %p48 = scmp.eq.s32.totalorder %s26, 1
      %p49 = por %p47, %p48
      %p51 = scmp.ne.s32.totalorder %s34, %s50
      %p52 = scmp.eq.s32.totalorder %s26, 0
      %p53 = por %p51, %p52
      %s55 = sadd.s32 %s54, 1
      %p58 = scmp.eq.s32.totalorder %s20, 1
      %p59 = scmp.ne.s32.totalorder %s54, %s56
      %p60 = scmp.eq.s32.totalorder %s20, 0
      %p61 = por %p59, %p60
      %p62 = scmp.ne.s32.totalorder %s54, %s56
      %p63 = scmp.eq.s32.totalorder %s25, 1
      %p64 = por %p62, %p63
      %p65 = scmp.ne.s32.totalorder %s56, %s57
      %p66 = scmp.eq.s32.totalorder %s25, 0
      %p67 = por %p65, %p66
      %p68 = scmp.ne.s32.totalorder %s56, %s57
      %p69 = scmp.eq.s32.totalorder %s26, 1
      %p70 = por %p68, %p69
      %p72 = scmp.ne.s32.totalorder %s57, %s71
      %p73 = scmp.eq.s32.totalorder %s26, 0
      %p74 = por %p72, %p73
      %s76 = sadd.s32 %s75, 1
      %p79 = scmp.eq.s32.totalorder %s20, 1
      %p80 = scmp.ne.s32.totalorder %s75, %s77
      %p81 = scmp.eq.s32.totalorder %s20, 0
      %p82 = por %p80, %p81
      %p83 = scmp.ne.s32.totalorder %s75, %s77
      %p84 = scmp.eq.s32.totalorder %s25, 1
      %p85 = por %p83, %p84
      %p86 = scmp.ne.s32.totalorder %s77, %s78
      %p87 = scmp.eq.s32.totalorder %s25, 0
      %p88 = por %p86, %p87
      %p89 = scmp.ne.s32.totalorder %s77, %s78
      %p90 = scmp.eq.s32.totalorder %s26, 1
      %p91 = por %p89, %p90
      %p93 = scmp.ne.s32.totalorder %s78, %s92
      %p94 = scmp.eq.s32.totalorder %s26, 0
      %p95 = por %p93, %p94
      %s97 = sadd.s32 %s96, 1
      %p100 = scmp.eq.s32.totalorder %s20, 1
      %p101 = scmp.ne.s32.totalorder %s96, %s98
      %p102 = scmp.eq.s32.totalorder %s20, 0
      %p103 = por %p101, %p102
      %p104 = scmp.ne.s32.totalorder %s96, %s98
      %p105 = scmp.eq.s32.totalorder %s25, 1
      %p106 = por %p104, %p105
      %p107 = scmp.ne.s32.totalorder %s98, %s99
      %p108 = scmp.eq.s32.totalorder %s25, 0
      %p109 = por %p107, %p108
      %p110 = scmp.ne.s32.totalorder %s98, %s99
      %p111 = scmp.eq.s32.totalorder %s26, 1
      %p112 = por %p110, %p111
      %p114 = scmp.ne.s32.totalorder %s99, %s113
      %p115 = scmp.eq.s32.totalorder %s26, 0
      %p116 = por %p114, %p115
      %s118 = sadd.s32 %s117, 1
      %p121 = scmp.eq.s32.totalorder %s20, 1
      %p122 = scmp.ne.s32.totalorder %s117, %s119
      %p123 = scmp.eq.s32.totalorder %s20, 0
      %p124 = por %p122, %p123
      %p125 = scmp.ne.s32.totalorder %s117, %s119
      %p126 = scmp.eq.s32.totalorder %s25, 1
      %p127 = por %p125, %p126
      %p128 = scmp.ne.s32.totalorder %s119, %s120
      %p129 = scmp.eq.s32.totalorder %s25, 0
      %p130 = por %p128, %p129
      %p131 = scmp.ne.s32.totalorder %s119, %s120
      %p132 = scmp.eq.s32.totalorder %s26, 1
      %p133 = por %p131, %p132
      %p135 = scmp.ne.s32.totalorder %s120, %s134
      %p136 = scmp.eq.s32.totalorder %s26, 0
      %p137 = por %p135, %p136
      %s139 = sadd.s32 %s138, 1
      %p142 = scmp.eq.s32.totalorder %s20, 1
      %p143 = scmp.ne.s32.totalorder %s138, %s140
      %p144 = scmp.eq.s32.totalorder %s20, 0
      %p145 = por %p143, %p144
      %p146 = scmp.ne.s32.totalorder %s138, %s140
      %p147 = scmp.eq.s32.totalorder %s25, 1
      %p148 = por %p146, %p147
      %p149 = scmp.ne.s32.totalorder %s140, %s141
      %p150 = scmp.eq.s32.totalorder %s25, 0
      %p151 = por %p149, %p150
      %p152 = scmp.ne.s32.totalorder %s140, %s141
      %p153 = scmp.eq.s32.totalorder %s26, 1
      %p154 = por %p152, %p153
      %p156 = scmp.ne.s32.totalorder %s141, %s155
      %p157 = scmp.eq.s32.totalorder %s26, 0
      %p158 = por %p156, %p157
      %s160 = sadd.s32 %s159, 1
      %p163 = scmp.eq.s32.totalorder %s20, 1
      %p164 = scmp.ne.s32.totalorder %s159, %s161
      %p165 = scmp.eq.s32.totalorder %s20, 0
      %p166 = por %p164, %p165
      %p167 = scmp.ne.s32.totalorder %s159, %s161
      %p168 = scmp.eq.s32.totalorder %s25, 1
      %p169 = por %p167, %p168
      %p170 = scmp.ne.s32.totalorder %s161, %s162
      %p171 = scmp.eq.s32.totalorder %s25, 0
      %p172 = por %p170, %p171
      %p173 = scmp.ne.s32.totalorder %s161, %s162
      %p174 = scmp.eq.s32.totalorder %s26, 1
      %p175 = por %p173, %p174
      %p177 = scmp.ne.s32.totalorder %s162, %s176
      %p178 = scmp.eq.s32.totalorder %s26, 0
      %p179 = por %p177, %p178
      %s181 = sadd.s32 %s180, 1
      %p184 = scmp.eq.s32.totalorder %s20, 1
      %p185 = scmp.ne.s32.totalorder %s180, %s182
      %p186 = scmp.eq.s32.totalorder %s20, 0
      %p187 = por %p185, %p186
      %p188 = scmp.ne.s32.totalorder %s180, %s182
      %p189 = scmp.eq.s32.totalorder %s25, 1
      %p190 = por %p188, %p189
      %p191 = scmp.ne.s32.totalorder %s182, %s183
      %p192 = scmp.eq.s32.totalorder %s25, 0
      %p193 = por %p191, %p192
      %p194 = scmp.ne.s32.totalorder %s182, %s183
      %p195 = scmp.eq.s32.totalorder %s26, 1
      %p196 = por %p194, %p195
      %p198 = scmp.ne.s32.totalorder %s183, %s197
      %p199 = scmp.eq.s32.totalorder %s26, 0
      %p200 = por %p198, %p199
      %s202 = sadd.s32 %s201, 1
      %p205 = scmp.eq.s32.totalorder %s20, 1
      %p206 = scmp.ne.s32.totalorder %s201, %s203
      %p207 = scmp.eq.s32.totalorder %s20, 0
      %p208 = por %p206, %p207
      %p209 = scmp.ne.s32.totalorder %s201, %s203
      %p210 = scmp.eq.s32.totalorder %s25, 1
      %p211 = por %p209, %p210
      %p212 = scmp.ne.s32.totalorder %s203, %s204
      %p213 = scmp.eq.s32.totalorder %s25, 0
      %p214 = por %p212, %p213
      %p215 = scmp.ne.s32.totalorder %s203, %s204
      %p216 = scmp.eq.s32.totalorder %s26, 1
      %p217 = por %p215, %p216
      %p219 = scmp.ne.s32.totalorder %s204, %s218
      %p220 = scmp.eq.s32.totalorder %s26, 0
      %p221 = por %p219, %p220
      %s223 = sadd.s32 %s222, 1
      %p226 = scmp.eq.s32.totalorder %s20, 1
      %p227 = scmp.ne.s32.totalorder %s222, %s224
      %p228 = scmp.eq.s32.totalorder %s20, 0
      %p229 = por %p227, %p228
      %p230 = scmp.ne.s32.totalorder %s222, %s224
      %p231 = scmp.eq.s32.totalorder %s25, 1
      %p232 = por %p230, %p231
      %p233 = scmp.ne.s32.totalorder %s224, %s225
      %p234 = scmp.eq.s32.totalorder %s25, 0
      %p235 = por %p233, %p234
      %p236 = scmp.ne.s32.totalorder %s224, %s225
      %p237 = scmp.eq.s32.totalorder %s26, 1
      %p238 = por %p236, %p237
      %p240 = scmp.ne.s32.totalorder %s225, %s239
      %p241 = scmp.eq.s32.totalorder %s26, 0
      %p242 = por %p240, %p241
      %s243 = ssub.s32 %s20, %s27
      %p244 = scmp.eq.s32.totalorder %s243, 0
      %s246 = sadd.s32 %s245, 1
      %s247 = scalar_select %p244, %s245, %s246
      %p250 = pneg %p244
      %p251 = scmp.eq.s32.totalorder %s20, 1
      %p252 = por %p250, %p251
      %p253 = scmp.ne.s32.totalorder %s245, %s248
      %p254 = scmp.eq.s32.totalorder %s20, 0
      %p255 = por %p253, %p254
      %p256 = scmp.ne.s32.totalorder %s245, %s248
      %p257 = scmp.eq.s32.totalorder %s25, 1
      %p258 = por %p256, %p257
      %p259 = scmp.ne.s32.totalorder %s248, %s249
      %p260 = scmp.eq.s32.totalorder %s25, 0
      %p261 = por %p259, %p260
      %p262 = scmp.ne.s32.totalorder %s248, %s249
      %p263 = scmp.eq.s32.totalorder %s26, 1
      %p264 = por %p262, %p263
      %p266 = scmp.ne.s32.totalorder %s249, %s265
      %p267 = scmp.eq.s32.totalorder %s26, 0
      %p268 = por %p266, %p267
      %p269 = scmp.le.s32.totalorder 1, %s20
      %p270 = scmp.lt.s32.totalorder %s20, 3
      %p271 = pnand %p269, %p270
      %p272 = pneg %p271
      // Predicated region
      $region9: #{convtran_forward.1} parent=5 // pred_check
        _
      $region10: #{convtran_forward.1} parent=5 // pred_check_branch
        %274 = sbr.rel (%p271) target = $region12
      $region11: #{convtran_forward.1} parent=5 // pred_region
        %s275 = ssub.s32 %s20, 1
        // Predicated region
        $region13: #{convtran_forward.1} parent=11 // pred_check
          %p276 = pneg %p67
        $region14: #{convtran_forward.1} parent=11 // pred_check_branch
          %278 = sbr.rel (%p276) target = $region16
        $region15: #{convtran_forward.1} parent=11 // pred_region
          _
        $region16: #{convtran_forward.1} parent=11 // pred_fallthru
          _
        // Predicated region
        $region17: #{convtran_forward.1} parent=11 // pred_check
          %p279 = pneg %p88
        $region18: #{convtran_forward.1} parent=11 // pred_check_branch
          %281 = sbr.rel (%p279) target = $region20
        $region19: #{convtran_forward.1} parent=11 // pred_region
          _
        $region20: #{convtran_forward.1} parent=11 // pred_fallthru
          _
        // Predicated region
        $region21: #{convtran_forward.1} parent=11 // pred_check
          %p282 = pneg %p109
        $region22: #{convtran_forward.1} parent=11 // pred_check_branch
          %284 = sbr.rel (%p282) target = $region24
        $region23: #{convtran_forward.1} parent=11 // pred_region
          %s286 = ssub.s32 384, 384
          %287 = vsyncadd [#allocation3], %s286
          %s288 = sshll.u32 [#allocation2], 4
          %s289 = int_to_ptr.vmem [resolvable:$true] %s288
          %294 = dma.hbm_to_vmem [thread:$0]  %s3, 384, %s289, [#allocation3], 128, 128, 8
        $region24: #{convtran_forward.1} parent=11 // pred_fallthru
          _
        // Predicated region
        $region25: #{convtran_forward.1} parent=11 // pred_check
          %p295 = pneg %p130
        $region26: #{convtran_forward.1} parent=11 // pred_check_branch
          %297 = sbr.rel (%p295) target = $region28
        $region27: #{convtran_forward.1} parent=11 // pred_region
          _
        $region28: #{convtran_forward.1} parent=11 // pred_fallthru
          _
        // Predicated region
        $region29: #{convtran_forward.1} parent=11 // pred_check
          %p298 = pneg %p151
        $region30: #{convtran_forward.1} parent=11 // pred_check_branch
          %300 = sbr.rel (%p298) target = $region32
        $region31: #{convtran_forward.1} parent=11 // pred_region
          _
        $region32: #{convtran_forward.1} parent=11 // pred_fallthru
          _
        // Predicated region
        $region33: #{convtran_forward.1} parent=11 // pred_check
          %p301 = pneg %p172
        $region34: #{convtran_forward.1} parent=11 // pred_check_branch
          %303 = sbr.rel (%p301) target = $region36
        $region35: #{convtran_forward.1} parent=11 // pred_region
          _
        $region36: #{convtran_forward.1} parent=11 // pred_fallthru
          _
        // Predicated region
        $region37: #{convtran_forward.1} parent=11 // pred_check
          %p304 = pneg %p193
        $region38: #{convtran_forward.1} parent=11 // pred_check_branch
          %306 = sbr.rel (%p304) target = $region40
        $region39: #{convtran_forward.1} parent=11 // pred_region
          _
        $region40: #{convtran_forward.1} parent=11 // pred_fallthru
          _
        // Predicated region
        $region41: #{convtran_forward.1} parent=11 // pred_check
          %p307 = pneg %p214
        $region42: #{convtran_forward.1} parent=11 // pred_check_branch
          %309 = sbr.rel (%p307) target = $region44
        $region43: #{convtran_forward.1} parent=11 // pred_region
          _
        $region44: #{convtran_forward.1} parent=11 // pred_fallthru
          _
        // Predicated region
        $region45: #{convtran_forward.1} parent=11 // pred_check
          %p310 = pneg %p235
        $region46: #{convtran_forward.1} parent=11 // pred_check_branch
          %312 = sbr.rel (%p310) target = $region48
        $region47: #{convtran_forward.1} parent=11 // pred_region
          _
        $region48: #{convtran_forward.1} parent=11 // pred_fallthru
          _
      $region12: #{convtran_forward.1} parent=5 // pred_fallthru
        _
      %p313 = scmp.lt.s32.totalorder %s20, 2
      // Predicated region
      $region49: #{convtran_forward.1} parent=5 // pred_check
        %p314 = pneg %p313
      $region50: #{convtran_forward.1} parent=5 // pred_check_branch
        %316 = sbr.rel (%p314) target = $region52
      $region51: #{convtran_forward.1} parent=5 // pred_region
        // Predicated region
        $region53: #{convtran_forward.1} parent=51 // pred_check
          %p317 = pneg %p40
        $region54: #{convtran_forward.1} parent=51 // pred_check_branch
          %319 = sbr.rel (%p317) target = $region56
        $region55: #{convtran_forward.1} parent=51 // pred_region
          %p320 = scmp.lt.s32.totalorder %s20, 1
          %s321 = scalar_select %p320, %s20, 1
          %s322 = smul.addr %s321, 8
          %s323 = smul.addr %s322, 8
          %s324 = scalar_lea.vmem %s0, %s323
        $region56: #{convtran_forward.1} parent=51 // pred_fallthru
          _
      $region52: #{convtran_forward.1} parent=5 // pred_fallthru
        _
      %p325 = scmp.le.s32.totalorder 1, %s20
      %p326 = scmp.lt.s32.totalorder %s20, 3
      %p327 = pnand %p325, %p326
      %p328 = pneg %p327
      // Predicated region
      $region57: #{convtran_forward.1} parent=5 // pred_check
        _
      $region58: #{convtran_forward.1} parent=5 // pred_check_branch
        %330 = sbr.rel (%p327) target = $region60
      $region59: #{convtran_forward.1} parent=5 // pred_region
        %s331 = ssub.s32 %s20, 1
        // Predicated region
        $region61: #{convtran_forward.1} parent=59 // pred_check
          %p332 = pneg %p109
        $region62: #{convtran_forward.1} parent=59 // pred_check_branch
          %334 = sbr.rel (%p332) target = $region64
        $region63: #{convtran_forward.1} parent=59 // pred_region
          %335 = dma.done [#allocation3], 384
        $region64: #{convtran_forward.1} parent=59 // pred_fallthru
          _
        %p336 = scmp.lt.s32.totalorder %s25, 1
        %s337 = scalar_select %p336, %s25, 1
        %s338 = smul.addr %s337, 8
        %s339 = smul.addr %s338, 8
        %s340 = scalar_lea.vmem %s0, %s339
        %p341 = pneg %p46
        %p342 = pneg %p43
        %p343 = pneg %p67
        %p344 = pneg %p64
        %p345 = pneg %p88
        %p346 = pneg %p85
        %p347 = pneg %p109
        %p348 = pneg %p106
        %p349 = pneg %p130
        %p350 = pneg %p127
        %p351 = pneg %p151
        %p352 = pneg %p148
        %p353 = pneg %p172
        %p354 = pneg %p169
        %p355 = pneg %p193
        %p356 = pneg %p190
        %p357 = pneg %p214
        %p358 = pneg %p211
        %p359 = pneg %p235
        %p360 = pneg %p232
        %p361 = pneg %p261
        %p362 = pneg %p258
        %s363 = sand.u32 %s248, 1
        %s364 = scalar_lea.sflag [#allocation4], %s363
        %s365 = sand.u32 %s248, 1
        %s366 = scalar_lea.vmem [#allocation5], %s365
        %p367 = scmp.lt.s32.totalorder %s25, 1
        %s368 = scalar_select %p367, %s25, 1
        %s369 = smul.addr %s368, 8
        %s370 = smul.addr %s369, 8
        %s371 = scalar_lea.vmem %s0, %s370
        %v372 = vld [vmem:[%s371] sm:$0xff]
        %v373 = vld [vmem:[%s371 + $0x8] sm:$0xff]
        %v374 = vld [vmem:[%s371 + $0x10] sm:$0xff]
        %v375 = vld [vmem:[%s371 + $0x18] sm:$0xff]
        %v376 = vld [vmem:[%s371 + $0x20] sm:$0xff]
        %v377 = vld [vmem:[%s371 + $0x28] sm:$0xff]
        %v378 = vld [vmem:[%s371 + $0x30] sm:$0xff]
        %v379 = vld [vmem:[%s371 + $0x38] sm:$0xff]
        %381 = vset.pattern.permute.xlu0 0
        %382 = vperm.xlu0 %381, %v372
        %v383 = vpop.permute.xlu0 %382
        %386 = vset.pattern.permute.xlu0 0
        %387 = vperm.xlu0 %386, %v373
        %v388 = vpop.permute.xlu0 %387
        %391 = vset.pattern.permute.xlu0 0
        %392 = vperm.xlu0 %391, %v374
        %v393 = vpop.permute.xlu0 %392
        %396 = vset.pattern.permute.xlu0 0
        %397 = vperm.xlu0 %396, %v375
        %v398 = vpop.permute.xlu0 %397
        %401 = vset.pattern.permute.xlu0 0
        %402 = vperm.xlu0 %401, %v376
        %v403 = vpop.permute.xlu0 %402
        %406 = vset.pattern.permute.xlu0 0
        %407 = vperm.xlu0 %406, %v377
        %v408 = vpop.permute.xlu0 %407
        %411 = vset.pattern.permute.xlu0 0
        %412 = vperm.xlu0 %411, %v378
        %v413 = vpop.permute.xlu0 %412
        %416 = vset.pattern.permute.xlu0 0
        %417 = vperm.xlu0 %416, %v379
        %v418 = vpop.permute.xlu0 %417
        %v420 = vld [vmem:[%s1] sm:$0xff]
        %v421 = vld [vmem:[%s1 + $0x8] sm:$0xff]
        %v422 = vld [vmem:[%s1 + $0x10] sm:$0xff]
        %v423 = vld [vmem:[%s1 + $0x18] sm:$0xff]
        %vm424 = vcmask 523264
        %v426 = vsel %vm424, %v420, 0
        %v429 = vsel %vm424, %v421, 0
        %v432 = vsel %vm424, %v422, 0
        %v435 = vsel %vm424, %v423, 0
        %437 = vmatprep.subr.mxu0 0.0
        %438 = vmatpush1.msra.mxu0 0.0
        %439 = vmatprep.subr.mxu0 0.0
        %440 = vmatpush1.msra.mxu0 0.0
        %441 = vmatprep.subr.mxu0 0.0
        %442 = vmatpush1.msra.mxu0 0.0
        %443 = vmatprep.subr.mxu0 0.0
        %444 = vmatpush1.msra.mxu0 0.0
        %445 = vmatprep.subr.mxu0 0.0
        %446 = vmatpush1.msra.mxu0 0.0
        %447 = vmatprep.subr.mxu0 0.0
        %448 = vmatpush1.msra.mxu0 0.0
        %449 = vmatprep.subr.mxu0 0.0
        %450 = vmatpush1.msra.mxu0 0.0
        %451 = vmatprep.subr.mxu0 0.0
        %452 = vmatpush1.msra.mxu0 0.0
        %453 = vmatprep.subr.mxu0 0.0
        %454 = vmatpush1.msra.mxu0 %v418
        %455 = vmatprep.subr.mxu0 0.0
        %456 = vmatpush1.msra.mxu0 %v413
        %457 = vmatprep.subr.mxu0 0.0
        %458 = vmatpush1.msra.mxu0 %v408
        %459 = vmatprep.subr.mxu0 0.0
        %460 = vmatpush1.msra.mxu0 %v403
        %461 = vmatprep.subr.mxu0 0.0
        %462 = vmatpush1.msra.mxu0 %v398
        %463 = vmatprep.subr.mxu0 0.0
        %464 = vmatpush1.msra.mxu0 %v393
        %465 = vmatprep.subr.mxu0 0.0
        %466 = vmatpush1.msra.mxu0 %v388
        %467 = vmatprep.subr.mxu0 0.0
        %468 = vmatpush1.msra.mxu0 %v383
        %469 = vmatprep.subr.mxu0 0.0
        %470 = vmatpush2.msra.mxu0 0.0
        %471 = vmatprep.subr.mxu0 0.0
        %472 = vmatpush2.msra.mxu0 0.0
        %473 = vmatprep.subr.mxu0 0.0
        %474 = vmatpush2.msra.mxu0 0.0
        %475 = vmatprep.subr.mxu0 0.0
        %476 = vmatpush2.msra.mxu0 0.0
        %477 = vmatprep.subr.mxu0 0.0
        %478 = vmatpush2.msra.mxu0 0.0
        %479 = vmatprep.subr.mxu0 0.0
        %480 = vmatpush2.msra.mxu0 0.0
        %481 = vmatprep.subr.mxu0 0.0
        %482 = vmatpush2.msra.mxu0 0.0
        %483 = vmatprep.subr.mxu0 0.0
        %484 = vmatpush2.msra.mxu0 0.0
        %485 = vmatprep.subr.mxu0 0.0
        %486 = vmatpush2.msra.mxu0 0.0
        %487 = vmatprep.subr.mxu0 0.0
        %488 = vmatpush2.msra.mxu0 0.0
        %489 = vmatprep.subr.mxu0 0.0
        %490 = vmatpush2.msra.mxu0 0.0
        %491 = vmatprep.subr.mxu0 0.0
        %492 = vmatpush2.msra.mxu0 0.0
        %493 = vmatprep.subr.mxu0 0.0
        %494 = vmatpush2.msra.mxu0 0.0
        %495 = vmatprep.subr.mxu0 0.0
        %496 = vmatpush2.msra.mxu0 0.0
        %497 = vmatprep.subr.mxu0 0.0
        %498 = vmatpush2.msra.mxu0 0.0
        %499 = vmatprep.subr.mxu0 0.0
        %500 = vmatpush2.msra.mxu0 0.0
        %501 = vmatprep.mubr.f32.mxu0 0.0
        %502 = vmatmul.mubr.f32.gmra.mxu0 %v426
        %v503 = vpop.f32.mrf.mxu0
        %v504 = vadd.f32 0.0, %v503
        %v505 = vpop.f32.mrf.mxu0
        %506 = vmatprep.mubr.f32.mxu0 0.0
        %507 = vmatmul.mubr.f32.gmra.mxu0 %v429
        %v508 = vpop.f32.mrf.mxu0
        %v509 = vadd.f32 0.0, %v508
        %v510 = vpop.f32.mrf.mxu0
        %511 = vmatprep.mubr.f32.mxu0 0.0
        %512 = vmatmul.mubr.f32.gmra.mxu0 %v432
        %v513 = vpop.f32.mrf.mxu0
        %v514 = vadd.f32 0.0, %v513
        %v515 = vpop.f32.mrf.mxu0
        %516 = vmatprep.mubr.f32.mxu0 0.0
        %517 = vmatmul.mubr.f32.gmra.mxu0 %v435
        %v518 = vpop.f32.mrf.mxu0
        %v519 = vadd.f32 0.0, %v518
        %v520 = vpop.f32.mrf.mxu0
        %521 = vdwg.mxu0
        %v522 = vld [vmem:[%s4] sm:$0x1]
        %v524 = vlaneseq
        %v525 = vshrl.u32 %v524, 7
        %v526 = vsub.s32 0, %v525
        %v527 = vrot.slane %v522, %v526
        %v529 = vmul.f32 %v504, %v527
        %v530 = vmul.f32 %v509, %v527
        %v531 = vmul.f32 %v514, %v527
        %v532 = vmul.f32 %v519, %v527
        %s533 = scalar_lea.vmem %s1, 32
        %v534 = vld [vmem:[%s533] sm:$0xff]
        %v535 = vld [vmem:[%s533 + $0x8] sm:$0xff]
        %v536 = vld [vmem:[%s533 + $0x10] sm:$0xff]
        %v537 = vld [vmem:[%s533 + $0x18] sm:$0xff]
        %v539 = vsel %vm424, %v534, 0
        %v542 = vsel %vm424, %v535, 0
        %v545 = vsel %vm424, %v536, 0
        %v548 = vsel %vm424, %v537, 0
        %550 = vmatprep.subr.mxu0 0.0
        %551 = vmatpush1.msra.mxu0 0.0
        %552 = vmatprep.subr.mxu0 0.0
        %553 = vmatpush1.msra.mxu0 0.0
        %554 = vmatprep.subr.mxu0 0.0
        %555 = vmatpush1.msra.mxu0 0.0
        %556 = vmatprep.subr.mxu0 0.0
        %557 = vmatpush1.msra.mxu0 0.0
        %558 = vmatprep.subr.mxu0 0.0
        %559 = vmatpush1.msra.mxu0 0.0
        %560 = vmatprep.subr.mxu0 0.0
        %561 = vmatpush1.msra.mxu0 0.0
        %562 = vmatprep.subr.mxu0 0.0
        %563 = vmatpush1.msra.mxu0 0.0
        %564 = vmatprep.subr.mxu0 0.0
        %565 = vmatpush1.msra.mxu0 0.0
        %566 = vmatprep.subr.mxu0 0.0
        %567 = vmatpush1.msra.mxu0 %v418
        %568 = vmatprep.subr.mxu0 0.0
        %569 = vmatpush1.msra.mxu0 %v413
        %570 = vmatprep.subr.mxu0 0.0
        %571 = vmatpush1.msra.mxu0 %v408
        %572 = vmatprep.subr.mxu0 0.0
        %573 = vmatpush1.msra.mxu0 %v403
        %574 = vmatprep.subr.mxu0 0.0
        %575 = vmatpush1.msra.mxu0 %v398
        %576 = vmatprep.subr.mxu0 0.0
        %577 = vmatpush1.msra.mxu0 %v393
        %578 = vmatprep.subr.mxu0 0.0
        %579 = vmatpush1.msra.mxu0 %v388
        %580 = vmatprep.subr.mxu0 0.0
        %581 = vmatpush1.msra.mxu0 %v383
        %582 = vmatprep.subr.mxu0 0.0
        %583 = vmatpush2.msra.mxu0 0.0
        %584 = vmatprep.subr.mxu0 0.0
        %585 = vmatpush2.msra.mxu0 0.0
        %586 = vmatprep.subr.mxu0 0.0
        %587 = vmatpush2.msra.mxu0 0.0
        %588 = vmatprep.subr.mxu0 0.0
        %589 = vmatpush2.msra.mxu0 0.0
        %590 = vmatprep.subr.mxu0 0.0
        %591 = vmatpush2.msra.mxu0 0.0
        %592 = vmatprep.subr.mxu0 0.0
        %593 = vmatpush2.msra.mxu0 0.0
        %594 = vmatprep.subr.mxu0 0.0
        %595 = vmatpush2.msra.mxu0 0.0
        %596 = vmatprep.subr.mxu0 0.0
        %597 = vmatpush2.msra.mxu0 0.0
        %598 = vmatprep.subr.mxu0 0.0
        %599 = vmatpush2.msra.mxu0 0.0
        %600 = vmatprep.subr.mxu0 0.0
        %601 = vmatpush2.msra.mxu0 0.0
        %602 = vmatprep.subr.mxu0 0.0
        %603 = vmatpush2.msra.mxu0 0.0
        %604 = vmatprep.subr.mxu0 0.0
        %605 = vmatpush2.msra.mxu0 0.0
        %606 = vmatprep.subr.mxu0 0.0
        %607 = vmatpush2.msra.mxu0 0.0
        %608 = vmatprep.subr.mxu0 0.0
        %609 = vmatpush2.msra.mxu0 0.0
        %610 = vmatprep.subr.mxu0 0.0
        %611 = vmatpush2.msra.mxu0 0.0
        %612 = vmatprep.subr.mxu0 0.0
        %613 = vmatpush2.msra.mxu0 0.0
        %614 = vmatprep.mubr.f32.mxu0 0.0
        %615 = vmatmul.mubr.f32.gmra.mxu0 %v539
        %v616 = vpop.f32.mrf.mxu0
        %v617 = vadd.f32 0.0, %v616
        %v618 = vpop.f32.mrf.mxu0
        %619 = vmatprep.mubr.f32.mxu0 0.0
        %620 = vmatmul.mubr.f32.gmra.mxu0 %v542
        %v621 = vpop.f32.mrf.mxu0
        %v622 = vadd.f32 0.0, %v621
        %v623 = vpop.f32.mrf.mxu0
        %624 = vmatprep.mubr.f32.mxu0 0.0
        %625 = vmatmul.mubr.f32.gmra.mxu0 %v545
        %v626 = vpop.f32.mrf.mxu0
        %v627 = vadd.f32 0.0, %v626
        %v628 = vpop.f32.mrf.mxu0
        %629 = vmatprep.mubr.f32.mxu0 0.0
        %630 = vmatmul.mubr.f32.gmra.mxu0 %v548
        %v631 = vpop.f32.mrf.mxu0
        %v632 = vadd.f32 0.0, %v631
        %v633 = vpop.f32.mrf.mxu0
        %634 = vdwg.mxu0
        %s635 = scalar_lea.vmem %s4, 1
        %v636 = vld [vmem:[%s635] sm:$0x1]
        %v638 = vlaneseq
        %v639 = vshrl.u32 %v638, 7
        %v640 = vsub.s32 0, %v639
        %v641 = vrot.slane %v636, %v640
        %v643 = vmul.f32 %v617, %v641
        %v644 = vmul.f32 %v622, %v641
        %v645 = vmul.f32 %v627, %v641
        %v646 = vmul.f32 %v632, %v641
        %v647 = vadd.f32 %v529, %v643
        %v648 = vadd.f32 %v530, %v644
        %v649 = vadd.f32 %v531, %v645
        %v650 = vadd.f32 %v532, %v646
        %s651 = scalar_lea.vmem %s1, 64
        %v652 = vld [vmem:[%s651] sm:$0xff]
        %v653 = vld [vmem:[%s651 + $0x8] sm:$0xff]
        %v654 = vld [vmem:[%s651 + $0x10] sm:$0xff]
        %v655 = vld [vmem:[%s651 + $0x18] sm:$0xff]
        %v657 = vsel %vm424, %v652, 0
        %v660 = vsel %vm424, %v653, 0
        %v663 = vsel %vm424, %v654, 0
        %v666 = vsel %vm424, %v655, 0
        %668 = vmatprep.subr.mxu0 0.0
        %669 = vmatpush1.msra.mxu0 0.0
        %670 = vmatprep.subr.mxu0 0.0
        %671 = vmatpush1.msra.mxu0 0.0
        %672 = vmatprep.subr.mxu0 0.0
        %673 = vmatpush1.msra.mxu0 0.0
        %674 = vmatprep.subr.mxu0 0.0
        %675 = vmatpush1.msra.mxu0 0.0
        %676 = vmatprep.subr.mxu0 0.0
        %677 = vmatpush1.msra.mxu0 0.0
        %678 = vmatprep.subr.mxu0 0.0
        %679 = vmatpush1.msra.mxu0 0.0
        %680 = vmatprep.subr.mxu0 0.0
        %681 = vmatpush1.msra.mxu0 0.0
        %682 = vmatprep.subr.mxu0 0.0
        %683 = vmatpush1.msra.mxu0 0.0
        %684 = vmatprep.subr.mxu0 0.0
        %685 = vmatpush1.msra.mxu0 %v418
        %686 = vmatprep.subr.mxu0 0.0
        %687 = vmatpush1.msra.mxu0 %v413
        %688 = vmatprep.subr.mxu0 0.0
        %689 = vmatpush1.msra.mxu0 %v408
        %690 = vmatprep.subr.mxu0 0.0
        %691 = vmatpush1.msra.mxu0 %v403
        %692 = vmatprep.subr.mxu0 0.0
        %693 = vmatpush1.msra.mxu0 %v398
        %694 = vmatprep.subr.mxu0 0.0
        %695 = vmatpush1.msra.mxu0 %v393
        %696 = vmatprep.subr.mxu0 0.0
        %697 = vmatpush1.msra.mxu0 %v388
        %698 = vmatprep.subr.mxu0 0.0
        %699 = vmatpush1.msra.mxu0 %v383
        %700 = vmatprep.subr.mxu0 0.0
        %701 = vmatpush2.msra.mxu0 0.0
        %702 = vmatprep.subr.mxu0 0.0
        %703 = vmatpush2.msra.mxu0 0.0
        %704 = vmatprep.subr.mxu0 0.0
        %705 = vmatpush2.msra.mxu0 0.0
        %706 = vmatprep.subr.mxu0 0.0
        %707 = vmatpush2.msra.mxu0 0.0
        %708 = vmatprep.subr.mxu0 0.0
        %709 = vmatpush2.msra.mxu0 0.0
        %710 = vmatprep.subr.mxu0 0.0
        %711 = vmatpush2.msra.mxu0 0.0
        %712 = vmatprep.subr.mxu0 0.0
        %713 = vmatpush2.msra.mxu0 0.0
        %714 = vmatprep.subr.mxu0 0.0
        %715 = vmatpush2.msra.mxu0 0.0
        %716 = vmatprep.subr.mxu0 0.0
        %717 = vmatpush2.msra.mxu0 0.0
        %718 = vmatprep.subr.mxu0 0.0
        %719 = vmatpush2.msra.mxu0 0.0
        %720 = vmatprep.subr.mxu0 0.0
        %721 = vmatpush2.msra.mxu0 0.0
        %722 = vmatprep.subr.mxu0 0.0
        %723 = vmatpush2.msra.mxu0 0.0
        %724 = vmatprep.subr.mxu0 0.0
        %725 = vmatpush2.msra.mxu0 0.0
        %726 = vmatprep.subr.mxu0 0.0
        %727 = vmatpush2.msra.mxu0 0.0
        %728 = vmatprep.subr.mxu0 0.0
        %729 = vmatpush2.msra.mxu0 0.0
        %730 = vmatprep.subr.mxu0 0.0
        %731 = vmatpush2.msra.mxu0 0.0
        %732 = vmatprep.mubr.f32.mxu0 0.0
        %733 = vmatmul.mubr.f32.gmra.mxu0 %v657
        %v734 = vpop.f32.mrf.mxu0
        %v735 = vadd.f32 0.0, %v734
        %v736 = vpop.f32.mrf.mxu0
        %737 = vmatprep.mubr.f32.mxu0 0.0
        %738 = vmatmul.mubr.f32.gmra.mxu0 %v660
        %v739 = vpop.f32.mrf.mxu0
        %v740 = vadd.f32 0.0, %v739
        %v741 = vpop.f32.mrf.mxu0
        %742 = vmatprep.mubr.f32.mxu0 0.0
        %743 = vmatmul.mubr.f32.gmra.mxu0 %v663
        %v744 = vpop.f32.mrf.mxu0
        %v745 = vadd.f32 0.0, %v744
        %v746 = vpop.f32.mrf.mxu0
        %747 = vmatprep.mubr.f32.mxu0 0.0
        %748 = vmatmul.mubr.f32.gmra.mxu0 %v666
        %v749 = vpop.f32.mrf.mxu0
        %v750 = vadd.f32 0.0, %v749
        %v751 = vpop.f32.mrf.mxu0
        %752 = vdwg.mxu0
        %s753 = scalar_lea.vmem %s4, 2
        %v754 = vld [vmem:[%s753] sm:$0x1]
        %v756 = vlaneseq
        %v757 = vshrl.u32 %v756, 7
        %v758 = vsub.s32 0, %v757
        %v759 = vrot.slane %v754, %v758
        %v761 = vmul.f32 %v735, %v759
        %v762 = vmul.f32 %v740, %v759
        %v763 = vmul.f32 %v745, %v759
        %v764 = vmul.f32 %v750, %v759
        %v765 = vadd.f32 %v647, %v761
        %v766 = vadd.f32 %v648, %v762
        %v767 = vadd.f32 %v649, %v763
        %v768 = vadd.f32 %v650, %v764
        %s769 = scalar_lea.vmem %s1, 96
        %v770 = vld [vmem:[%s769] sm:$0xff]
        %v771 = vld [vmem:[%s769 + $0x8] sm:$0xff]
        %v772 = vld [vmem:[%s769 + $0x10] sm:$0xff]
        %v773 = vld [vmem:[%s769 + $0x18] sm:$0xff]
        %v775 = vsel %vm424, %v770, 0
        %v778 = vsel %vm424, %v771, 0
        %v781 = vsel %vm424, %v772, 0
        %v784 = vsel %vm424, %v773, 0
        %786 = vmatprep.subr.mxu0 0.0
        %787 = vmatpush1.msra.mxu0 0.0
        %788 = vmatprep.subr.mxu0 0.0
        %789 = vmatpush1.msra.mxu0 0.0
        %790 = vmatprep.subr.mxu0 0.0
        %791 = vmatpush1.msra.mxu0 0.0
        %792 = vmatprep.subr.mxu0 0.0
        %793 = vmatpush1.msra.mxu0 0.0
        %794 = vmatprep.subr.mxu0 0.0
        %795 = vmatpush1.msra.mxu0 0.0
        %796 = vmatprep.subr.mxu0 0.0
        %797 = vmatpush1.msra.mxu0 0.0
        %798 = vmatprep.subr.mxu0 0.0
        %799 = vmatpush1.msra.mxu0 0.0
        %800 = vmatprep.subr.mxu0 0.0
        %801 = vmatpush1.msra.mxu0 0.0
        %802 = vmatprep.subr.mxu0 0.0
        %803 = vmatpush1.msra.mxu0 %v418
        %804 = vmatprep.subr.mxu0 0.0
        %805 = vmatpush1.msra.mxu0 %v413
        %806 = vmatprep.subr.mxu0 0.0
        %807 = vmatpush1.msra.mxu0 %v408
        %808 = vmatprep.subr.mxu0 0.0
        %809 = vmatpush1.msra.mxu0 %v403
        %810 = vmatprep.subr.mxu0 0.0
        %811 = vmatpush1.msra.mxu0 %v398
        %812 = vmatprep.subr.mxu0 0.0
        %813 = vmatpush1.msra.mxu0 %v393
        %814 = vmatprep.subr.mxu0 0.0
        %815 = vmatpush1.msra.mxu0 %v388
        %816 = vmatprep.subr.mxu0 0.0
        %817 = vmatpush1.msra.mxu0 %v383
        %818 = vmatprep.subr.mxu0 0.0
        %819 = vmatpush2.msra.mxu0 0.0
        %820 = vmatprep.subr.mxu0 0.0
        %821 = vmatpush2.msra.mxu0 0.0
        %822 = vmatprep.subr.mxu0 0.0
        %823 = vmatpush2.msra.mxu0 0.0
        %824 = vmatprep.subr.mxu0 0.0
        %825 = vmatpush2.msra.mxu0 0.0
        %826 = vmatprep.subr.mxu0 0.0
        %827 = vmatpush2.msra.mxu0 0.0
        %828 = vmatprep.subr.mxu0 0.0
        %829 = vmatpush2.msra.mxu0 0.0
        %830 = vmatprep.subr.mxu0 0.0
        %831 = vmatpush2.msra.mxu0 0.0
        %832 = vmatprep.subr.mxu0 0.0
        %833 = vmatpush2.msra.mxu0 0.0
        %834 = vmatprep.subr.mxu0 0.0
        %835 = vmatpush2.msra.mxu0 0.0
        %836 = vmatprep.subr.mxu0 0.0
        %837 = vmatpush2.msra.mxu0 0.0
        %838 = vmatprep.subr.mxu0 0.0
        %839 = vmatpush2.msra.mxu0 0.0
        %840 = vmatprep.subr.mxu0 0.0
        %841 = vmatpush2.msra.mxu0 0.0
        %842 = vmatprep.subr.mxu0 0.0
        %843 = vmatpush2.msra.mxu0 0.0
        %844 = vmatprep.subr.mxu0 0.0
        %845 = vmatpush2.msra.mxu0 0.0
        %846 = vmatprep.subr.mxu0 0.0
        %847 = vmatpush2.msra.mxu0 0.0
        %848 = vmatprep.subr.mxu0 0.0
        %849 = vmatpush2.msra.mxu0 0.0
        %850 = vmatprep.mubr.f32.mxu0 0.0
        %851 = vmatmul.mubr.f32.gmra.mxu0 %v775
        %v852 = vpop.f32.mrf.mxu0
        %v853 = vadd.f32 0.0, %v852
        %v854 = vpop.f32.mrf.mxu0
        %855 = vmatprep.mubr.f32.mxu0 0.0
        %856 = vmatmul.mubr.f32.gmra.mxu0 %v778
        %v857 = vpop.f32.mrf.mxu0
        %v858 = vadd.f32 0.0, %v857
        %v859 = vpop.f32.mrf.mxu0
        %860 = vmatprep.mubr.f32.mxu0 0.0
        %861 = vmatmul.mubr.f32.gmra.mxu0 %v781
        %v862 = vpop.f32.mrf.mxu0
        %v863 = vadd.f32 0.0, %v862
        %v864 = vpop.f32.mrf.mxu0
        %865 = vmatprep.mubr.f32.mxu0 0.0
        %866 = vmatmul.mubr.f32.gmra.mxu0 %v784
        %v867 = vpop.f32.mrf.mxu0
        %v868 = vadd.f32 0.0, %v867
        %v869 = vpop.f32.mrf.mxu0
        %870 = vdwg.mxu0
        %s871 = scalar_lea.vmem %s4, 3
        %v872 = vld [vmem:[%s871] sm:$0x1]
        %v874 = vlaneseq
        %v875 = vshrl.u32 %v874, 7
        %v876 = vsub.s32 0, %v875
        %v877 = vrot.slane %v872, %v876
        %v879 = vmul.f32 %v853, %v877
        %v880 = vmul.f32 %v858, %v877
        %v881 = vmul.f32 %v863, %v877
        %v882 = vmul.f32 %v868, %v877
        %v883 = vadd.f32 %v765, %v879
        %v884 = vadd.f32 %v766, %v880
        %v885 = vadd.f32 %v767, %v881
        %v886 = vadd.f32 %v768, %v882
        %s887 = scalar_lea.vmem %s1, 128
        %v888 = vld [vmem:[%s887] sm:$0xff]
        %v889 = vld [vmem:[%s887 + $0x8] sm:$0xff]
        %v890 = vld [vmem:[%s887 + $0x10] sm:$0xff]
        %v891 = vld [vmem:[%s887 + $0x18] sm:$0xff]
        %v893 = vsel %vm424, %v888, 0
        %v896 = vsel %vm424, %v889, 0
        %v899 = vsel %vm424, %v890, 0
        %v902 = vsel %vm424, %v891, 0
        %904 = vmatprep.subr.mxu0 0.0
        %905 = vmatpush1.msra.mxu0 0.0
        %906 = vmatprep.subr.mxu0 0.0
        %907 = vmatpush1.msra.mxu0 0.0
        %908 = vmatprep.subr.mxu0 0.0
        %909 = vmatpush1.msra.mxu0 0.0
        %910 = vmatprep.subr.mxu0 0.0
        %911 = vmatpush1.msra.mxu0 0.0
        %912 = vmatprep.subr.mxu0 0.0
        %913 = vmatpush1.msra.mxu0 0.0
        %914 = vmatprep.subr.mxu0 0.0
        %915 = vmatpush1.msra.mxu0 0.0
        %916 = vmatprep.subr.mxu0 0.0
        %917 = vmatpush1.msra.mxu0 0.0
        %918 = vmatprep.subr.mxu0 0.0
        %919 = vmatpush1.msra.mxu0 0.0
        %920 = vmatprep.subr.mxu0 0.0
        %921 = vmatpush1.msra.mxu0 %v418
        %922 = vmatprep.subr.mxu0 0.0
        %923 = vmatpush1.msra.mxu0 %v413
        %924 = vmatprep.subr.mxu0 0.0
        %925 = vmatpush1.msra.mxu0 %v408
        %926 = vmatprep.subr.mxu0 0.0
        %927 = vmatpush1.msra.mxu0 %v403
        %928 = vmatprep.subr.mxu0 0.0
        %929 = vmatpush1.msra.mxu0 %v398
        %930 = vmatprep.subr.mxu0 0.0
        %931 = vmatpush1.msra.mxu0 %v393
        %932 = vmatprep.subr.mxu0 0.0
        %933 = vmatpush1.msra.mxu0 %v388
        %934 = vmatprep.subr.mxu0 0.0
        %935 = vmatpush1.msra.mxu0 %v383
        %936 = vmatprep.subr.mxu0 0.0
        %937 = vmatpush2.msra.mxu0 0.0
        %938 = vmatprep.subr.mxu0 0.0
        %939 = vmatpush2.msra.mxu0 0.0
        %940 = vmatprep.subr.mxu0 0.0
        %941 = vmatpush2.msra.mxu0 0.0
        %942 = vmatprep.subr.mxu0 0.0
        %943 = vmatpush2.msra.mxu0 0.0
        %944 = vmatprep.subr.mxu0 0.0
        %945 = vmatpush2.msra.mxu0 0.0
        %946 = vmatprep.subr.mxu0 0.0
        %947 = vmatpush2.msra.mxu0 0.0
        %948 = vmatprep.subr.mxu0 0.0
        %949 = vmatpush2.msra.mxu0 0.0
        %950 = vmatprep.subr.mxu0 0.0
        %951 = vmatpush2.msra.mxu0 0.0
        %952 = vmatprep.subr.mxu0 0.0
        %953 = vmatpush2.msra.mxu0 0.0
        %954 = vmatprep.subr.mxu0 0.0
        %955 = vmatpush2.msra.mxu0 0.0
        %956 = vmatprep.subr.mxu0 0.0
        %957 = vmatpush2.msra.mxu0 0.0
        %958 = vmatprep.subr.mxu0 0.0
        %959 = vmatpush2.msra.mxu0 0.0
        %960 = vmatprep.subr.mxu0 0.0
        %961 = vmatpush2.msra.mxu0 0.0
        %962 = vmatprep.subr.mxu0 0.0
        %963 = vmatpush2.msra.mxu0 0.0
        %964 = vmatprep.subr.mxu0 0.0
        %965 = vmatpush2.msra.mxu0 0.0
        %966 = vmatprep.subr.mxu0 0.0
        %967 = vmatpush2.msra.mxu0 0.0
        %968 = vmatprep.mubr.f32.mxu0 0.0
        %969 = vmatmul.mubr.f32.gmra.mxu0 %v893
        %v970 = vpop.f32.mrf.mxu0
        %v971 = vadd.f32 0.0, %v970
        %v972 = vpop.f32.mrf.mxu0
        %973 = vmatprep.mubr.f32.mxu0 0.0
        %974 = vmatmul.mubr.f32.gmra.mxu0 %v896
        %v975 = vpop.f32.mrf.mxu0
        %v976 = vadd.f32 0.0, %v975
        %v977 = vpop.f32.mrf.mxu0
        %978 = vmatprep.mubr.f32.mxu0 0.0
        %979 = vmatmul.mubr.f32.gmra.mxu0 %v899
        %v980 = vpop.f32.mrf.mxu0
        %v981 = vadd.f32 0.0, %v980
        %v982 = vpop.f32.mrf.mxu0
        %983 = vmatprep.mubr.f32.mxu0 0.0
        %984 = vmatmul.mubr.f32.gmra.mxu0 %v902
        %v985 = vpop.f32.mrf.mxu0
        %v986 = vadd.f32 0.0, %v985
        %v987 = vpop.f32.mrf.mxu0
        %988 = vdwg.mxu0
        %s989 = scalar_lea.vmem %s4, 4
        %v990 = vld [vmem:[%s989] sm:$0x1]
        %v992 = vlaneseq
        %v993 = vshrl.u32 %v992, 7
        %v994 = vsub.s32 0, %v993
        %v995 = vrot.slane %v990, %v994
        %v997 = vmul.f32 %v971, %v995
        %v998 = vmul.f32 %v976, %v995
        %v999 = vmul.f32 %v981, %v995
        %v1000 = vmul.f32 %v986, %v995
        %v1001 = vadd.f32 %v883, %v997
        %v1002 = vadd.f32 %v884, %v998
        %v1003 = vadd.f32 %v885, %v999
        %v1004 = vadd.f32 %v886, %v1000
        %s1005 = scalar_lea.vmem %s1, 160
        %v1006 = vld [vmem:[%s1005] sm:$0xff]
        %v1007 = vld [vmem:[%s1005 + $0x8] sm:$0xff]
        %v1008 = vld [vmem:[%s1005 + $0x10] sm:$0xff]
        %v1009 = vld [vmem:[%s1005 + $0x18] sm:$0xff]
        %v1011 = vsel %vm424, %v1006, 0
        %v1014 = vsel %vm424, %v1007, 0
        %v1017 = vsel %vm424, %v1008, 0
        %v1020 = vsel %vm424, %v1009, 0
        %1022 = vmatprep.subr.mxu0 0.0
        %1023 = vmatpush1.msra.mxu0 0.0
        %1024 = vmatprep.subr.mxu0 0.0
        %1025 = vmatpush1.msra.mxu0 0.0
        %1026 = vmatprep.subr.mxu0 0.0
        %1027 = vmatpush1.msra.mxu0 0.0
        %1028 = vmatprep.subr.mxu0 0.0
        %1029 = vmatpush1.msra.mxu0 0.0
        %1030 = vmatprep.subr.mxu0 0.0
        %1031 = vmatpush1.msra.mxu0 0.0
        %1032 = vmatprep.subr.mxu0 0.0
        %1033 = vmatpush1.msra.mxu0 0.0
        %1034 = vmatprep.subr.mxu0 0.0
        %1035 = vmatpush1.msra.mxu0 0.0
        %1036 = vmatprep.subr.mxu0 0.0
        %1037 = vmatpush1.msra.mxu0 0.0
        %1038 = vmatprep.subr.mxu0 0.0
        %1039 = vmatpush1.msra.mxu0 %v418
        %1040 = vmatprep.subr.mxu0 0.0
        %1041 = vmatpush1.msra.mxu0 %v413
        %1042 = vmatprep.subr.mxu0 0.0
        %1043 = vmatpush1.msra.mxu0 %v408
        %1044 = vmatprep.subr.mxu0 0.0
        %1045 = vmatpush1.msra.mxu0 %v403
        %1046 = vmatprep.subr.mxu0 0.0
        %1047 = vmatpush1.msra.mxu0 %v398
        %1048 = vmatprep.subr.mxu0 0.0
        %1049 = vmatpush1.msra.mxu0 %v393
        %1050 = vmatprep.subr.mxu0 0.0
        %1051 = vmatpush1.msra.mxu0 %v388
        %1052 = vmatprep.subr.mxu0 0.0
        %1053 = vmatpush1.msra.mxu0 %v383
        %1054 = vmatprep.subr.mxu0 0.0
        %1055 = vmatpush2.msra.mxu0 0.0
        %1056 = vmatprep.subr.mxu0 0.0
        %1057 = vmatpush2.msra.mxu0 0.0
        %1058 = vmatprep.subr.mxu0 0.0
        %1059 = vmatpush2.msra.mxu0 0.0
        %1060 = vmatprep.subr.mxu0 0.0
        %1061 = vmatpush2.msra.mxu0 0.0
        %1062 = vmatprep.subr.mxu0 0.0
        %1063 = vmatpush2.msra.mxu0 0.0
        %1064 = vmatprep.subr.mxu0 0.0
        %1065 = vmatpush2.msra.mxu0 0.0
        %1066 = vmatprep.subr.mxu0 0.0
        %1067 = vmatpush2.msra.mxu0 0.0
        %1068 = vmatprep.subr.mxu0 0.0
        %1069 = vmatpush2.msra.mxu0 0.0
        %1070 = vmatprep.subr.mxu0 0.0
        %1071 = vmatpush2.msra.mxu0 0.0
        %1072 = vmatprep.subr.mxu0 0.0
        %1073 = vmatpush2.msra.mxu0 0.0
        %1074 = vmatprep.subr.mxu0 0.0
        %1075 = vmatpush2.msra.mxu0 0.0
        %1076 = vmatprep.subr.mxu0 0.0
        %1077 = vmatpush2.msra.mxu0 0.0
        %1078 = vmatprep.subr.mxu0 0.0
        %1079 = vmatpush2.msra.mxu0 0.0
        %1080 = vmatprep.subr.mxu0 0.0
        %1081 = vmatpush2.msra.mxu0 0.0
        %1082 = vmatprep.subr.mxu0 0.0
        %1083 = vmatpush2.msra.mxu0 0.0
        %1084 = vmatprep.subr.mxu0 0.0
        %1085 = vmatpush2.msra.mxu0 0.0
        %1086 = vmatprep.mubr.f32.mxu0 0.0
        %1087 = vmatmul.mubr.f32.gmra.mxu0 %v1011
        %v1088 = vpop.f32.mrf.mxu0
        %v1089 = vadd.f32 0.0, %v1088
        %v1090 = vpop.f32.mrf.mxu0
        %1091 = vmatprep.mubr.f32.mxu0 0.0
        %1092 = vmatmul.mubr.f32.gmra.mxu0 %v1014
        %v1093 = vpop.f32.mrf.mxu0
        %v1094 = vadd.f32 0.0, %v1093
        %v1095 = vpop.f32.mrf.mxu0
        %1096 = vmatprep.mubr.f32.mxu0 0.0
        %1097 = vmatmul.mubr.f32.gmra.mxu0 %v1017
        %v1098 = vpop.f32.mrf.mxu0
        %v1099 = vadd.f32 0.0, %v1098
        %v1100 = vpop.f32.mrf.mxu0
        %1101 = vmatprep.mubr.f32.mxu0 0.0
        %1102 = vmatmul.mubr.f32.gmra.mxu0 %v1020
        %v1103 = vpop.f32.mrf.mxu0
        %v1104 = vadd.f32 0.0, %v1103
        %v1105 = vpop.f32.mrf.mxu0
        %1106 = vdwg.mxu0
        %s1107 = scalar_lea.vmem %s4, 5
        %v1108 = vld [vmem:[%s1107] sm:$0x1]
        %v1110 = vlaneseq
        %v1111 = vshrl.u32 %v1110, 7
        %v1112 = vsub.s32 0, %v1111
        %v1113 = vrot.slane %v1108, %v1112
        %v1115 = vmul.f32 %v1089, %v1113
        %v1116 = vmul.f32 %v1094, %v1113
        %v1117 = vmul.f32 %v1099, %v1113
        %v1118 = vmul.f32 %v1104, %v1113
        %v1119 = vadd.f32 %v1001, %v1115
        %v1120 = vadd.f32 %v1002, %v1116
        %v1121 = vadd.f32 %v1003, %v1117
        %v1122 = vadd.f32 %v1004, %v1118
        %s1123 = scalar_lea.vmem %s1, 192
        %v1124 = vld [vmem:[%s1123] sm:$0xff]
        %v1125 = vld [vmem:[%s1123 + $0x8] sm:$0xff]
        %v1126 = vld [vmem:[%s1123 + $0x10] sm:$0xff]
        %v1127 = vld [vmem:[%s1123 + $0x18] sm:$0xff]
        %v1129 = vsel %vm424, %v1124, 0
        %v1132 = vsel %vm424, %v1125, 0
        %v1135 = vsel %vm424, %v1126, 0
        %v1138 = vsel %vm424, %v1127, 0
        %1140 = vmatprep.subr.mxu0 0.0
        %1141 = vmatpush1.msra.mxu0 0.0
        %1142 = vmatprep.subr.mxu0 0.0
        %1143 = vmatpush1.msra.mxu0 0.0
        %1144 = vmatprep.subr.mxu0 0.0
        %1145 = vmatpush1.msra.mxu0 0.0
        %1146 = vmatprep.subr.mxu0 0.0
        %1147 = vmatpush1.msra.mxu0 0.0
        %1148 = vmatprep.subr.mxu0 0.0
        %1149 = vmatpush1.msra.mxu0 0.0
        %1150 = vmatprep.subr.mxu0 0.0
        %1151 = vmatpush1.msra.mxu0 0.0
        %1152 = vmatprep.subr.mxu0 0.0
        %1153 = vmatpush1.msra.mxu0 0.0
        %1154 = vmatprep.subr.mxu0 0.0
        %1155 = vmatpush1.msra.mxu0 0.0
        %1156 = vmatprep.subr.mxu0 0.0
        %1157 = vmatpush1.msra.mxu0 %v418
        %1158 = vmatprep.subr.mxu0 0.0
        %1159 = vmatpush1.msra.mxu0 %v413
        %1160 = vmatprep.subr.mxu0 0.0
        %1161 = vmatpush1.msra.mxu0 %v408
        %1162 = vmatprep.subr.mxu0 0.0
        %1163 = vmatpush1.msra.mxu0 %v403
        %1164 = vmatprep.subr.mxu0 0.0
        %1165 = vmatpush1.msra.mxu0 %v398
        %1166 = vmatprep.subr.mxu0 0.0
        %1167 = vmatpush1.msra.mxu0 %v393
        %1168 = vmatprep.subr.mxu0 0.0
        %1169 = vmatpush1.msra.mxu0 %v388
        %1170 = vmatprep.subr.mxu0 0.0
        %1171 = vmatpush1.msra.mxu0 %v383
        %1172 = vmatprep.subr.mxu0 0.0
        %1173 = vmatpush2.msra.mxu0 0.0
        %1174 = vmatprep.subr.mxu0 0.0
        %1175 = vmatpush2.msra.mxu0 0.0
        %1176 = vmatprep.subr.mxu0 0.0
        %1177 = vmatpush2.msra.mxu0 0.0
        %1178 = vmatprep.subr.mxu0 0.0
        %1179 = vmatpush2.msra.mxu0 0.0
        %1180 = vmatprep.subr.mxu0 0.0
        %1181 = vmatpush2.msra.mxu0 0.0
        %1182 = vmatprep.subr.mxu0 0.0
        %1183 = vmatpush2.msra.mxu0 0.0
        %1184 = vmatprep.subr.mxu0 0.0
        %1185 = vmatpush2.msra.mxu0 0.0
        %1186 = vmatprep.subr.mxu0 0.0
        %1187 = vmatpush2.msra.mxu0 0.0
        %1188 = vmatprep.subr.mxu0 0.0
        %1189 = vmatpush2.msra.mxu0 0.0
        %1190 = vmatprep.subr.mxu0 0.0
        %1191 = vmatpush2.msra.mxu0 0.0
        %1192 = vmatprep.subr.mxu0 0.0
        %1193 = vmatpush2.msra.mxu0 0.0
        %1194 = vmatprep.subr.mxu0 0.0
        %1195 = vmatpush2.msra.mxu0 0.0
        %1196 = vmatprep.subr.mxu0 0.0
        %1197 = vmatpush2.msra.mxu0 0.0
        %1198 = vmatprep.subr.mxu0 0.0
        %1199 = vmatpush2.msra.mxu0 0.0
        %1200 = vmatprep.subr.mxu0 0.0
        %1201 = vmatpush2.msra.mxu0 0.0
        %1202 = vmatprep.subr.mxu0 0.0
        %1203 = vmatpush2.msra.mxu0 0.0
        %1204 = vmatprep.mubr.f32.mxu0 0.0
        %1205 = vmatmul.mubr.f32.gmra.mxu0 %v1129
        %v1206 = vpop.f32.mrf.mxu0
        %v1207 = vadd.f32 0.0, %v1206
        %v1208 = vpop.f32.mrf.mxu0
        %1209 = vmatprep.mubr.f32.mxu0 0.0
        %1210 = vmatmul.mubr.f32.gmra.mxu0 %v1132
        %v1211 = vpop.f32.mrf.mxu0
        %v1212 = vadd.f32 0.0, %v1211
        %v1213 = vpop.f32.mrf.mxu0
        %1214 = vmatprep.mubr.f32.mxu0 0.0
        %1215 = vmatmul.mubr.f32.gmra.mxu0 %v1135
        %v1216 = vpop.f32.mrf.mxu0
        %v1217 = vadd.f32 0.0, %v1216
        %v1218 = vpop.f32.mrf.mxu0
        %1219 = vmatprep.mubr.f32.mxu0 0.0
        %1220 = vmatmul.mubr.f32.gmra.mxu0 %v1138
        %v1221 = vpop.f32.mrf.mxu0
        %v1222 = vadd.f32 0.0, %v1221
        %v1223 = vpop.f32.mrf.mxu0
        %1224 = vdwg.mxu0
        %s1225 = scalar_lea.vmem %s4, 6
        %v1226 = vld [vmem:[%s1225] sm:$0x1]
        %v1228 = vlaneseq
        %v1229 = vshrl.u32 %v1228, 7
        %v1230 = vsub.s32 0, %v1229
        %v1231 = vrot.slane %v1226, %v1230
        %v1233 = vmul.f32 %v1207, %v1231
        %v1234 = vmul.f32 %v1212, %v1231
        %v1235 = vmul.f32 %v1217, %v1231
        %v1236 = vmul.f32 %v1222, %v1231
        %v1237 = vadd.f32 %v1119, %v1233
        %v1238 = vadd.f32 %v1120, %v1234
        %v1239 = vadd.f32 %v1121, %v1235
        %v1240 = vadd.f32 %v1122, %v1236
        %s1241 = scalar_lea.vmem %s1, 224
        %v1242 = vld [vmem:[%s1241] sm:$0xff]
        %v1243 = vld [vmem:[%s1241 + $0x8] sm:$0xff]
        %v1244 = vld [vmem:[%s1241 + $0x10] sm:$0xff]
        %v1245 = vld [vmem:[%s1241 + $0x18] sm:$0xff]
        %v1247 = vsel %vm424, %v1242, 0
        %v1250 = vsel %vm424, %v1243, 0
        %v1253 = vsel %vm424, %v1244, 0
        %v1256 = vsel %vm424, %v1245, 0
        %1258 = vmatprep.subr.mxu0 0.0
        %1259 = vmatpush1.msra.mxu0 0.0
        %1260 = vmatprep.subr.mxu0 0.0
        %1261 = vmatpush1.msra.mxu0 0.0
        %1262 = vmatprep.subr.mxu0 0.0
        %1263 = vmatpush1.msra.mxu0 0.0
        %1264 = vmatprep.subr.mxu0 0.0
        %1265 = vmatpush1.msra.mxu0 0.0
        %1266 = vmatprep.subr.mxu0 0.0
        %1267 = vmatpush1.msra.mxu0 0.0
        %1268 = vmatprep.subr.mxu0 0.0
        %1269 = vmatpush1.msra.mxu0 0.0
        %1270 = vmatprep.subr.mxu0 0.0
        %1271 = vmatpush1.msra.mxu0 0.0
        %1272 = vmatprep.subr.mxu0 0.0
        %1273 = vmatpush1.msra.mxu0 0.0
        %1274 = vmatprep.subr.mxu0 0.0
        %1275 = vmatpush1.msra.mxu0 %v418
        %1276 = vmatprep.subr.mxu0 0.0
        %1277 = vmatpush1.msra.mxu0 %v413
        %1278 = vmatprep.subr.mxu0 0.0
        %1279 = vmatpush1.msra.mxu0 %v408
        %1280 = vmatprep.subr.mxu0 0.0
        %1281 = vmatpush1.msra.mxu0 %v403
        %1282 = vmatprep.subr.mxu0 0.0
        %1283 = vmatpush1.msra.mxu0 %v398
        %1284 = vmatprep.subr.mxu0 0.0
        %1285 = vmatpush1.msra.mxu0 %v393
        %1286 = vmatprep.subr.mxu0 0.0
        %1287 = vmatpush1.msra.mxu0 %v388
        %1288 = vmatprep.subr.mxu0 0.0
        %1289 = vmatpush1.msra.mxu0 %v383
        %1290 = vmatprep.subr.mxu0 0.0
        %1291 = vmatpush2.msra.mxu0 0.0
        %1292 = vmatprep.subr.mxu0 0.0
        %1293 = vmatpush2.msra.mxu0 0.0
        %1294 = vmatprep.subr.mxu0 0.0
        %1295 = vmatpush2.msra.mxu0 0.0
        %1296 = vmatprep.subr.mxu0 0.0
        %1297 = vmatpush2.msra.mxu0 0.0
        %1298 = vmatprep.subr.mxu0 0.0
        %1299 = vmatpush2.msra.mxu0 0.0
        %1300 = vmatprep.subr.mxu0 0.0
        %1301 = vmatpush2.msra.mxu0 0.0
        %1302 = vmatprep.subr.mxu0 0.0
        %1303 = vmatpush2.msra.mxu0 0.0
        %1304 = vmatprep.subr.mxu0 0.0
        %1305 = vmatpush2.msra.mxu0 0.0
        %1306 = vmatprep.subr.mxu0 0.0
        %1307 = vmatpush2.msra.mxu0 0.0
        %1308 = vmatprep.subr.mxu0 0.0
        %1309 = vmatpush2.msra.mxu0 0.0
        %1310 = vmatprep.subr.mxu0 0.0
        %1311 = vmatpush2.msra.mxu0 0.0
        %1312 = vmatprep.subr.mxu0 0.0
        %1313 = vmatpush2.msra.mxu0 0.0
        %1314 = vmatprep.subr.mxu0 0.0
        %1315 = vmatpush2.msra.mxu0 0.0
        %1316 = vmatprep.subr.mxu0 0.0
        %1317 = vmatpush2.msra.mxu0 0.0
        %1318 = vmatprep.subr.mxu0 0.0
        %1319 = vmatpush2.msra.mxu0 0.0
        %1320 = vmatprep.subr.mxu0 0.0
        %1321 = vmatpush2.msra.mxu0 0.0
        %1322 = vmatprep.mubr.f32.mxu0 0.0
        %1323 = vmatmul.mubr.f32.gmra.mxu0 %v1247
        %v1324 = vpop.f32.mrf.mxu0
        %v1325 = vadd.f32 0.0, %v1324
        %v1326 = vpop.f32.mrf.mxu0
        %1327 = vmatprep.mubr.f32.mxu0 0.0
        %1328 = vmatmul.mubr.f32.gmra.mxu0 %v1250
        %v1329 = vpop.f32.mrf.mxu0
        %v1330 = vadd.f32 0.0, %v1329
        %v1331 = vpop.f32.mrf.mxu0
        %1332 = vmatprep.mubr.f32.mxu0 0.0
        %1333 = vmatmul.mubr.f32.gmra.mxu0 %v1253
        %v1334 = vpop.f32.mrf.mxu0
        %v1335 = vadd.f32 0.0, %v1334
        %v1336 = vpop.f32.mrf.mxu0
        %1337 = vmatprep.mubr.f32.mxu0 0.0
        %1338 = vmatmul.mubr.f32.gmra.mxu0 %v1256
        %v1339 = vpop.f32.mrf.mxu0
        %v1340 = vadd.f32 0.0, %v1339
        %v1341 = vpop.f32.mrf.mxu0
        %1342 = vdwg.mxu0
        %s1343 = scalar_lea.vmem %s4, 7
        %v1344 = vld [vmem:[%s1343] sm:$0x1]
        %v1346 = vlaneseq
        %v1347 = vshrl.u32 %v1346, 7
        %v1348 = vsub.s32 0, %v1347
        %v1349 = vrot.slane %v1344, %v1348
        %v1351 = vmul.f32 %v1325, %v1349
        %v1352 = vmul.f32 %v1330, %v1349
        %v1353 = vmul.f32 %v1335, %v1349
        %v1354 = vmul.f32 %v1340, %v1349
        %v1355 = vadd.f32 %v1237, %v1351
        %v1356 = vadd.f32 %v1238, %v1352
        %v1357 = vadd.f32 %v1239, %v1353
        %v1358 = vadd.f32 %v1240, %v1354
        %v1359 = vld [vmem:[%s7] sm:$0x1]
        %v1360 = vlaneseq
        %v1361 = vshrl.u32 %v1360, 7
        %v1362 = vsub.s32 0, %v1361
        %v1363 = vrot.slane %v1359, %v1362
        %v1364 = vadd.f32 %v1355, %v1363
        %v1365 = vadd.f32 %v1356, %v1363
        %v1366 = vadd.f32 %v1357, %v1363
        %v1367 = vadd.f32 %v1358, %v1363
        %v1368 = vmul.f32 %v1364, 0.5
        %v1369 = vmul.f32 %v1365, 0.5
        %v1370 = vmul.f32 %v1366, 0.5
        %v1371 = vmul.f32 %v1367, 0.5
        %v1372 = vmul.f32 %v1364, 0.70710677
        %v1373 = vmul.f32 %v1365, 0.70710677
        %v1374 = vmul.f32 %v1366, 0.70710677
        %v1375 = vmul.f32 %v1367, 0.70710677
        %v1376 = verf.f32.pop %v1372
        %v1377 = verf.f32.pop %v1373
        %v1378 = verf.f32.pop %v1374
        %v1379 = verf.f32.pop %v1375
        %v1380 = vadd.f32 %v1376, 1.0
        %v1381 = vadd.f32 %v1377, 1.0
        %v1382 = vadd.f32 %v1378, 1.0
        %v1383 = vadd.f32 %v1379, 1.0
        %v1384 = vmul.f32 %v1368, %v1380
        %v1385 = vmul.f32 %v1369, %v1381
        %v1386 = vmul.f32 %v1370, %v1382
        %v1387 = vmul.f32 %v1371, %v1383
        %v1388 = vld [vmem:[%s2] sm:$0xff]
        %v1389 = vld [vmem:[%s2 + $0x8] sm:$0xff]
        %vm1390 = vcmask 261120
        %v1392 = vsel %vm1390, %v1388, 0
        %v1395 = vsel %vm1390, %v1389, 0
        %1397 = vmatprep.subr.mxu0 0.0
        %1398 = vmatpush1.msra.mxu0 0.0
        %1399 = vmatprep.subr.mxu0 0.0
        %1400 = vmatpush1.msra.mxu0 0.0
        %1401 = vmatprep.subr.mxu0 0.0
        %1402 = vmatpush1.msra.mxu0 0.0
        %1403 = vmatprep.subr.mxu0 0.0
        %1404 = vmatpush1.msra.mxu0 0.0
        %1405 = vmatprep.subr.mxu0 0.0
        %1406 = vmatpush1.msra.mxu0 0.0
        %1407 = vmatprep.subr.mxu0 0.0
        %1408 = vmatpush1.msra.mxu0 0.0
        %1409 = vmatprep.subr.mxu0 0.0
        %1410 = vmatpush1.msra.mxu0 0.0
        %1411 = vmatprep.subr.mxu0 0.0
        %1412 = vmatpush1.msra.mxu0 0.0
        %1413 = vmatprep.subr.mxu0 0.0
        %1414 = vmatpush1.msra.mxu0 0.0
        %1415 = vmatprep.subr.mxu0 0.0
        %1416 = vmatpush1.msra.mxu0 0.0
        %1417 = vmatprep.subr.mxu0 0.0
        %1418 = vmatpush1.msra.mxu0 0.0
        %1419 = vmatprep.subr.mxu0 0.0
        %1420 = vmatpush1.msra.mxu0 0.0
        %1421 = vmatprep.subr.mxu0 0.0
        %1422 = vmatpush1.msra.mxu0 %v1387
        %1423 = vmatprep.subr.mxu0 0.0
        %1424 = vmatpush1.msra.mxu0 %v1386
        %1425 = vmatprep.subr.mxu0 0.0
        %1426 = vmatpush1.msra.mxu0 %v1385
        %1427 = vmatprep.subr.mxu0 0.0
        %1428 = vmatpush1.msra.mxu0 %v1384
        %1429 = vmatprep.subr.mxu0 0.0
        %1430 = vmatpush2.msra.mxu0 0.0
        %1431 = vmatprep.subr.mxu0 0.0
        %1432 = vmatpush2.msra.mxu0 0.0
        %1433 = vmatprep.subr.mxu0 0.0
        %1434 = vmatpush2.msra.mxu0 0.0
        %1435 = vmatprep.subr.mxu0 0.0
        %1436 = vmatpush2.msra.mxu0 0.0
        %1437 = vmatprep.subr.mxu0 0.0
        %1438 = vmatpush2.msra.mxu0 0.0
        %1439 = vmatprep.subr.mxu0 0.0
        %1440 = vmatpush2.msra.mxu0 0.0
        %1441 = vmatprep.subr.mxu0 0.0
        %1442 = vmatpush2.msra.mxu0 0.0
        %1443 = vmatprep.subr.mxu0 0.0
        %1444 = vmatpush2.msra.mxu0 0.0
        %1445 = vmatprep.subr.mxu0 0.0
        %1446 = vmatpush2.msra.mxu0 0.0
        %1447 = vmatprep.subr.mxu0 0.0
        %1448 = vmatpush2.msra.mxu0 0.0
        %1449 = vmatprep.subr.mxu0 0.0
        %1450 = vmatpush2.msra.mxu0 0.0
        %1451 = vmatprep.subr.mxu0 0.0
        %1452 = vmatpush2.msra.mxu0 0.0
        %1453 = vmatprep.subr.mxu0 0.0
        %1454 = vmatpush2.msra.mxu0 0.0
        %1455 = vmatprep.subr.mxu0 0.0
        %1456 = vmatpush2.msra.mxu0 0.0
        %1457 = vmatprep.subr.mxu0 0.0
        %1458 = vmatpush2.msra.mxu0 0.0
        %1459 = vmatprep.subr.mxu0 0.0
        %1460 = vmatpush2.msra.mxu0 0.0
        %1461 = vmatprep.mubr.f32.mxu0 0.0
        %1462 = vmatmul.mubr.f32.gmra.mxu0 %v1392
        %v1463 = vpop.f32.mrf.mxu0
        %v1464 = vadd.f32 0.0, %v1463
        %v1465 = vpop.f32.mrf.mxu0
        %1466 = vmatprep.mubr.f32.mxu0 0.0
        %1467 = vmatmul.mubr.f32.gmra.mxu0 %v1395
        %v1468 = vpop.f32.mrf.mxu0
        %v1469 = vadd.f32 0.0, %v1468
        %v1470 = vpop.f32.mrf.mxu0
        %1471 = vdwg.mxu0
        %v1472 = vld [vmem:[%s5] sm:$0xff]
        %v1473 = vld [vmem:[%s5 + $0x8] sm:$0xff]
        %v1474 = vld [vmem:[%s5 + $0x10] sm:$0xff]
        %v1475 = vld [vmem:[%s5 + $0x18] sm:$0xff]
        %s1476 = scalar_lea.vmem %s2, 16
        %v1477 = vld [vmem:[%s1476] sm:$0xff]
        %v1478 = vld [vmem:[%s1476 + $0x8] sm:$0xff]
        %v1480 = vsel %vm1390, %v1477, 0
        %v1483 = vsel %vm1390, %v1478, 0
        %1485 = vmatprep.subr.mxu0 0.0
        %1486 = vmatpush1.msra.mxu0 0.0
        %1487 = vmatprep.subr.mxu0 0.0
        %1488 = vmatpush1.msra.mxu0 0.0
        %1489 = vmatprep.subr.mxu0 0.0
        %1490 = vmatpush1.msra.mxu0 0.0
        %1491 = vmatprep.subr.mxu0 0.0
        %1492 = vmatpush1.msra.mxu0 0.0
        %1493 = vmatprep.subr.mxu0 0.0
        %1494 = vmatpush1.msra.mxu0 0.0
        %1495 = vmatprep.subr.mxu0 0.0
        %1496 = vmatpush1.msra.mxu0 0.0
        %1497 = vmatprep.subr.mxu0 0.0
        %1498 = vmatpush1.msra.mxu0 0.0
        %1499 = vmatprep.subr.mxu0 0.0
        %1500 = vmatpush1.msra.mxu0 0.0
        %1501 = vmatprep.subr.mxu0 0.0
        %1502 = vmatpush1.msra.mxu0 0.0
        %1503 = vmatprep.subr.mxu0 0.0
        %1504 = vmatpush1.msra.mxu0 0.0
        %1505 = vmatprep.subr.mxu0 0.0
        %1506 = vmatpush1.msra.mxu0 0.0
        %1507 = vmatprep.subr.mxu0 0.0
        %1508 = vmatpush1.msra.mxu0 0.0
        %1509 = vmatprep.subr.mxu0 0.0
        %1510 = vmatpush1.msra.mxu0 %v1387
        %1511 = vmatprep.subr.mxu0 0.0
        %1512 = vmatpush1.msra.mxu0 %v1386
        %1513 = vmatprep.subr.mxu0 0.0
        %1514 = vmatpush1.msra.mxu0 %v1385
        %1515 = vmatprep.subr.mxu0 0.0
        %1516 = vmatpush1.msra.mxu0 %v1384
        %1517 = vmatprep.subr.mxu0 0.0
        %1518 = vmatpush2.msra.mxu0 0.0
        %1519 = vmatprep.subr.mxu0 0.0
        %1520 = vmatpush2.msra.mxu0 0.0
        %1521 = vmatprep.subr.mxu0 0.0
        %1522 = vmatpush2.msra.mxu0 0.0
        %1523 = vmatprep.subr.mxu0 0.0
        %1524 = vmatpush2.msra.mxu0 0.0
        %1525 = vmatprep.subr.mxu0 0.0
        %1526 = vmatpush2.msra.mxu0 0.0
        %1527 = vmatprep.subr.mxu0 0.0
        %1528 = vmatpush2.msra.mxu0 0.0
        %1529 = vmatprep.subr.mxu0 0.0
        %1530 = vmatpush2.msra.mxu0 0.0
        %1531 = vmatprep.subr.mxu0 0.0
        %1532 = vmatpush2.msra.mxu0 0.0
        %1533 = vmatprep.subr.mxu0 0.0
        %1534 = vmatpush2.msra.mxu0 0.0
        %1535 = vmatprep.subr.mxu0 0.0
        %1536 = vmatpush2.msra.mxu0 0.0
        %1537 = vmatprep.subr.mxu0 0.0
        %1538 = vmatpush2.msra.mxu0 0.0
        %1539 = vmatprep.subr.mxu0 0.0
        %1540 = vmatpush2.msra.mxu0 0.0
        %1541 = vmatprep.subr.mxu0 0.0
        %1542 = vmatpush2.msra.mxu0 0.0
        %1543 = vmatprep.subr.mxu0 0.0
        %1544 = vmatpush2.msra.mxu0 0.0
        %1545 = vmatprep.subr.mxu0 0.0
        %1546 = vmatpush2.msra.mxu0 0.0
        %1547 = vmatprep.subr.mxu0 0.0
        %1548 = vmatpush2.msra.mxu0 0.0
        %1549 = vmatprep.mubr.f32.mxu0 0.0
        %1550 = vmatmul.mubr.f32.gmra.mxu0 %v1480
        %v1551 = vpop.f32.mrf.mxu0
        %v1552 = vadd.f32 0.0, %v1551
        %v1553 = vpop.f32.mrf.mxu0
        %1554 = vmatprep.mubr.f32.mxu0 0.0
        %1555 = vmatmul.mubr.f32.gmra.mxu0 %v1483
        %v1556 = vpop.f32.mrf.mxu0
        %v1557 = vadd.f32 0.0, %v1556
        %v1558 = vpop.f32.mrf.mxu0
        %1559 = vdwg.mxu0
        %s1560 = scalar_lea.vmem %s5, 32
        %v1561 = vld [vmem:[%s1560] sm:$0xff]
        %v1562 = vld [vmem:[%s1560 + $0x8] sm:$0xff]
        %v1563 = vld [vmem:[%s1560 + $0x10] sm:$0xff]
        %v1564 = vld [vmem:[%s1560 + $0x18] sm:$0xff]
        %v1566 = vsel %vm1390, %v1552, 0
        %v1569 = vsel %vm1390, %v1557, 0
        %1571 = vmatprep.subr.mxu0 0.0
        %1572 = vmatpush1.msra.mxu0 0.0
        %1573 = vmatprep.subr.mxu0 0.0
        %1574 = vmatpush1.msra.mxu0 0.0
        %1575 = vmatprep.subr.mxu0 0.0
        %1576 = vmatpush1.msra.mxu0 0.0
        %1577 = vmatprep.subr.mxu0 0.0
        %1578 = vmatpush1.msra.mxu0 0.0
        %1579 = vmatprep.subr.mxu0 0.0
        %1580 = vmatpush1.msra.mxu0 0.0
        %1581 = vmatprep.subr.mxu0 0.0
        %1582 = vmatpush1.msra.mxu0 0.0
        %1583 = vmatprep.subr.mxu0 0.0
        %1584 = vmatpush1.msra.mxu0 0.0
        %1585 = vmatprep.subr.mxu0 0.0
        %1586 = vmatpush1.msra.mxu0 0.0
        %1587 = vmatprep.subr.mxu0 0.0
        %1588 = vmatpush1.msra.mxu0 0.0
        %1589 = vmatprep.subr.mxu0 0.0
        %1590 = vmatpush1.msra.mxu0 0.0
        %1591 = vmatprep.subr.mxu0 0.0
        %1592 = vmatpush1.msra.mxu0 0.0
        %1593 = vmatprep.subr.mxu0 0.0
        %1594 = vmatpush1.msra.mxu0 0.0
        %1595 = vmatprep.subr.mxu0 0.0
        %1596 = vmatpush1.msra.mxu0 %v1564
        %1597 = vmatprep.subr.mxu0 0.0
        %1598 = vmatpush1.msra.mxu0 %v1563
        %1599 = vmatprep.subr.mxu0 0.0
        %1600 = vmatpush1.msra.mxu0 %v1562
        %1601 = vmatprep.subr.mxu0 0.0
        %1602 = vmatpush1.msra.mxu0 %v1561
        %1603 = vmatprep.subr.mxu0 0.0
        %1604 = vmatpush2.msra.mxu0 0.0
        %1605 = vmatprep.subr.mxu0 0.0
        %1606 = vmatpush2.msra.mxu0 0.0
        %1607 = vmatprep.subr.mxu0 0.0
        %1608 = vmatpush2.msra.mxu0 0.0
        %1609 = vmatprep.subr.mxu0 0.0
        %1610 = vmatpush2.msra.mxu0 0.0
        %1611 = vmatprep.subr.mxu0 0.0
        %1612 = vmatpush2.msra.mxu0 0.0
        %1613 = vmatprep.subr.mxu0 0.0
        %1614 = vmatpush2.msra.mxu0 0.0
        %1615 = vmatprep.subr.mxu0 0.0
        %1616 = vmatpush2.msra.mxu0 0.0
        %1617 = vmatprep.subr.mxu0 0.0
        %1618 = vmatpush2.msra.mxu0 0.0
        %1619 = vmatprep.subr.mxu0 0.0
        %1620 = vmatpush2.msra.mxu0 0.0
        %1621 = vmatprep.subr.mxu0 0.0
        %1622 = vmatpush2.msra.mxu0 0.0
        %1623 = vmatprep.subr.mxu0 0.0
        %1624 = vmatpush2.msra.mxu0 0.0
        %1625 = vmatprep.subr.mxu0 0.0
        %1626 = vmatpush2.msra.mxu0 0.0
        %1627 = vmatprep.subr.mxu0 0.0
        %1628 = vmatpush2.msra.mxu0 0.0
        %1629 = vmatprep.subr.mxu0 0.0
        %1630 = vmatpush2.msra.mxu0 0.0
        %1631 = vmatprep.subr.mxu0 0.0
        %1632 = vmatpush2.msra.mxu0 0.0
        %1633 = vmatprep.subr.mxu0 0.0
        %1634 = vmatpush2.msra.mxu0 0.0
        %1635 = vmatprep.mubr.f32.mxu0 0.0
        %1636 = vmatmul.mubr.f32.gmra.mxu0 %v1566
        %v1637 = vpop.f32.mrf.mxu0
        %v1638 = vadd.f32 0.0, %v1637
        %v1639 = vpop.f32.mrf.mxu0
        %1640 = vmatprep.mubr.f32.mxu0 0.0
        %1641 = vmatmul.mubr.f32.gmra.mxu0 %v1569
        %v1642 = vpop.f32.mrf.mxu0
        %v1643 = vadd.f32 0.0, %v1642
        %v1644 = vpop.f32.mrf.mxu0
        %1645 = vdwg.mxu0
        %v1647 = vsel %vm1390, %v1464, 0
        %v1650 = vsel %vm1390, %v1469, 0
        %1652 = vmatprep.subr.mxu0 0.0
        %1653 = vmatpush1.msra.mxu0 0.0
        %1654 = vmatprep.subr.mxu0 0.0
        %1655 = vmatpush1.msra.mxu0 0.0
        %1656 = vmatprep.subr.mxu0 0.0
        %1657 = vmatpush1.msra.mxu0 0.0
        %1658 = vmatprep.subr.mxu0 0.0
        %1659 = vmatpush1.msra.mxu0 0.0
        %1660 = vmatprep.subr.mxu0 0.0
        %1661 = vmatpush1.msra.mxu0 0.0
        %1662 = vmatprep.subr.mxu0 0.0
        %1663 = vmatpush1.msra.mxu0 0.0
        %1664 = vmatprep.subr.mxu0 0.0
        %1665 = vmatpush1.msra.mxu0 0.0
        %1666 = vmatprep.subr.mxu0 0.0
        %1667 = vmatpush1.msra.mxu0 0.0
        %1668 = vmatprep.subr.mxu0 0.0
        %1669 = vmatpush1.msra.mxu0 0.0
        %1670 = vmatprep.subr.mxu0 0.0
        %1671 = vmatpush1.msra.mxu0 0.0
        %1672 = vmatprep.subr.mxu0 0.0
        %1673 = vmatpush1.msra.mxu0 0.0
        %1674 = vmatprep.subr.mxu0 0.0
        %1675 = vmatpush1.msra.mxu0 0.0
        %1676 = vmatprep.subr.mxu0 0.0
        %1677 = vmatpush1.msra.mxu0 %v1475
        %1678 = vmatprep.subr.mxu0 0.0
        %1679 = vmatpush1.msra.mxu0 %v1474
        %1680 = vmatprep.subr.mxu0 0.0
        %1681 = vmatpush1.msra.mxu0 %v1473
        %1682 = vmatprep.subr.mxu0 0.0
        %1683 = vmatpush1.msra.mxu0 %v1472
        %1684 = vmatprep.subr.mxu0 0.0
        %1685 = vmatpush2.msra.mxu0 0.0
        %1686 = vmatprep.subr.mxu0 0.0
        %1687 = vmatpush2.msra.mxu0 0.0
        %1688 = vmatprep.subr.mxu0 0.0
        %1689 = vmatpush2.msra.mxu0 0.0
        %1690 = vmatprep.subr.mxu0 0.0
        %1691 = vmatpush2.msra.mxu0 0.0
        %1692 = vmatprep.subr.mxu0 0.0
        %1693 = vmatpush2.msra.mxu0 0.0
        %1694 = vmatprep.subr.mxu0 0.0
        %1695 = vmatpush2.msra.mxu0 0.0
        %1696 = vmatprep.subr.mxu0 0.0
        %1697 = vmatpush2.msra.mxu0 0.0
        %1698 = vmatprep.subr.mxu0 0.0
        %1699 = vmatpush2.msra.mxu0 0.0
        %1700 = vmatprep.subr.mxu0 0.0
        %1701 = vmatpush2.msra.mxu0 0.0
        %1702 = vmatprep.subr.mxu0 0.0
        %1703 = vmatpush2.msra.mxu0 0.0
        %1704 = vmatprep.subr.mxu0 0.0
        %1705 = vmatpush2.msra.mxu0 0.0
        %1706 = vmatprep.subr.mxu0 0.0
        %1707 = vmatpush2.msra.mxu0 0.0
        %1708 = vmatprep.subr.mxu0 0.0
        %1709 = vmatpush2.msra.mxu0 0.0
        %1710 = vmatprep.subr.mxu0 0.0
        %1711 = vmatpush2.msra.mxu0 0.0
        %1712 = vmatprep.subr.mxu0 0.0
        %1713 = vmatpush2.msra.mxu0 0.0
        %1714 = vmatprep.subr.mxu0 0.0
        %1715 = vmatpush2.msra.mxu0 0.0
        %1716 = vmatprep.mubr.f32.mxu0 0.0
        %1717 = vmatmul.mubr.f32.gmra.mxu0 %v1647
        %v1718 = vpop.f32.mrf.mxu0
        %v1719 = vadd.f32 %v1638, %v1718
        %v1720 = vpop.f32.mrf.mxu0
        %1721 = vmatprep.mubr.f32.mxu0 0.0
        %1722 = vmatmul.mubr.f32.gmra.mxu0 %v1650
        %v1723 = vpop.f32.mrf.mxu0
        %v1724 = vadd.f32 %v1643, %v1723
        %v1725 = vpop.f32.mrf.mxu0
        %1726 = vdwg.mxu0
        %s1727 = scalar_lea.vmem %s2, 32
        %v1728 = vld [vmem:[%s1727] sm:$0xff]
        %v1729 = vld [vmem:[%s1727 + $0x8] sm:$0xff]
        %v1731 = vsel %vm1390, %v1728, 0
        %v1734 = vsel %vm1390, %v1729, 0
        %1736 = vmatprep.subr.mxu0 0.0
        %1737 = vmatpush1.msra.mxu0 0.0
        %1738 = vmatprep.subr.mxu0 0.0
        %1739 = vmatpush1.msra.mxu0 0.0
        %1740 = vmatprep.subr.mxu0 0.0
        %1741 = vmatpush1.msra.mxu0 0.0
        %1742 = vmatprep.subr.mxu0 0.0
        %1743 = vmatpush1.msra.mxu0 0.0
        %1744 = vmatprep.subr.mxu0 0.0
        %1745 = vmatpush1.msra.mxu0 0.0
        %1746 = vmatprep.subr.mxu0 0.0
        %1747 = vmatpush1.msra.mxu0 0.0
        %1748 = vmatprep.subr.mxu0 0.0
        %1749 = vmatpush1.msra.mxu0 0.0
        %1750 = vmatprep.subr.mxu0 0.0
        %1751 = vmatpush1.msra.mxu0 0.0
        %1752 = vmatprep.subr.mxu0 0.0
        %1753 = vmatpush1.msra.mxu0 0.0
        %1754 = vmatprep.subr.mxu0 0.0
        %1755 = vmatpush1.msra.mxu0 0.0
        %1756 = vmatprep.subr.mxu0 0.0
        %1757 = vmatpush1.msra.mxu0 0.0
        %1758 = vmatprep.subr.mxu0 0.0
        %1759 = vmatpush1.msra.mxu0 0.0
        %1760 = vmatprep.subr.mxu0 0.0
        %1761 = vmatpush1.msra.mxu0 %v1387
        %1762 = vmatprep.subr.mxu0 0.0
        %1763 = vmatpush1.msra.mxu0 %v1386
        %1764 = vmatprep.subr.mxu0 0.0
        %1765 = vmatpush1.msra.mxu0 %v1385
        %1766 = vmatprep.subr.mxu0 0.0
        %1767 = vmatpush1.msra.mxu0 %v1384
        %1768 = vmatprep.subr.mxu0 0.0
        %1769 = vmatpush2.msra.mxu0 0.0
        %1770 = vmatprep.subr.mxu0 0.0
        %1771 = vmatpush2.msra.mxu0 0.0
        %1772 = vmatprep.subr.mxu0 0.0
        %1773 = vmatpush2.msra.mxu0 0.0
        %1774 = vmatprep.subr.mxu0 0.0
        %1775 = vmatpush2.msra.mxu0 0.0
        %1776 = vmatprep.subr.mxu0 0.0
        %1777 = vmatpush2.msra.mxu0 0.0
        %1778 = vmatprep.subr.mxu0 0.0
        %1779 = vmatpush2.msra.mxu0 0.0
        %1780 = vmatprep.subr.mxu0 0.0
        %1781 = vmatpush2.msra.mxu0 0.0
        %1782 = vmatprep.subr.mxu0 0.0
        %1783 = vmatpush2.msra.mxu0 0.0
        %1784 = vmatprep.subr.mxu0 0.0
        %1785 = vmatpush2.msra.mxu0 0.0
        %1786 = vmatprep.subr.mxu0 0.0
        %1787 = vmatpush2.msra.mxu0 0.0
        %1788 = vmatprep.subr.mxu0 0.0
        %1789 = vmatpush2.msra.mxu0 0.0
        %1790 = vmatprep.subr.mxu0 0.0
        %1791 = vmatpush2.msra.mxu0 0.0
        %1792 = vmatprep.subr.mxu0 0.0
        %1793 = vmatpush2.msra.mxu0 0.0
        %1794 = vmatprep.subr.mxu0 0.0
        %1795 = vmatpush2.msra.mxu0 0.0
        %1796 = vmatprep.subr.mxu0 0.0
        %1797 = vmatpush2.msra.mxu0 0.0
        %1798 = vmatprep.subr.mxu0 0.0
        %1799 = vmatpush2.msra.mxu0 0.0
        %1800 = vmatprep.mubr.f32.mxu0 0.0
        %1801 = vmatmul.mubr.f32.gmra.mxu0 %v1731
        %v1802 = vpop.f32.mrf.mxu0
        %v1803 = vadd.f32 0.0, %v1802
        %v1804 = vpop.f32.mrf.mxu0
        %1805 = vmatprep.mubr.f32.mxu0 0.0
        %1806 = vmatmul.mubr.f32.gmra.mxu0 %v1734
        %v1807 = vpop.f32.mrf.mxu0
        %v1808 = vadd.f32 0.0, %v1807
        %v1809 = vpop.f32.mrf.mxu0
        %1810 = vdwg.mxu0
        %s1811 = scalar_lea.vmem %s5, 64
        %v1812 = vld [vmem:[%s1811] sm:$0xff]
        %v1813 = vld [vmem:[%s1811 + $0x8] sm:$0xff]
        %v1814 = vld [vmem:[%s1811 + $0x10] sm:$0xff]
        %v1815 = vld [vmem:[%s1811 + $0x18] sm:$0xff]
        %v1817 = vsel %vm1390, %v1803, 0
        %v1820 = vsel %vm1390, %v1808, 0
        %1822 = vmatprep.subr.mxu0 0.0
        %1823 = vmatpush1.msra.mxu0 0.0
        %1824 = vmatprep.subr.mxu0 0.0
        %1825 = vmatpush1.msra.mxu0 0.0
        %1826 = vmatprep.subr.mxu0 0.0
        %1827 = vmatpush1.msra.mxu0 0.0
        %1828 = vmatprep.subr.mxu0 0.0
        %1829 = vmatpush1.msra.mxu0 0.0
        %1830 = vmatprep.subr.mxu0 0.0
        %1831 = vmatpush1.msra.mxu0 0.0
        %1832 = vmatprep.subr.mxu0 0.0
        %1833 = vmatpush1.msra.mxu0 0.0
        %1834 = vmatprep.subr.mxu0 0.0
        %1835 = vmatpush1.msra.mxu0 0.0
        %1836 = vmatprep.subr.mxu0 0.0
        %1837 = vmatpush1.msra.mxu0 0.0
        %1838 = vmatprep.subr.mxu0 0.0
        %1839 = vmatpush1.msra.mxu0 0.0
        %1840 = vmatprep.subr.mxu0 0.0
        %1841 = vmatpush1.msra.mxu0 0.0
        %1842 = vmatprep.subr.mxu0 0.0
        %1843 = vmatpush1.msra.mxu0 0.0
        %1844 = vmatprep.subr.mxu0 0.0
        %1845 = vmatpush1.msra.mxu0 0.0
        %1846 = vmatprep.subr.mxu0 0.0
        %1847 = vmatpush1.msra.mxu0 %v1815
        %1848 = vmatprep.subr.mxu0 0.0
        %1849 = vmatpush1.msra.mxu0 %v1814
        %1850 = vmatprep.subr.mxu0 0.0
        %1851 = vmatpush1.msra.mxu0 %v1813
        %1852 = vmatprep.subr.mxu0 0.0
        %1853 = vmatpush1.msra.mxu0 %v1812
        %1854 = vmatprep.subr.mxu0 0.0
        %1855 = vmatpush2.msra.mxu0 0.0
        %1856 = vmatprep.subr.mxu0 0.0
        %1857 = vmatpush2.msra.mxu0 0.0
        %1858 = vmatprep.subr.mxu0 0.0
        %1859 = vmatpush2.msra.mxu0 0.0
        %1860 = vmatprep.subr.mxu0 0.0
        %1861 = vmatpush2.msra.mxu0 0.0
        %1862 = vmatprep.subr.mxu0 0.0
        %1863 = vmatpush2.msra.mxu0 0.0
        %1864 = vmatprep.subr.mxu0 0.0
        %1865 = vmatpush2.msra.mxu0 0.0
        %1866 = vmatprep.subr.mxu0 0.0
        %1867 = vmatpush2.msra.mxu0 0.0
        %1868 = vmatprep.subr.mxu0 0.0
        %1869 = vmatpush2.msra.mxu0 0.0
        %1870 = vmatprep.subr.mxu0 0.0
        %1871 = vmatpush2.msra.mxu0 0.0
        %1872 = vmatprep.subr.mxu0 0.0
        %1873 = vmatpush2.msra.mxu0 0.0
        %1874 = vmatprep.subr.mxu0 0.0
        %1875 = vmatpush2.msra.mxu0 0.0
        %1876 = vmatprep.subr.mxu0 0.0
        %1877 = vmatpush2.msra.mxu0 0.0
        %1878 = vmatprep.subr.mxu0 0.0
        %1879 = vmatpush2.msra.mxu0 0.0
        %1880 = vmatprep.subr.mxu0 0.0
        %1881 = vmatpush2.msra.mxu0 0.0
        %1882 = vmatprep.subr.mxu0 0.0
        %1883 = vmatpush2.msra.mxu0 0.0
        %1884 = vmatprep.subr.mxu0 0.0
        %1885 = vmatpush2.msra.mxu0 0.0
        %1886 = vmatprep.mubr.f32.mxu0 0.0
        %1887 = vmatmul.mubr.f32.gmra.mxu0 %v1817
        %v1888 = vpop.f32.mrf.mxu0
        %v1889 = vadd.f32 0.0, %v1888
        %v1890 = vpop.f32.mrf.mxu0
        %1891 = vmatprep.mubr.f32.mxu0 0.0
        %1892 = vmatmul.mubr.f32.gmra.mxu0 %v1820
        %v1893 = vpop.f32.mrf.mxu0
        %v1894 = vadd.f32 0.0, %v1893
        %v1895 = vpop.f32.mrf.mxu0
        %1896 = vdwg.mxu0
        %v1897 = vadd.f32 %v1719, %v1889
        %v1898 = vadd.f32 %v1724, %v1894
        %s1899 = scalar_lea.vmem %s2, 48
        %v1900 = vld [vmem:[%s1899] sm:$0xff]
        %v1901 = vld [vmem:[%s1899 + $0x8] sm:$0xff]
        %v1903 = vsel %vm1390, %v1900, 0
        %v1906 = vsel %vm1390, %v1901, 0
        %1908 = vmatprep.subr.mxu0 0.0
        %1909 = vmatpush1.msra.mxu0 0.0
        %1910 = vmatprep.subr.mxu0 0.0
        %1911 = vmatpush1.msra.mxu0 0.0
        %1912 = vmatprep.subr.mxu0 0.0
        %1913 = vmatpush1.msra.mxu0 0.0
        %1914 = vmatprep.subr.mxu0 0.0
        %1915 = vmatpush1.msra.mxu0 0.0
        %1916 = vmatprep.subr.mxu0 0.0
        %1917 = vmatpush1.msra.mxu0 0.0
        %1918 = vmatprep.subr.mxu0 0.0
        %1919 = vmatpush1.msra.mxu0 0.0
        %1920 = vmatprep.subr.mxu0 0.0
        %1921 = vmatpush1.msra.mxu0 0.0
        %1922 = vmatprep.subr.mxu0 0.0
        %1923 = vmatpush1.msra.mxu0 0.0
        %1924 = vmatprep.subr.mxu0 0.0
        %1925 = vmatpush1.msra.mxu0 0.0
        %1926 = vmatprep.subr.mxu0 0.0
        %1927 = vmatpush1.msra.mxu0 0.0
        %1928 = vmatprep.subr.mxu0 0.0
        %1929 = vmatpush1.msra.mxu0 0.0
        %1930 = vmatprep.subr.mxu0 0.0
        %1931 = vmatpush1.msra.mxu0 0.0
        %1932 = vmatprep.subr.mxu0 0.0
        %1933 = vmatpush1.msra.mxu0 %v1387
        %1934 = vmatprep.subr.mxu0 0.0
        %1935 = vmatpush1.msra.mxu0 %v1386
        %1936 = vmatprep.subr.mxu0 0.0
        %1937 = vmatpush1.msra.mxu0 %v1385
        %1938 = vmatprep.subr.mxu0 0.0
        %1939 = vmatpush1.msra.mxu0 %v1384
        %1940 = vmatprep.subr.mxu0 0.0
        %1941 = vmatpush2.msra.mxu0 0.0
        %1942 = vmatprep.subr.mxu0 0.0
        %1943 = vmatpush2.msra.mxu0 0.0
        %1944 = vmatprep.subr.mxu0 0.0
        %1945 = vmatpush2.msra.mxu0 0.0
        %1946 = vmatprep.subr.mxu0 0.0
        %1947 = vmatpush2.msra.mxu0 0.0
        %1948 = vmatprep.subr.mxu0 0.0
        %1949 = vmatpush2.msra.mxu0 0.0
        %1950 = vmatprep.subr.mxu0 0.0
        %1951 = vmatpush2.msra.mxu0 0.0
        %1952 = vmatprep.subr.mxu0 0.0
        %1953 = vmatpush2.msra.mxu0 0.0
        %1954 = vmatprep.subr.mxu0 0.0
        %1955 = vmatpush2.msra.mxu0 0.0
        %1956 = vmatprep.subr.mxu0 0.0
        %1957 = vmatpush2.msra.mxu0 0.0
        %1958 = vmatprep.subr.mxu0 0.0
        %1959 = vmatpush2.msra.mxu0 0.0
        %1960 = vmatprep.subr.mxu0 0.0
        %1961 = vmatpush2.msra.mxu0 0.0
        %1962 = vmatprep.subr.mxu0 0.0
        %1963 = vmatpush2.msra.mxu0 0.0
        %1964 = vmatprep.subr.mxu0 0.0
        %1965 = vmatpush2.msra.mxu0 0.0
        %1966 = vmatprep.subr.mxu0 0.0
        %1967 = vmatpush2.msra.mxu0 0.0
        %1968 = vmatprep.subr.mxu0 0.0
        %1969 = vmatpush2.msra.mxu0 0.0
        %1970 = vmatprep.subr.mxu0 0.0
        %1971 = vmatpush2.msra.mxu0 0.0
        %1972 = vmatprep.mubr.f32.mxu0 0.0
        %1973 = vmatmul.mubr.f32.gmra.mxu0 %v1903
        %v1974 = vpop.f32.mrf.mxu0
        %v1975 = vadd.f32 0.0, %v1974
        %v1976 = vpop.f32.mrf.mxu0
        %1977 = vmatprep.mubr.f32.mxu0 0.0
        %1978 = vmatmul.mubr.f32.gmra.mxu0 %v1906
        %v1979 = vpop.f32.mrf.mxu0
        %v1980 = vadd.f32 0.0, %v1979
        %v1981 = vpop.f32.mrf.mxu0
        %1982 = vdwg.mxu0
        %s1983 = scalar_lea.vmem %s5, 96
        %v1984 = vld [vmem:[%s1983] sm:$0xff]
        %v1985 = vld [vmem:[%s1983 + $0x8] sm:$0xff]
        %v1986 = vld [vmem:[%s1983 + $0x10] sm:$0xff]
        %v1987 = vld [vmem:[%s1983 + $0x18] sm:$0xff]
        %v1989 = vsel %vm1390, %v1975, 0
        %v1992 = vsel %vm1390, %v1980, 0
        %1994 = vmatprep.subr.mxu0 0.0
        %1995 = vmatpush1.msra.mxu0 0.0
        %1996 = vmatprep.subr.mxu0 0.0
        %1997 = vmatpush1.msra.mxu0 0.0
        %1998 = vmatprep.subr.mxu0 0.0
        %1999 = vmatpush1.msra.mxu0 0.0
        %2000 = vmatprep.subr.mxu0 0.0
        %2001 = vmatpush1.msra.mxu0 0.0
        %2002 = vmatprep.subr.mxu0 0.0
        %2003 = vmatpush1.msra.mxu0 0.0
        %2004 = vmatprep.subr.mxu0 0.0
        %2005 = vmatpush1.msra.mxu0 0.0
        %2006 = vmatprep.subr.mxu0 0.0
        %2007 = vmatpush1.msra.mxu0 0.0
        %2008 = vmatprep.subr.mxu0 0.0
        %2009 = vmatpush1.msra.mxu0 0.0
        %2010 = vmatprep.subr.mxu0 0.0
        %2011 = vmatpush1.msra.mxu0 0.0
        %2012 = vmatprep.subr.mxu0 0.0
        %2013 = vmatpush1.msra.mxu0 0.0
        %2014 = vmatprep.subr.mxu0 0.0
        %2015 = vmatpush1.msra.mxu0 0.0
        %2016 = vmatprep.subr.mxu0 0.0
        %2017 = vmatpush1.msra.mxu0 0.0
        %2018 = vmatprep.subr.mxu0 0.0
        %2019 = vmatpush1.msra.mxu0 %v1987
        %2020 = vmatprep.subr.mxu0 0.0
        %2021 = vmatpush1.msra.mxu0 %v1986
        %2022 = vmatprep.subr.mxu0 0.0
        %2023 = vmatpush1.msra.mxu0 %v1985
        %2024 = vmatprep.subr.mxu0 0.0
        %2025 = vmatpush1.msra.mxu0 %v1984
        %2026 = vmatprep.subr.mxu0 0.0
        %2027 = vmatpush2.msra.mxu0 0.0
        %2028 = vmatprep.subr.mxu0 0.0
        %2029 = vmatpush2.msra.mxu0 0.0
        %2030 = vmatprep.subr.mxu0 0.0
        %2031 = vmatpush2.msra.mxu0 0.0
        %2032 = vmatprep.subr.mxu0 0.0
        %2033 = vmatpush2.msra.mxu0 0.0
        %2034 = vmatprep.subr.mxu0 0.0
        %2035 = vmatpush2.msra.mxu0 0.0
        %2036 = vmatprep.subr.mxu0 0.0
        %2037 = vmatpush2.msra.mxu0 0.0
        %2038 = vmatprep.subr.mxu0 0.0
        %2039 = vmatpush2.msra.mxu0 0.0
        %2040 = vmatprep.subr.mxu0 0.0
        %2041 = vmatpush2.msra.mxu0 0.0
        %2042 = vmatprep.subr.mxu0 0.0
        %2043 = vmatpush2.msra.mxu0 0.0
        %2044 = vmatprep.subr.mxu0 0.0
        %2045 = vmatpush2.msra.mxu0 0.0
        %2046 = vmatprep.subr.mxu0 0.0
        %2047 = vmatpush2.msra.mxu0 0.0
        %2048 = vmatprep.subr.mxu0 0.0
        %2049 = vmatpush2.msra.mxu0 0.0
        %2050 = vmatprep.subr.mxu0 0.0
        %2051 = vmatpush2.msra.mxu0 0.0
        %2052 = vmatprep.subr.mxu0 0.0
        %2053 = vmatpush2.msra.mxu0 0.0
        %2054 = vmatprep.subr.mxu0 0.0
        %2055 = vmatpush2.msra.mxu0 0.0
        %2056 = vmatprep.subr.mxu0 0.0
        %2057 = vmatpush2.msra.mxu0 0.0
        %2058 = vmatprep.mubr.f32.mxu0 0.0
        %2059 = vmatmul.mubr.f32.gmra.mxu0 %v1989
        %v2060 = vpop.f32.mrf.mxu0
        %v2061 = vadd.f32 0.0, %v2060
        %v2062 = vpop.f32.mrf.mxu0
        %2063 = vmatprep.mubr.f32.mxu0 0.0
        %2064 = vmatmul.mubr.f32.gmra.mxu0 %v1992
        %v2065 = vpop.f32.mrf.mxu0
        %v2066 = vadd.f32 0.0, %v2065
        %v2067 = vpop.f32.mrf.mxu0
        %2068 = vdwg.mxu0
        %v2069 = vadd.f32 %v1897, %v2061
        %v2070 = vadd.f32 %v1898, %v2066
        %s2071 = scalar_lea.vmem %s2, 64
        %v2072 = vld [vmem:[%s2071] sm:$0xff]
        %v2073 = vld [vmem:[%s2071 + $0x8] sm:$0xff]
        %v2075 = vsel %vm1390, %v2072, 0
        %v2078 = vsel %vm1390, %v2073, 0
        %2080 = vmatprep.subr.mxu0 0.0
        %2081 = vmatpush1.msra.mxu0 0.0
        %2082 = vmatprep.subr.mxu0 0.0
        %2083 = vmatpush1.msra.mxu0 0.0
        %2084 = vmatprep.subr.mxu0 0.0
        %2085 = vmatpush1.msra.mxu0 0.0
        %2086 = vmatprep.subr.mxu0 0.0
        %2087 = vmatpush1.msra.mxu0 0.0
        %2088 = vmatprep.subr.mxu0 0.0
        %2089 = vmatpush1.msra.mxu0 0.0
        %2090 = vmatprep.subr.mxu0 0.0
        %2091 = vmatpush1.msra.mxu0 0.0
        %2092 = vmatprep.subr.mxu0 0.0
        %2093 = vmatpush1.msra.mxu0 0.0
        %2094 = vmatprep.subr.mxu0 0.0
        %2095 = vmatpush1.msra.mxu0 0.0
        %2096 = vmatprep.subr.mxu0 0.0
        %2097 = vmatpush1.msra.mxu0 0.0
        %2098 = vmatprep.subr.mxu0 0.0
        %2099 = vmatpush1.msra.mxu0 0.0
        %2100 = vmatprep.subr.mxu0 0.0
        %2101 = vmatpush1.msra.mxu0 0.0
        %2102 = vmatprep.subr.mxu0 0.0
        %2103 = vmatpush1.msra.mxu0 0.0
        %2104 = vmatprep.subr.mxu0 0.0
        %2105 = vmatpush1.msra.mxu0 %v1387
        %2106 = vmatprep.subr.mxu0 0.0
        %2107 = vmatpush1.msra.mxu0 %v1386
        %2108 = vmatprep.subr.mxu0 0.0
        %2109 = vmatpush1.msra.mxu0 %v1385
        %2110 = vmatprep.subr.mxu0 0.0
        %2111 = vmatpush1.msra.mxu0 %v1384
        %2112 = vmatprep.subr.mxu0 0.0
        %2113 = vmatpush2.msra.mxu0 0.0
        %2114 = vmatprep.subr.mxu0 0.0
        %2115 = vmatpush2.msra.mxu0 0.0
        %2116 = vmatprep.subr.mxu0 0.0
        %2117 = vmatpush2.msra.mxu0 0.0
        %2118 = vmatprep.subr.mxu0 0.0
        %2119 = vmatpush2.msra.mxu0 0.0
        %2120 = vmatprep.subr.mxu0 0.0
        %2121 = vmatpush2.msra.mxu0 0.0
        %2122 = vmatprep.subr.mxu0 0.0
        %2123 = vmatpush2.msra.mxu0 0.0
        %2124 = vmatprep.subr.mxu0 0.0
        %2125 = vmatpush2.msra.mxu0 0.0
        %2126 = vmatprep.subr.mxu0 0.0
        %2127 = vmatpush2.msra.mxu0 0.0
        %2128 = vmatprep.subr.mxu0 0.0
        %2129 = vmatpush2.msra.mxu0 0.0
        %2130 = vmatprep.subr.mxu0 0.0
        %2131 = vmatpush2.msra.mxu0 0.0
        %2132 = vmatprep.subr.mxu0 0.0
        %2133 = vmatpush2.msra.mxu0 0.0
        %2134 = vmatprep.subr.mxu0 0.0
        %2135 = vmatpush2.msra.mxu0 0.0
        %2136 = vmatprep.subr.mxu0 0.0
        %2137 = vmatpush2.msra.mxu0 0.0
        %2138 = vmatprep.subr.mxu0 0.0
        %2139 = vmatpush2.msra.mxu0 0.0
        %2140 = vmatprep.subr.mxu0 0.0
        %2141 = vmatpush2.msra.mxu0 0.0
        %2142 = vmatprep.subr.mxu0 0.0
        %2143 = vmatpush2.msra.mxu0 0.0
        %2144 = vmatprep.mubr.f32.mxu0 0.0
        %2145 = vmatmul.mubr.f32.gmra.mxu0 %v2075
        %v2146 = vpop.f32.mrf.mxu0
        %v2147 = vadd.f32 0.0, %v2146
        %v2148 = vpop.f32.mrf.mxu0
        %2149 = vmatprep.mubr.f32.mxu0 0.0
        %2150 = vmatmul.mubr.f32.gmra.mxu0 %v2078
        %v2151 = vpop.f32.mrf.mxu0
        %v2152 = vadd.f32 0.0, %v2151
        %v2153 = vpop.f32.mrf.mxu0
        %2154 = vdwg.mxu0
        %s2155 = scalar_lea.vmem %s5, 128
        %v2156 = vld [vmem:[%s2155] sm:$0xff]
        %v2157 = vld [vmem:[%s2155 + $0x8] sm:$0xff]
        %v2158 = vld [vmem:[%s2155 + $0x10] sm:$0xff]
        %v2159 = vld [vmem:[%s2155 + $0x18] sm:$0xff]
        %v2161 = vsel %vm1390, %v2147, 0
        %v2164 = vsel %vm1390, %v2152, 0
        %2166 = vmatprep.subr.mxu0 0.0
        %2167 = vmatpush1.msra.mxu0 0.0
        %2168 = vmatprep.subr.mxu0 0.0
        %2169 = vmatpush1.msra.mxu0 0.0
        %2170 = vmatprep.subr.mxu0 0.0
        %2171 = vmatpush1.msra.mxu0 0.0
        %2172 = vmatprep.subr.mxu0 0.0
        %2173 = vmatpush1.msra.mxu0 0.0
        %2174 = vmatprep.subr.mxu0 0.0
        %2175 = vmatpush1.msra.mxu0 0.0
        %2176 = vmatprep.subr.mxu0 0.0
        %2177 = vmatpush1.msra.mxu0 0.0
        %2178 = vmatprep.subr.mxu0 0.0
        %2179 = vmatpush1.msra.mxu0 0.0
        %2180 = vmatprep.subr.mxu0 0.0
        %2181 = vmatpush1.msra.mxu0 0.0
        %2182 = vmatprep.subr.mxu0 0.0
        %2183 = vmatpush1.msra.mxu0 0.0
        %2184 = vmatprep.subr.mxu0 0.0
        %2185 = vmatpush1.msra.mxu0 0.0
        %2186 = vmatprep.subr.mxu0 0.0
        %2187 = vmatpush1.msra.mxu0 0.0
        %2188 = vmatprep.subr.mxu0 0.0
        %2189 = vmatpush1.msra.mxu0 0.0
        %2190 = vmatprep.subr.mxu0 0.0
        %2191 = vmatpush1.msra.mxu0 %v2159
        %2192 = vmatprep.subr.mxu0 0.0
        %2193 = vmatpush1.msra.mxu0 %v2158
        %2194 = vmatprep.subr.mxu0 0.0
        %2195 = vmatpush1.msra.mxu0 %v2157
        %2196 = vmatprep.subr.mxu0 0.0
        %2197 = vmatpush1.msra.mxu0 %v2156
        %2198 = vmatprep.subr.mxu0 0.0
        %2199 = vmatpush2.msra.mxu0 0.0
        %2200 = vmatprep.subr.mxu0 0.0
        %2201 = vmatpush2.msra.mxu0 0.0
        %2202 = vmatprep.subr.mxu0 0.0
        %2203 = vmatpush2.msra.mxu0 0.0
        %2204 = vmatprep.subr.mxu0 0.0
        %2205 = vmatpush2.msra.mxu0 0.0
        %2206 = vmatprep.subr.mxu0 0.0
        %2207 = vmatpush2.msra.mxu0 0.0
        %2208 = vmatprep.subr.mxu0 0.0
        %2209 = vmatpush2.msra.mxu0 0.0
        %2210 = vmatprep.subr.mxu0 0.0
        %2211 = vmatpush2.msra.mxu0 0.0
        %2212 = vmatprep.subr.mxu0 0.0
        %2213 = vmatpush2.msra.mxu0 0.0
        %2214 = vmatprep.subr.mxu0 0.0
        %2215 = vmatpush2.msra.mxu0 0.0
        %2216 = vmatprep.subr.mxu0 0.0
        %2217 = vmatpush2.msra.mxu0 0.0
        %2218 = vmatprep.subr.mxu0 0.0
        %2219 = vmatpush2.msra.mxu0 0.0
        %2220 = vmatprep.subr.mxu0 0.0
        %2221 = vmatpush2.msra.mxu0 0.0
        %2222 = vmatprep.subr.mxu0 0.0
        %2223 = vmatpush2.msra.mxu0 0.0
        %2224 = vmatprep.subr.mxu0 0.0
        %2225 = vmatpush2.msra.mxu0 0.0
        %2226 = vmatprep.subr.mxu0 0.0
        %2227 = vmatpush2.msra.mxu0 0.0
        %2228 = vmatprep.subr.mxu0 0.0
        %2229 = vmatpush2.msra.mxu0 0.0
        %2230 = vmatprep.mubr.f32.mxu0 0.0
        %2231 = vmatmul.mubr.f32.gmra.mxu0 %v2161
        %v2232 = vpop.f32.mrf.mxu0
        %v2233 = vadd.f32 0.0, %v2232
        %v2234 = vpop.f32.mrf.mxu0
        %2235 = vmatprep.mubr.f32.mxu0 0.0
        %2236 = vmatmul.mubr.f32.gmra.mxu0 %v2164
        %v2237 = vpop.f32.mrf.mxu0
        %v2238 = vadd.f32 0.0, %v2237
        %v2239 = vpop.f32.mrf.mxu0
        %2240 = vdwg.mxu0
        %v2241 = vadd.f32 %v2069, %v2233
        %v2242 = vadd.f32 %v2070, %v2238
        %v2243 = vld [vmem:[%s7 + $0x1] sm:$0x1]
        %v2244 = vlaneseq
        %v2245 = vshrl.u32 %v2244, 7
        %v2246 = vsub.s32 0, %v2245
        %v2247 = vrot.slane %v2243, %v2246
        %v2248 = vadd.f32 %v2241, %v2247
        %v2249 = vadd.f32 %v2242, %v2247
        %v2250 = vmul.f32 %v2248, 0.5
        %v2251 = vmul.f32 %v2249, 0.5
        %v2252 = vmul.f32 %v2248, 0.70710677
        %v2253 = vmul.f32 %v2249, 0.70710677
        %v2254 = verf.f32.pop %v2252
        %v2255 = verf.f32.pop %v2253
        %v2256 = vadd.f32 %v2254, 1.0
        %v2257 = vadd.f32 %v2255, 1.0
        %v2258 = vmul.f32 %v2250, %v2256
        %v2259 = vmul.f32 %v2251, %v2257
        %v2260 = vld [vmem:[#allocation2] sm:$0xff]
        %vm2261 = vcmask 130048
        %v2263 = vsel %vm2261, %v2260, 0
        %2265 = vmatprep.subr.mxu0 0.0
        %2266 = vmatpush1.msra.mxu0 0.0
        %2267 = vmatprep.subr.mxu0 0.0
        %2268 = vmatpush1.msra.mxu0 0.0
        %2269 = vmatprep.subr.mxu0 0.0
        %2270 = vmatpush1.msra.mxu0 0.0
        %2271 = vmatprep.subr.mxu0 0.0
        %2272 = vmatpush1.msra.mxu0 0.0
        %2273 = vmatprep.subr.mxu0 0.0
        %2274 = vmatpush1.msra.mxu0 0.0
        %2275 = vmatprep.subr.mxu0 0.0
        %2276 = vmatpush1.msra.mxu0 0.0
        %2277 = vmatprep.subr.mxu0 0.0
        %2278 = vmatpush1.msra.mxu0 0.0
        %2279 = vmatprep.subr.mxu0 0.0
        %2280 = vmatpush1.msra.mxu0 0.0
        %2281 = vmatprep.subr.mxu0 0.0
        %2282 = vmatpush1.msra.mxu0 0.0
        %2283 = vmatprep.subr.mxu0 0.0
        %2284 = vmatpush1.msra.mxu0 0.0
        %2285 = vmatprep.subr.mxu0 0.0
        %2286 = vmatpush1.msra.mxu0 0.0
        %2287 = vmatprep.subr.mxu0 0.0
        %2288 = vmatpush1.msra.mxu0 0.0
        %2289 = vmatprep.subr.mxu0 0.0
        %2290 = vmatpush1.msra.mxu0 0.0
        %2291 = vmatprep.subr.mxu0 0.0
        %2292 = vmatpush1.msra.mxu0 0.0
        %2293 = vmatprep.subr.mxu0 0.0
        %2294 = vmatpush1.msra.mxu0 %v2259
        %2295 = vmatprep.subr.mxu0 0.0
        %2296 = vmatpush1.msra.mxu0 %v2258
        %2297 = vmatprep.subr.mxu0 0.0
        %2298 = vmatpush2.msra.mxu0 0.0
        %2299 = vmatprep.subr.mxu0 0.0
        %2300 = vmatpush2.msra.mxu0 0.0
        %2301 = vmatprep.subr.mxu0 0.0
        %2302 = vmatpush2.msra.mxu0 0.0
        %2303 = vmatprep.subr.mxu0 0.0
        %2304 = vmatpush2.msra.mxu0 0.0
        %2305 = vmatprep.subr.mxu0 0.0
        %2306 = vmatpush2.msra.mxu0 0.0
        %2307 = vmatprep.subr.mxu0 0.0
        %2308 = vmatpush2.msra.mxu0 0.0
        %2309 = vmatprep.subr.mxu0 0.0
        %2310 = vmatpush2.msra.mxu0 0.0
        %2311 = vmatprep.subr.mxu0 0.0
        %2312 = vmatpush2.msra.mxu0 0.0
        %2313 = vmatprep.subr.mxu0 0.0
        %2314 = vmatpush2.msra.mxu0 0.0
        %2315 = vmatprep.subr.mxu0 0.0
        %2316 = vmatpush2.msra.mxu0 0.0
        %2317 = vmatprep.subr.mxu0 0.0
        %2318 = vmatpush2.msra.mxu0 0.0
        %2319 = vmatprep.subr.mxu0 0.0
        %2320 = vmatpush2.msra.mxu0 0.0
        %2321 = vmatprep.subr.mxu0 0.0
        %2322 = vmatpush2.msra.mxu0 0.0
        %2323 = vmatprep.subr.mxu0 0.0
        %2324 = vmatpush2.msra.mxu0 0.0
        %2325 = vmatprep.subr.mxu0 0.0
        %2326 = vmatpush2.msra.mxu0 0.0
        %2327 = vmatprep.subr.mxu0 0.0
        %2328 = vmatpush2.msra.mxu0 0.0
        %2329 = vmatprep.mubr.f32.mxu0 0.0
        %2330 = vmatmul.mubr.f32.gmra.mxu0 %v2263
        %v2331 = vpop.f32.mrf.mxu0
        %v2332 = vadd.f32 0.0, %v2331
        %v2333 = vpop.f32.mrf.mxu0
        %2334 = vdwg.mxu0
        %v2335 = vld [vmem:[%s6] sm:$0xff]
        %v2336 = vld [vmem:[%s6 + $0x8] sm:$0xff]
        %v2337 = vld [vmem:[%s6 + $0x10] sm:$0xff]
        %v2338 = vld [vmem:[%s6 + $0x18] sm:$0xff]
        %s2339 = scalar_lea.vmem [#allocation2], 8
        %v2340 = vld [vmem:[%s2339] sm:$0xff]
        %v2342 = vsel %vm2261, %v2340, 0
        %2344 = vmatprep.subr.mxu0 0.0
        %2345 = vmatpush1.msra.mxu0 0.0
        %2346 = vmatprep.subr.mxu0 0.0
        %2347 = vmatpush1.msra.mxu0 0.0
        %2348 = vmatprep.subr.mxu0 0.0
        %2349 = vmatpush1.msra.mxu0 0.0
        %2350 = vmatprep.subr.mxu0 0.0
        %2351 = vmatpush1.msra.mxu0 0.0
        %2352 = vmatprep.subr.mxu0 0.0
        %2353 = vmatpush1.msra.mxu0 0.0
        %2354 = vmatprep.subr.mxu0 0.0
        %2355 = vmatpush1.msra.mxu0 0.0
        %2356 = vmatprep.subr.mxu0 0.0
        %2357 = vmatpush1.msra.mxu0 0.0
        %2358 = vmatprep.subr.mxu0 0.0
        %2359 = vmatpush1.msra.mxu0 0.0
        %2360 = vmatprep.subr.mxu0 0.0
        %2361 = vmatpush1.msra.mxu0 0.0
        %2362 = vmatprep.subr.mxu0 0.0
        %2363 = vmatpush1.msra.mxu0 0.0
        %2364 = vmatprep.subr.mxu0 0.0
        %2365 = vmatpush1.msra.mxu0 0.0
        %2366 = vmatprep.subr.mxu0 0.0
        %2367 = vmatpush1.msra.mxu0 0.0
        %2368 = vmatprep.subr.mxu0 0.0
        %2369 = vmatpush1.msra.mxu0 0.0
        %2370 = vmatprep.subr.mxu0 0.0
        %2371 = vmatpush1.msra.mxu0 0.0
        %2372 = vmatprep.subr.mxu0 0.0
        %2373 = vmatpush1.msra.mxu0 %v2259
        %2374 = vmatprep.subr.mxu0 0.0
        %2375 = vmatpush1.msra.mxu0 %v2258
        %2376 = vmatprep.subr.mxu0 0.0
        %2377 = vmatpush2.msra.mxu0 0.0
        %2378 = vmatprep.subr.mxu0 0.0
        %2379 = vmatpush2.msra.mxu0 0.0
        %2380 = vmatprep.subr.mxu0 0.0
        %2381 = vmatpush2.msra.mxu0 0.0
        %2382 = vmatprep.subr.mxu0 0.0
        %2383 = vmatpush2.msra.mxu0 0.0
        %2384 = vmatprep.subr.mxu0 0.0
        %2385 = vmatpush2.msra.mxu0 0.0
        %2386 = vmatprep.subr.mxu0 0.0
        %2387 = vmatpush2.msra.mxu0 0.0
        %2388 = vmatprep.subr.mxu0 0.0
        %2389 = vmatpush2.msra.mxu0 0.0
        %2390 = vmatprep.subr.mxu0 0.0
        %2391 = vmatpush2.msra.mxu0 0.0
        %2392 = vmatprep.subr.mxu0 0.0
        %2393 = vmatpush2.msra.mxu0 0.0
        %2394 = vmatprep.subr.mxu0 0.0
        %2395 = vmatpush2.msra.mxu0 0.0
        %2396 = vmatprep.subr.mxu0 0.0
        %2397 = vmatpush2.msra.mxu0 0.0
        %2398 = vmatprep.subr.mxu0 0.0
        %2399 = vmatpush2.msra.mxu0 0.0
        %2400 = vmatprep.subr.mxu0 0.0
        %2401 = vmatpush2.msra.mxu0 0.0
        %2402 = vmatprep.subr.mxu0 0.0
        %2403 = vmatpush2.msra.mxu0 0.0
        %2404 = vmatprep.subr.mxu0 0.0
        %2405 = vmatpush2.msra.mxu0 0.0
        %2406 = vmatprep.subr.mxu0 0.0
        %2407 = vmatpush2.msra.mxu0 0.0
        %2408 = vmatprep.mubr.f32.mxu0 0.0
        %2409 = vmatmul.mubr.f32.gmra.mxu0 %v2342
        %v2410 = vpop.f32.mrf.mxu0
        %v2411 = vadd.f32 0.0, %v2410
        %v2412 = vpop.f32.mrf.mxu0
        %2413 = vdwg.mxu0
        %s2414 = scalar_lea.vmem %s6, 32
        %v2415 = vld [vmem:[%s2414] sm:$0xff]
        %v2416 = vld [vmem:[%s2414 + $0x8] sm:$0xff]
        %v2417 = vld [vmem:[%s2414 + $0x10] sm:$0xff]
        %v2418 = vld [vmem:[%s2414 + $0x18] sm:$0xff]
        %v2420 = vsel %vm1390, %v2411, 0
        %2422 = vmatprep.subr.mxu0 0.0
        %2423 = vmatpush1.msra.mxu0 0.0
        %2424 = vmatprep.subr.mxu0 0.0
        %2425 = vmatpush1.msra.mxu0 0.0
        %2426 = vmatprep.subr.mxu0 0.0
        %2427 = vmatpush1.msra.mxu0 0.0
        %2428 = vmatprep.subr.mxu0 0.0
        %2429 = vmatpush1.msra.mxu0 0.0
        %2430 = vmatprep.subr.mxu0 0.0
        %2431 = vmatpush1.msra.mxu0 0.0
        %2432 = vmatprep.subr.mxu0 0.0
        %2433 = vmatpush1.msra.mxu0 0.0
        %2434 = vmatprep.subr.mxu0 0.0
        %2435 = vmatpush1.msra.mxu0 0.0
        %2436 = vmatprep.subr.mxu0 0.0
        %2437 = vmatpush1.msra.mxu0 0.0
        %2438 = vmatprep.subr.mxu0 0.0
        %2439 = vmatpush1.msra.mxu0 0.0
        %2440 = vmatprep.subr.mxu0 0.0
        %2441 = vmatpush1.msra.mxu0 0.0
        %2442 = vmatprep.subr.mxu0 0.0
        %2443 = vmatpush1.msra.mxu0 0.0
        %2444 = vmatprep.subr.mxu0 0.0
        %2445 = vmatpush1.msra.mxu0 0.0
        %2446 = vmatprep.subr.mxu0 0.0
        %2447 = vmatpush1.msra.mxu0 %v2418
        %2448 = vmatprep.subr.mxu0 0.0
        %2449 = vmatpush1.msra.mxu0 %v2417
        %2450 = vmatprep.subr.mxu0 0.0
        %2451 = vmatpush1.msra.mxu0 %v2416
        %2452 = vmatprep.subr.mxu0 0.0
        %2453 = vmatpush1.msra.mxu0 %v2415
        %2454 = vmatprep.subr.mxu0 0.0
        %2455 = vmatpush2.msra.mxu0 0.0
        %2456 = vmatprep.subr.mxu0 0.0
        %2457 = vmatpush2.msra.mxu0 0.0
        %2458 = vmatprep.subr.mxu0 0.0
        %2459 = vmatpush2.msra.mxu0 0.0
        %2460 = vmatprep.subr.mxu0 0.0
        %2461 = vmatpush2.msra.mxu0 0.0
        %2462 = vmatprep.subr.mxu0 0.0
        %2463 = vmatpush2.msra.mxu0 0.0
        %2464 = vmatprep.subr.mxu0 0.0
        %2465 = vmatpush2.msra.mxu0 0.0
        %2466 = vmatprep.subr.mxu0 0.0
        %2467 = vmatpush2.msra.mxu0 0.0
        %2468 = vmatprep.subr.mxu0 0.0
        %2469 = vmatpush2.msra.mxu0 0.0
        %2470 = vmatprep.subr.mxu0 0.0
        %2471 = vmatpush2.msra.mxu0 0.0
        %2472 = vmatprep.subr.mxu0 0.0
        %2473 = vmatpush2.msra.mxu0 0.0
        %2474 = vmatprep.subr.mxu0 0.0
        %2475 = vmatpush2.msra.mxu0 0.0
        %2476 = vmatprep.subr.mxu0 0.0
        %2477 = vmatpush2.msra.mxu0 0.0
        %2478 = vmatprep.subr.mxu0 0.0
        %2479 = vmatpush2.msra.mxu0 0.0
        %2480 = vmatprep.subr.mxu0 0.0
        %2481 = vmatpush2.msra.mxu0 0.0
        %2482 = vmatprep.subr.mxu0 0.0
        %2483 = vmatpush2.msra.mxu0 0.0
        %2484 = vmatprep.subr.mxu0 0.0
        %2485 = vmatpush2.msra.mxu0 0.0
        %2486 = vmatprep.mubr.f32.mxu0 0.0
        %2487 = vmatmul.mubr.f32.gmra.mxu0 %v2420
        %v2488 = vpop.f32.mrf.mxu0
        %v2489 = vadd.f32 0.0, %v2488
        %v2490 = vpop.f32.mrf.mxu0
        %2491 = vdwg.mxu0
        %v2493 = vsel %vm1390, %v2332, 0
        %2495 = vmatprep.subr.mxu0 0.0
        %2496 = vmatpush1.msra.mxu0 0.0
        %2497 = vmatprep.subr.mxu0 0.0
        %2498 = vmatpush1.msra.mxu0 0.0
        %2499 = vmatprep.subr.mxu0 0.0
        %2500 = vmatpush1.msra.mxu0 0.0
        %2501 = vmatprep.subr.mxu0 0.0
        %2502 = vmatpush1.msra.mxu0 0.0
        %2503 = vmatprep.subr.mxu0 0.0
        %2504 = vmatpush1.msra.mxu0 0.0
        %2505 = vmatprep.subr.mxu0 0.0
        %2506 = vmatpush1.msra.mxu0 0.0
        %2507 = vmatprep.subr.mxu0 0.0
        %2508 = vmatpush1.msra.mxu0 0.0
        %2509 = vmatprep.subr.mxu0 0.0
        %2510 = vmatpush1.msra.mxu0 0.0
        %2511 = vmatprep.subr.mxu0 0.0
        %2512 = vmatpush1.msra.mxu0 0.0
        %2513 = vmatprep.subr.mxu0 0.0
        %2514 = vmatpush1.msra.mxu0 0.0
        %2515 = vmatprep.subr.mxu0 0.0
        %2516 = vmatpush1.msra.mxu0 0.0
        %2517 = vmatprep.subr.mxu0 0.0
        %2518 = vmatpush1.msra.mxu0 0.0
        %2519 = vmatprep.subr.mxu0 0.0
        %2520 = vmatpush1.msra.mxu0 %v2338
        %2521 = vmatprep.subr.mxu0 0.0
        %2522 = vmatpush1.msra.mxu0 %v2337
        %2523 = vmatprep.subr.mxu0 0.0
        %2524 = vmatpush1.msra.mxu0 %v2336
        %2525 = vmatprep.subr.mxu0 0.0
        %2526 = vmatpush1.msra.mxu0 %v2335
        %2527 = vmatprep.subr.mxu0 0.0
        %2528 = vmatpush2.msra.mxu0 0.0
        %2529 = vmatprep.subr.mxu0 0.0
        %2530 = vmatpush2.msra.mxu0 0.0
        %2531 = vmatprep.subr.mxu0 0.0
        %2532 = vmatpush2.msra.mxu0 0.0
        %2533 = vmatprep.subr.mxu0 0.0
        %2534 = vmatpush2.msra.mxu0 0.0
        %2535 = vmatprep.subr.mxu0 0.0
        %2536 = vmatpush2.msra.mxu0 0.0
        %2537 = vmatprep.subr.mxu0 0.0
        %2538 = vmatpush2.msra.mxu0 0.0
        %2539 = vmatprep.subr.mxu0 0.0
        %2540 = vmatpush2.msra.mxu0 0.0
        %2541 = vmatprep.subr.mxu0 0.0
        %2542 = vmatpush2.msra.mxu0 0.0
        %2543 = vmatprep.subr.mxu0 0.0
        %2544 = vmatpush2.msra.mxu0 0.0
        %2545 = vmatprep.subr.mxu0 0.0
        %2546 = vmatpush2.msra.mxu0 0.0
        %2547 = vmatprep.subr.mxu0 0.0
        %2548 = vmatpush2.msra.mxu0 0.0
        %2549 = vmatprep.subr.mxu0 0.0
        %2550 = vmatpush2.msra.mxu0 0.0
        %2551 = vmatprep.subr.mxu0 0.0
        %2552 = vmatpush2.msra.mxu0 0.0
        %2553 = vmatprep.subr.mxu0 0.0
        %2554 = vmatpush2.msra.mxu0 0.0
        %2555 = vmatprep.subr.mxu0 0.0
        %2556 = vmatpush2.msra.mxu0 0.0
        %2557 = vmatprep.subr.mxu0 0.0
        %2558 = vmatpush2.msra.mxu0 0.0
        %2559 = vmatprep.mubr.f32.mxu0 0.0
        %2560 = vmatmul.mubr.f32.gmra.mxu0 %v2493
        %v2561 = vpop.f32.mrf.mxu0
        %v2562 = vadd.f32 %v2489, %v2561
        %v2563 = vpop.f32.mrf.mxu0
        %2564 = vdwg.mxu0
        %s2565 = scalar_lea.vmem [#allocation2], 16
        %v2566 = vld [vmem:[%s2565] sm:$0xff]
        %v2568 = vsel %vm2261, %v2566, 0
        %2570 = vmatprep.subr.mxu0 0.0
        %2571 = vmatpush1.msra.mxu0 0.0
        %2572 = vmatprep.subr.mxu0 0.0
        %2573 = vmatpush1.msra.mxu0 0.0
        %2574 = vmatprep.subr.mxu0 0.0
        %2575 = vmatpush1.msra.mxu0 0.0
        %2576 = vmatprep.subr.mxu0 0.0
        %2577 = vmatpush1.msra.mxu0 0.0
        %2578 = vmatprep.subr.mxu0 0.0
        %2579 = vmatpush1.msra.mxu0 0.0
        %2580 = vmatprep.subr.mxu0 0.0
        %2581 = vmatpush1.msra.mxu0 0.0
        %2582 = vmatprep.subr.mxu0 0.0
        %2583 = vmatpush1.msra.mxu0 0.0
        %2584 = vmatprep.subr.mxu0 0.0
        %2585 = vmatpush1.msra.mxu0 0.0
        %2586 = vmatprep.subr.mxu0 0.0
        %2587 = vmatpush1.msra.mxu0 0.0
        %2588 = vmatprep.subr.mxu0 0.0
        %2589 = vmatpush1.msra.mxu0 0.0
        %2590 = vmatprep.subr.mxu0 0.0
        %2591 = vmatpush1.msra.mxu0 0.0
        %2592 = vmatprep.subr.mxu0 0.0
        %2593 = vmatpush1.msra.mxu0 0.0
        %2594 = vmatprep.subr.mxu0 0.0
        %2595 = vmatpush1.msra.mxu0 0.0
        %2596 = vmatprep.subr.mxu0 0.0
        %2597 = vmatpush1.msra.mxu0 0.0
        %2598 = vmatprep.subr.mxu0 0.0
        %2599 = vmatpush1.msra.mxu0 %v2259
        %2600 = vmatprep.subr.mxu0 0.0
        %2601 = vmatpush1.msra.mxu0 %v2258
        %2602 = vmatprep.subr.mxu0 0.0
        %2603 = vmatpush2.msra.mxu0 0.0
        %2604 = vmatprep.subr.mxu0 0.0
        %2605 = vmatpush2.msra.mxu0 0.0
        %2606 = vmatprep.subr.mxu0 0.0
        %2607 = vmatpush2.msra.mxu0 0.0
        %2608 = vmatprep.subr.mxu0 0.0
        %2609 = vmatpush2.msra.mxu0 0.0
        %2610 = vmatprep.subr.mxu0 0.0
        %2611 = vmatpush2.msra.mxu0 0.0
        %2612 = vmatprep.subr.mxu0 0.0
        %2613 = vmatpush2.msra.mxu0 0.0
        %2614 = vmatprep.subr.mxu0 0.0
        %2615 = vmatpush2.msra.mxu0 0.0
        %2616 = vmatprep.subr.mxu0 0.0
        %2617 = vmatpush2.msra.mxu0 0.0
        %2618 = vmatprep.subr.mxu0 0.0
        %2619 = vmatpush2.msra.mxu0 0.0
        %2620 = vmatprep.subr.mxu0 0.0
        %2621 = vmatpush2.msra.mxu0 0.0
        %2622 = vmatprep.subr.mxu0 0.0
        %2623 = vmatpush2.msra.mxu0 0.0
        %2624 = vmatprep.subr.mxu0 0.0
        %2625 = vmatpush2.msra.mxu0 0.0
        %2626 = vmatprep.subr.mxu0 0.0
        %2627 = vmatpush2.msra.mxu0 0.0
        %2628 = vmatprep.subr.mxu0 0.0
        %2629 = vmatpush2.msra.mxu0 0.0
        %2630 = vmatprep.subr.mxu0 0.0
        %2631 = vmatpush2.msra.mxu0 0.0
        %2632 = vmatprep.subr.mxu0 0.0
        %2633 = vmatpush2.msra.mxu0 0.0
        %2634 = vmatprep.mubr.f32.mxu0 0.0
        %2635 = vmatmul.mubr.f32.gmra.mxu0 %v2568
        %v2636 = vpop.f32.mrf.mxu0
        %v2637 = vadd.f32 0.0, %v2636
        %v2638 = vpop.f32.mrf.mxu0
        %2639 = vdwg.mxu0
        %s2640 = scalar_lea.vmem %s6, 64
        %v2641 = vld [vmem:[%s2640] sm:$0xff]
        %v2642 = vld [vmem:[%s2640 + $0x8] sm:$0xff]
        %v2643 = vld [vmem:[%s2640 + $0x10] sm:$0xff]
        %v2644 = vld [vmem:[%s2640 + $0x18] sm:$0xff]
        %v2646 = vsel %vm1390, %v2637, 0
        %2648 = vmatprep.subr.mxu0 0.0
        %2649 = vmatpush1.msra.mxu0 0.0
        %2650 = vmatprep.subr.mxu0 0.0
        %2651 = vmatpush1.msra.mxu0 0.0
        %2652 = vmatprep.subr.mxu0 0.0
        %2653 = vmatpush1.msra.mxu0 0.0
        %2654 = vmatprep.subr.mxu0 0.0
        %2655 = vmatpush1.msra.mxu0 0.0
        %2656 = vmatprep.subr.mxu0 0.0
        %2657 = vmatpush1.msra.mxu0 0.0
        %2658 = vmatprep.subr.mxu0 0.0
        %2659 = vmatpush1.msra.mxu0 0.0
        %2660 = vmatprep.subr.mxu0 0.0
        %2661 = vmatpush1.msra.mxu0 0.0
        %2662 = vmatprep.subr.mxu0 0.0
        %2663 = vmatpush1.msra.mxu0 0.0
        %2664 = vmatprep.subr.mxu0 0.0
        %2665 = vmatpush1.msra.mxu0 0.0
        %2666 = vmatprep.subr.mxu0 0.0
        %2667 = vmatpush1.msra.mxu0 0.0
        %2668 = vmatprep.subr.mxu0 0.0
        %2669 = vmatpush1.msra.mxu0 0.0
        %2670 = vmatprep.subr.mxu0 0.0
        %2671 = vmatpush1.msra.mxu0 0.0
        %2672 = vmatprep.subr.mxu0 0.0
        %2673 = vmatpush1.msra.mxu0 %v2644
        %2674 = vmatprep.subr.mxu0 0.0
        %2675 = vmatpush1.msra.mxu0 %v2643
        %2676 = vmatprep.subr.mxu0 0.0
        %2677 = vmatpush1.msra.mxu0 %v2642
        %2678 = vmatprep.subr.mxu0 0.0
        %2679 = vmatpush1.msra.mxu0 %v2641
        %2680 = vmatprep.subr.mxu0 0.0
        %2681 = vmatpush2.msra.mxu0 0.0
        %2682 = vmatprep.subr.mxu0 0.0
        %2683 = vmatpush2.msra.mxu0 0.0
        %2684 = vmatprep.subr.mxu0 0.0
        %2685 = vmatpush2.msra.mxu0 0.0
        %2686 = vmatprep.subr.mxu0 0.0
        %2687 = vmatpush2.msra.mxu0 0.0
        %2688 = vmatprep.subr.mxu0 0.0
        %2689 = vmatpush2.msra.mxu0 0.0
        %2690 = vmatprep.subr.mxu0 0.0
        %2691 = vmatpush2.msra.mxu0 0.0
        %2692 = vmatprep.subr.mxu0 0.0
        %2693 = vmatpush2.msra.mxu0 0.0
        %2694 = vmatprep.subr.mxu0 0.0
        %2695 = vmatpush2.msra.mxu0 0.0
        %2696 = vmatprep.subr.mxu0 0.0
        %2697 = vmatpush2.msra.mxu0 0.0
        %2698 = vmatprep.subr.mxu0 0.0
        %2699 = vmatpush2.msra.mxu0 0.0
        %2700 = vmatprep.subr.mxu0 0.0
        %2701 = vmatpush2.msra.mxu0 0.0
        %2702 = vmatprep.subr.mxu0 0.0
        %2703 = vmatpush2.msra.mxu0 0.0
        %2704 = vmatprep.subr.mxu0 0.0
        %2705 = vmatpush2.msra.mxu0 0.0
        %2706 = vmatprep.subr.mxu0 0.0
        %2707 = vmatpush2.msra.mxu0 0.0
        %2708 = vmatprep.subr.mxu0 0.0
        %2709 = vmatpush2.msra.mxu0 0.0
        %2710 = vmatprep.subr.mxu0 0.0
        %2711 = vmatpush2.msra.mxu0 0.0
        %2712 = vmatprep.mubr.f32.mxu0 0.0
        %2713 = vmatmul.mubr.f32.gmra.mxu0 %v2646
        %v2714 = vpop.f32.mrf.mxu0
        %v2715 = vadd.f32 0.0, %v2714
        %v2716 = vpop.f32.mrf.mxu0
        %2717 = vdwg.mxu0
        %v2718 = vadd.f32 %v2562, %v2715
        %v2719 = vld [vmem:[%s7 + $0x2] sm:$0x1]
        %v2720 = vlaneseq
        %v2721 = vshrl.u32 %v2720, 7
        %v2722 = vsub.s32 0, %v2721
        %v2723 = vrot.slane %v2719, %v2722
        %v2724 = vadd.f32 %v2718, %v2723
        %v2725 = vmul.f32 %v2724, 0.5
        %v2726 = vmul.f32 %v2724, 0.70710677
        %v2727 = verf.f32.pop %v2726
        %v2728 = vadd.f32 %v2727, 1.0
        %v2729 = vmul.f32 %v2725, %v2728
        %v2730 = vld [vmem:[%s7 + $0x10] sm:$0xff]
        %v2731 = vadd.f32 %v2729, %v2730
        %v2732 = vld [vmem:[%s8] sm:$0xff]
        %v2733 = vld [vmem:[%s8 + $0x8] sm:$0xff]
        %v2734 = vld [vmem:[%s8 + $0x10] sm:$0xff]
        %v2735 = vld [vmem:[%s8 + $0x18] sm:$0xff]
        %v2737 = vsel %vm1390, %v2731, 0
        %2739 = vmatprep.subr.mxu0 0.0
        %2740 = vmatpush1.msra.mxu0 0.0
        %2741 = vmatprep.subr.mxu0 0.0
        %2742 = vmatpush1.msra.mxu0 0.0
        %2743 = vmatprep.subr.mxu0 0.0
        %2744 = vmatpush1.msra.mxu0 0.0
        %2745 = vmatprep.subr.mxu0 0.0
        %2746 = vmatpush1.msra.mxu0 0.0
        %2747 = vmatprep.subr.mxu0 0.0
        %2748 = vmatpush1.msra.mxu0 0.0
        %2749 = vmatprep.subr.mxu0 0.0
        %2750 = vmatpush1.msra.mxu0 0.0
        %2751 = vmatprep.subr.mxu0 0.0
        %2752 = vmatpush1.msra.mxu0 0.0
        %2753 = vmatprep.subr.mxu0 0.0
        %2754 = vmatpush1.msra.mxu0 0.0
        %2755 = vmatprep.subr.mxu0 0.0
        %2756 = vmatpush1.msra.mxu0 0.0
        %2757 = vmatprep.subr.mxu0 0.0
        %2758 = vmatpush1.msra.mxu0 0.0
        %2759 = vmatprep.subr.mxu0 0.0
        %2760 = vmatpush1.msra.mxu0 0.0
        %2761 = vmatprep.subr.mxu0 0.0
        %2762 = vmatpush1.msra.mxu0 0.0
        %2763 = vmatprep.subr.mxu0 0.0
        %2764 = vmatpush1.msra.mxu0 %v2735
        %2765 = vmatprep.subr.mxu0 0.0
        %2766 = vmatpush1.msra.mxu0 %v2734
        %2767 = vmatprep.subr.mxu0 0.0
        %2768 = vmatpush1.msra.mxu0 %v2733
        %2769 = vmatprep.subr.mxu0 0.0
        %2770 = vmatpush1.msra.mxu0 %v2732
        %2771 = vmatprep.subr.mxu0 0.0
        %2772 = vmatpush2.msra.mxu0 0.0
        %2773 = vmatprep.subr.mxu0 0.0
        %2774 = vmatpush2.msra.mxu0 0.0
        %2775 = vmatprep.subr.mxu0 0.0
        %2776 = vmatpush2.msra.mxu0 0.0
        %2777 = vmatprep.subr.mxu0 0.0
        %2778 = vmatpush2.msra.mxu0 0.0
        %2779 = vmatprep.subr.mxu0 0.0
        %2780 = vmatpush2.msra.mxu0 0.0
        %2781 = vmatprep.subr.mxu0 0.0
        %2782 = vmatpush2.msra.mxu0 0.0
        %2783 = vmatprep.subr.mxu0 0.0
        %2784 = vmatpush2.msra.mxu0 0.0
        %2785 = vmatprep.subr.mxu0 0.0
        %2786 = vmatpush2.msra.mxu0 0.0
        %2787 = vmatprep.subr.mxu0 0.0
        %2788 = vmatpush2.msra.mxu0 0.0
        %2789 = vmatprep.subr.mxu0 0.0
        %2790 = vmatpush2.msra.mxu0 0.0
        %2791 = vmatprep.subr.mxu0 0.0
        %2792 = vmatpush2.msra.mxu0 0.0
        %2793 = vmatprep.subr.mxu0 0.0
        %2794 = vmatpush2.msra.mxu0 0.0
        %2795 = vmatprep.subr.mxu0 0.0
        %2796 = vmatpush2.msra.mxu0 0.0
        %2797 = vmatprep.subr.mxu0 0.0
        %2798 = vmatpush2.msra.mxu0 0.0
        %2799 = vmatprep.subr.mxu0 0.0
        %2800 = vmatpush2.msra.mxu0 0.0
        %2801 = vmatprep.subr.mxu0 0.0
        %2802 = vmatpush2.msra.mxu0 0.0
        %2803 = vmatprep.mubr.f32.mxu0 0.0
        %2804 = vmatmul.mubr.f32.gmra.mxu0 %v2737
        %v2805 = vpop.f32.mrf.mxu0
        %v2806 = vadd.f32 0.0, %v2805
        %v2807 = vpop.f32.mrf.mxu0
        %2808 = vdwg.mxu0
        %s2809 = scalar_lea.vmem %s8, 128
        %v2810 = vld [vmem:[%s2809] sm:$0xff]
        %v2811 = vld [vmem:[%s2809 + $0x8] sm:$0xff]
        %v2812 = vld [vmem:[%s2809 + $0x10] sm:$0xff]
        %v2813 = vld [vmem:[%s2809 + $0x18] sm:$0xff]
        %2814 = vmatprep.subr.mxu0 0.0
        %2815 = vmatpush1.msra.mxu0 0.0
        %2816 = vmatprep.subr.mxu0 0.0
        %2817 = vmatpush1.msra.mxu0 0.0
        %2818 = vmatprep.subr.mxu0 0.0
        %2819 = vmatpush1.msra.mxu0 0.0
        %2820 = vmatprep.subr.mxu0 0.0
        %2821 = vmatpush1.msra.mxu0 0.0
        %2822 = vmatprep.subr.mxu0 0.0
        %2823 = vmatpush1.msra.mxu0 0.0
        %2824 = vmatprep.subr.mxu0 0.0
        %2825 = vmatpush1.msra.mxu0 0.0
        %2826 = vmatprep.subr.mxu0 0.0
        %2827 = vmatpush1.msra.mxu0 0.0
        %2828 = vmatprep.subr.mxu0 0.0
        %2829 = vmatpush1.msra.mxu0 0.0
        %2830 = vmatprep.subr.mxu0 0.0
        %2831 = vmatpush1.msra.mxu0 0.0
        %2832 = vmatprep.subr.mxu0 0.0
        %2833 = vmatpush1.msra.mxu0 0.0
        %2834 = vmatprep.subr.mxu0 0.0
        %2835 = vmatpush1.msra.mxu0 0.0
        %2836 = vmatprep.subr.mxu0 0.0
        %2837 = vmatpush1.msra.mxu0 0.0
        %2838 = vmatprep.subr.mxu0 0.0
        %2839 = vmatpush1.msra.mxu0 %v2813
        %2840 = vmatprep.subr.mxu0 0.0
        %2841 = vmatpush1.msra.mxu0 %v2812
        %2842 = vmatprep.subr.mxu0 0.0
        %2843 = vmatpush1.msra.mxu0 %v2811
        %2844 = vmatprep.subr.mxu0 0.0
        %2845 = vmatpush1.msra.mxu0 %v2810
        %2846 = vmatprep.subr.mxu0 0.0
        %2847 = vmatpush2.msra.mxu0 0.0
        %2848 = vmatprep.subr.mxu0 0.0
        %2849 = vmatpush2.msra.mxu0 0.0
        %2850 = vmatprep.subr.mxu0 0.0
        %2851 = vmatpush2.msra.mxu0 0.0
        %2852 = vmatprep.subr.mxu0 0.0
        %2853 = vmatpush2.msra.mxu0 0.0
        %2854 = vmatprep.subr.mxu0 0.0
        %2855 = vmatpush2.msra.mxu0 0.0
        %2856 = vmatprep.subr.mxu0 0.0
        %2857 = vmatpush2.msra.mxu0 0.0
        %2858 = vmatprep.subr.mxu0 0.0
        %2859 = vmatpush2.msra.mxu0 0.0
        %2860 = vmatprep.subr.mxu0 0.0
        %2861 = vmatpush2.msra.mxu0 0.0
        %2862 = vmatprep.subr.mxu0 0.0
        %2863 = vmatpush2.msra.mxu0 0.0
        %2864 = vmatprep.subr.mxu0 0.0
        %2865 = vmatpush2.msra.mxu0 0.0
        %2866 = vmatprep.subr.mxu0 0.0
        %2867 = vmatpush2.msra.mxu0 0.0
        %2868 = vmatprep.subr.mxu0 0.0
        %2869 = vmatpush2.msra.mxu0 0.0
        %2870 = vmatprep.subr.mxu0 0.0
        %2871 = vmatpush2.msra.mxu0 0.0
        %2872 = vmatprep.subr.mxu0 0.0
        %2873 = vmatpush2.msra.mxu0 0.0
        %2874 = vmatprep.subr.mxu0 0.0
        %2875 = vmatpush2.msra.mxu0 0.0
        %2876 = vmatprep.subr.mxu0 0.0
        %2877 = vmatpush2.msra.mxu0 0.0
        %2878 = vmatprep.mubr.f32.mxu0 0.0
        %2879 = vmatmul.mubr.f32.gmra.mxu0 %v2737
        %v2880 = vpop.f32.mrf.mxu0
        %v2881 = vadd.f32 0.0, %v2880
        %v2882 = vpop.f32.mrf.mxu0
        %2883 = vdwg.mxu0
        %s2884 = scalar_lea.vmem %s8, 256
        %v2885 = vld [vmem:[%s2884] sm:$0xff]
        %v2886 = vld [vmem:[%s2884 + $0x8] sm:$0xff]
        %v2887 = vld [vmem:[%s2884 + $0x10] sm:$0xff]
        %v2888 = vld [vmem:[%s2884 + $0x18] sm:$0xff]
        %2889 = vmatprep.subr.mxu0 0.0
        %2890 = vmatpush1.msra.mxu0 0.0
        %2891 = vmatprep.subr.mxu0 0.0
        %2892 = vmatpush1.msra.mxu0 0.0
        %2893 = vmatprep.subr.mxu0 0.0
        %2894 = vmatpush1.msra.mxu0 0.0
        %2895 = vmatprep.subr.mxu0 0.0
        %2896 = vmatpush1.msra.mxu0 0.0
        %2897 = vmatprep.subr.mxu0 0.0
        %2898 = vmatpush1.msra.mxu0 0.0
        %2899 = vmatprep.subr.mxu0 0.0
        %2900 = vmatpush1.msra.mxu0 0.0
        %2901 = vmatprep.subr.mxu0 0.0
        %2902 = vmatpush1.msra.mxu0 0.0
        %2903 = vmatprep.subr.mxu0 0.0
        %2904 = vmatpush1.msra.mxu0 0.0
        %2905 = vmatprep.subr.mxu0 0.0
        %2906 = vmatpush1.msra.mxu0 0.0
        %2907 = vmatprep.subr.mxu0 0.0
        %2908 = vmatpush1.msra.mxu0 0.0
        %2909 = vmatprep.subr.mxu0 0.0
        %2910 = vmatpush1.msra.mxu0 0.0
        %2911 = vmatprep.subr.mxu0 0.0
        %2912 = vmatpush1.msra.mxu0 0.0
        %2913 = vmatprep.subr.mxu0 0.0
        %2914 = vmatpush1.msra.mxu0 %v2888
        %2915 = vmatprep.subr.mxu0 0.0
        %2916 = vmatpush1.msra.mxu0 %v2887
        %2917 = vmatprep.subr.mxu0 0.0
        %2918 = vmatpush1.msra.mxu0 %v2886
        %2919 = vmatprep.subr.mxu0 0.0
        %2920 = vmatpush1.msra.mxu0 %v2885
        %2921 = vmatprep.subr.mxu0 0.0
        %2922 = vmatpush2.msra.mxu0 0.0
        %2923 = vmatprep.subr.mxu0 0.0
        %2924 = vmatpush2.msra.mxu0 0.0
        %2925 = vmatprep.subr.mxu0 0.0
        %2926 = vmatpush2.msra.mxu0 0.0
        %2927 = vmatprep.subr.mxu0 0.0
        %2928 = vmatpush2.msra.mxu0 0.0
        %2929 = vmatprep.subr.mxu0 0.0
        %2930 = vmatpush2.msra.mxu0 0.0
        %2931 = vmatprep.subr.mxu0 0.0
        %2932 = vmatpush2.msra.mxu0 0.0
        %2933 = vmatprep.subr.mxu0 0.0
        %2934 = vmatpush2.msra.mxu0 0.0
        %2935 = vmatprep.subr.mxu0 0.0
        %2936 = vmatpush2.msra.mxu0 0.0
        %2937 = vmatprep.subr.mxu0 0.0
        %2938 = vmatpush2.msra.mxu0 0.0
        %2939 = vmatprep.subr.mxu0 0.0
        %2940 = vmatpush2.msra.mxu0 0.0
        %2941 = vmatprep.subr.mxu0 0.0
        %2942 = vmatpush2.msra.mxu0 0.0
        %2943 = vmatprep.subr.mxu0 0.0
        %2944 = vmatpush2.msra.mxu0 0.0
        %2945 = vmatprep.subr.mxu0 0.0
        %2946 = vmatpush2.msra.mxu0 0.0
        %2947 = vmatprep.subr.mxu0 0.0
        %2948 = vmatpush2.msra.mxu0 0.0
        %2949 = vmatprep.subr.mxu0 0.0
        %2950 = vmatpush2.msra.mxu0 0.0
        %2951 = vmatprep.subr.mxu0 0.0
        %2952 = vmatpush2.msra.mxu0 0.0
        %2953 = vmatprep.mubr.f32.mxu0 0.0
        %2954 = vmatmul.mubr.f32.gmra.mxu0 %v2737
        %v2955 = vpop.f32.mrf.mxu0
        %v2956 = vadd.f32 0.0, %v2955
        %v2957 = vpop.f32.mrf.mxu0
        %2958 = vdwg.mxu0
        %vm2959 = vcmask 64512
        %v2961 = vsel %vm2959, %v2806, 0
        %v2964 = vsel %vm2959, %v2881, 0
        %2966 = vmatprep.subr.mxu0 0.0
        %2967 = vmatpush1.xpose.msra.mxu0 0.0
        %2968 = vmatprep.subr.mxu0 0.0
        %2969 = vmatpush1.xpose.msra.mxu0 0.0
        %2970 = vmatprep.subr.mxu0 0.0
        %2971 = vmatpush1.xpose.msra.mxu0 0.0
        %2972 = vmatprep.subr.mxu0 0.0
        %2973 = vmatpush1.xpose.msra.mxu0 0.0
        %2974 = vmatprep.subr.mxu0 0.0
        %2975 = vmatpush1.xpose.msra.mxu0 0.0
        %2976 = vmatprep.subr.mxu0 0.0
        %2977 = vmatpush1.xpose.msra.mxu0 0.0
        %2978 = vmatprep.subr.mxu0 0.0
        %2979 = vmatpush1.xpose.msra.mxu0 0.0
        %2980 = vmatprep.subr.mxu0 0.0
        %2981 = vmatpush1.xpose.msra.mxu0 0.0
        %2982 = vmatprep.subr.mxu0 0.0
        %2983 = vmatpush1.xpose.msra.mxu0 0.0
        %2984 = vmatprep.subr.mxu0 0.0
        %2985 = vmatpush1.xpose.msra.mxu0 0.0
        %2986 = vmatprep.subr.mxu0 0.0
        %2987 = vmatpush1.xpose.msra.mxu0 0.0
        %2988 = vmatprep.subr.mxu0 0.0
        %2989 = vmatpush1.xpose.msra.mxu0 0.0
        %2990 = vmatprep.subr.mxu0 0.0
        %2991 = vmatpush1.xpose.msra.mxu0 0.0
        %2992 = vmatprep.subr.mxu0 0.0
        %2993 = vmatpush1.xpose.msra.mxu0 0.0
        %2994 = vmatprep.subr.mxu0 0.0
        %2995 = vmatpush1.xpose.msra.mxu0 0.0
        %2996 = vmatprep.subr.mxu0 0.0
        %2997 = vmatpush1.xpose.msra.mxu0 %v2964
        %2998 = vmatprep.subr.mxu0 0.0
        %2999 = vmatpush2.xpose.msra.mxu0 0.0
        %3000 = vmatprep.subr.mxu0 0.0
        %3001 = vmatpush2.xpose.msra.mxu0 0.0
        %3002 = vmatprep.subr.mxu0 0.0
        %3003 = vmatpush2.xpose.msra.mxu0 0.0
        %3004 = vmatprep.subr.mxu0 0.0
        %3005 = vmatpush2.xpose.msra.mxu0 0.0
        %3006 = vmatprep.subr.mxu0 0.0
        %3007 = vmatpush2.xpose.msra.mxu0 0.0
        %3008 = vmatprep.subr.mxu0 0.0
        %3009 = vmatpush2.xpose.msra.mxu0 0.0
        %3010 = vmatprep.subr.mxu0 0.0
        %3011 = vmatpush2.xpose.msra.mxu0 0.0
        %3012 = vmatprep.subr.mxu0 0.0
        %3013 = vmatpush2.xpose.msra.mxu0 0.0
        %3014 = vmatprep.subr.mxu0 0.0
        %3015 = vmatpush2.xpose.msra.mxu0 0.0
        %3016 = vmatprep.subr.mxu0 0.0
        %3017 = vmatpush2.xpose.msra.mxu0 0.0
        %3018 = vmatprep.subr.mxu0 0.0
        %3019 = vmatpush2.xpose.msra.mxu0 0.0
        %3020 = vmatprep.subr.mxu0 0.0
        %3021 = vmatpush2.xpose.msra.mxu0 0.0
        %3022 = vmatprep.subr.mxu0 0.0
        %3023 = vmatpush2.xpose.msra.mxu0 0.0
        %3024 = vmatprep.subr.mxu0 0.0
        %3025 = vmatpush2.xpose.msra.mxu0 0.0
        %3026 = vmatprep.subr.mxu0 0.0
        %3027 = vmatpush2.xpose.msra.mxu0 0.0
        %3028 = vmatprep.subr.mxu0 0.0
        %3029 = vmatpush2.xpose.msra.mxu0 0.0
        %3030 = vmatprep.mubr.f32.mxu0 0.0
        %3031 = vmatmul.mubr.f32.gmra.mxu0 %v2961
        %v3032 = vpop.f32.mrf.mxu0
        %v3033 = vadd.f32 0.0, %v3032
        %v3034 = vpop.f32.mrf.mxu0
        %3035 = vdwg.mxu0
        %v3036 = vmul.f32 %v3033, 0.17677669
        %v3037 = vsel %vm2959, %v3036, -inf
        %3038 = vmax.xlane.f32.xlu0 %v3037
        %v3039 = vpop.xlane.xlu0 %3038
        %v3040 = vsub.f32 %v3036, %v3039
        %v3041 = vmul.f32 %v3040, 1.442695
        %v3042 = vpow.pop %v3041
        %v3043 = vsel %vm2959, %v3042, 0.0
        %3044 = vadd.xlane.f32.xlu0 %v3043
        %v3045 = vpop.xlane.xlu0 %3044
        %v3046 = vrcp.pop %v3045
        %v3047 = vmul.f32 %v3042, %v3046
        %v3049 = vsel %vm2959, %v3047, 0
        %3051 = vmatprep.subr.mxu0 0.0
        %3052 = vmatpush1.msra.mxu0 0.0
        %3053 = vmatprep.subr.mxu0 0.0
        %3054 = vmatpush1.msra.mxu0 0.0
        %3055 = vmatprep.subr.mxu0 0.0
        %3056 = vmatpush1.msra.mxu0 0.0
        %3057 = vmatprep.subr.mxu0 0.0
        %3058 = vmatpush1.msra.mxu0 0.0
        %3059 = vmatprep.subr.mxu0 0.0
        %3060 = vmatpush1.msra.mxu0 0.0
        %3061 = vmatprep.subr.mxu0 0.0
        %3062 = vmatpush1.msra.mxu0 0.0
        %3063 = vmatprep.subr.mxu0 0.0
        %3064 = vmatpush1.msra.mxu0 0.0
        %3065 = vmatprep.subr.mxu0 0.0
        %3066 = vmatpush1.msra.mxu0 0.0
        %3067 = vmatprep.subr.mxu0 0.0
        %3068 = vmatpush1.msra.mxu0 0.0
        %3069 = vmatprep.subr.mxu0 0.0
        %3070 = vmatpush1.msra.mxu0 0.0
        %3071 = vmatprep.subr.mxu0 0.0
        %3072 = vmatpush1.msra.mxu0 0.0
        %3073 = vmatprep.subr.mxu0 0.0
        %3074 = vmatpush1.msra.mxu0 0.0
        %3075 = vmatprep.subr.mxu0 0.0
        %3076 = vmatpush1.msra.mxu0 0.0
        %3077 = vmatprep.subr.mxu0 0.0
        %3078 = vmatpush1.msra.mxu0 0.0
        %3079 = vmatprep.subr.mxu0 0.0
        %3080 = vmatpush1.msra.mxu0 0.0
        %3081 = vmatprep.subr.mxu0 0.0
        %3082 = vmatpush1.msra.mxu0 %v2956
        %3083 = vmatprep.subr.mxu0 0.0
        %3084 = vmatpush2.msra.mxu0 0.0
        %3085 = vmatprep.subr.mxu0 0.0
        %3086 = vmatpush2.msra.mxu0 0.0
        %3087 = vmatprep.subr.mxu0 0.0
        %3088 = vmatpush2.msra.mxu0 0.0
        %3089 = vmatprep.subr.mxu0 0.0
        %3090 = vmatpush2.msra.mxu0 0.0
        %3091 = vmatprep.subr.mxu0 0.0
        %3092 = vmatpush2.msra.mxu0 0.0
        %3093 = vmatprep.subr.mxu0 0.0
        %3094 = vmatpush2.msra.mxu0 0.0
        %3095 = vmatprep.subr.mxu0 0.0
        %3096 = vmatpush2.msra.mxu0 0.0
        %3097 = vmatprep.subr.mxu0 0.0
        %3098 = vmatpush2.msra.mxu0 0.0
        %3099 = vmatprep.subr.mxu0 0.0
        %3100 = vmatpush2.msra.mxu0 0.0
        %3101 = vmatprep.subr.mxu0 0.0
        %3102 = vmatpush2.msra.mxu0 0.0
        %3103 = vmatprep.subr.mxu0 0.0
        %3104 = vmatpush2.msra.mxu0 0.0
        %3105 = vmatprep.subr.mxu0 0.0
        %3106 = vmatpush2.msra.mxu0 0.0
        %3107 = vmatprep.subr.mxu0 0.0
        %3108 = vmatpush2.msra.mxu0 0.0
        %3109 = vmatprep.subr.mxu0 0.0
        %3110 = vmatpush2.msra.mxu0 0.0
        %3111 = vmatprep.subr.mxu0 0.0
        %3112 = vmatpush2.msra.mxu0 0.0
        %3113 = vmatprep.subr.mxu0 0.0
        %3114 = vmatpush2.msra.mxu0 0.0
        %3115 = vmatprep.mubr.f32.mxu0 0.0
        %3116 = vmatmul.mubr.f32.gmra.mxu0 %v3049
        %v3117 = vpop.f32.mrf.mxu0
        %v3118 = vadd.f32 0.0, %v3117
        %v3119 = vpop.f32.mrf.mxu0
        %3120 = vdwg.mxu0
        %s3121 = scalar_lea.vmem %s8, 32
        %v3122 = vld [vmem:[%s3121] sm:$0xff]
        %v3123 = vld [vmem:[%s3121 + $0x8] sm:$0xff]
        %v3124 = vld [vmem:[%s3121 + $0x10] sm:$0xff]
        %v3125 = vld [vmem:[%s3121 + $0x18] sm:$0xff]
        %3126 = vmatprep.subr.mxu0 0.0
        %3127 = vmatpush1.msra.mxu0 0.0
        %3128 = vmatprep.subr.mxu0 0.0
        %3129 = vmatpush1.msra.mxu0 0.0
        %3130 = vmatprep.subr.mxu0 0.0
        %3131 = vmatpush1.msra.mxu0 0.0
        %3132 = vmatprep.subr.mxu0 0.0
        %3133 = vmatpush1.msra.mxu0 0.0
        %3134 = vmatprep.subr.mxu0 0.0
        %3135 = vmatpush1.msra.mxu0 0.0
        %3136 = vmatprep.subr.mxu0 0.0
        %3137 = vmatpush1.msra.mxu0 0.0
        %3138 = vmatprep.subr.mxu0 0.0
        %3139 = vmatpush1.msra.mxu0 0.0
        %3140 = vmatprep.subr.mxu0 0.0
        %3141 = vmatpush1.msra.mxu0 0.0
        %3142 = vmatprep.subr.mxu0 0.0
        %3143 = vmatpush1.msra.mxu0 0.0
        %3144 = vmatprep.subr.mxu0 0.0
        %3145 = vmatpush1.msra.mxu0 0.0
        %3146 = vmatprep.subr.mxu0 0.0
        %3147 = vmatpush1.msra.mxu0 0.0
        %3148 = vmatprep.subr.mxu0 0.0
        %3149 = vmatpush1.msra.mxu0 0.0
        %3150 = vmatprep.subr.mxu0 0.0
        %3151 = vmatpush1.msra.mxu0 %v3125
        %3152 = vmatprep.subr.mxu0 0.0
        %3153 = vmatpush1.msra.mxu0 %v3124
        %3154 = vmatprep.subr.mxu0 0.0
        %3155 = vmatpush1.msra.mxu0 %v3123
        %3156 = vmatprep.subr.mxu0 0.0
        %3157 = vmatpush1.msra.mxu0 %v3122
        %3158 = vmatprep.subr.mxu0 0.0
        %3159 = vmatpush2.msra.mxu0 0.0
        %3160 = vmatprep.subr.mxu0 0.0
        %3161 = vmatpush2.msra.mxu0 0.0
        %3162 = vmatprep.subr.mxu0 0.0
        %3163 = vmatpush2.msra.mxu0 0.0
        %3164 = vmatprep.subr.mxu0 0.0
        %3165 = vmatpush2.msra.mxu0 0.0
        %3166 = vmatprep.subr.mxu0 0.0
        %3167 = vmatpush2.msra.mxu0 0.0
        %3168 = vmatprep.subr.mxu0 0.0
        %3169 = vmatpush2.msra.mxu0 0.0
        %3170 = vmatprep.subr.mxu0 0.0
        %3171 = vmatpush2.msra.mxu0 0.0
        %3172 = vmatprep.subr.mxu0 0.0
        %3173 = vmatpush2.msra.mxu0 0.0
        %3174 = vmatprep.subr.mxu0 0.0
        %3175 = vmatpush2.msra.mxu0 0.0
        %3176 = vmatprep.subr.mxu0 0.0
        %3177 = vmatpush2.msra.mxu0 0.0
        %3178 = vmatprep.subr.mxu0 0.0
        %3179 = vmatpush2.msra.mxu0 0.0
        %3180 = vmatprep.subr.mxu0 0.0
        %3181 = vmatpush2.msra.mxu0 0.0
        %3182 = vmatprep.subr.mxu0 0.0
        %3183 = vmatpush2.msra.mxu0 0.0
        %3184 = vmatprep.subr.mxu0 0.0
        %3185 = vmatpush2.msra.mxu0 0.0
        %3186 = vmatprep.subr.mxu0 0.0
        %3187 = vmatpush2.msra.mxu0 0.0
        %3188 = vmatprep.subr.mxu0 0.0
        %3189 = vmatpush2.msra.mxu0 0.0
        %3190 = vmatprep.mubr.f32.mxu0 0.0
        %3191 = vmatmul.mubr.f32.gmra.mxu0 %v2737
        %v3192 = vpop.f32.mrf.mxu0
        %v3193 = vadd.f32 0.0, %v3192
        %v3194 = vpop.f32.mrf.mxu0
        %3195 = vdwg.mxu0
        %s3196 = scalar_lea.vmem %s8, 160
        %v3197 = vld [vmem:[%s3196] sm:$0xff]
        %v3198 = vld [vmem:[%s3196 + $0x8] sm:$0xff]
        %v3199 = vld [vmem:[%s3196 + $0x10] sm:$0xff]
        %v3200 = vld [vmem:[%s3196 + $0x18] sm:$0xff]
        %3201 = vmatprep.subr.mxu0 0.0
        %3202 = vmatpush1.msra.mxu0 0.0
        %3203 = vmatprep.subr.mxu0 0.0
        %3204 = vmatpush1.msra.mxu0 0.0
        %3205 = vmatprep.subr.mxu0 0.0
        %3206 = vmatpush1.msra.mxu0 0.0
        %3207 = vmatprep.subr.mxu0 0.0
        %3208 = vmatpush1.msra.mxu0 0.0
        %3209 = vmatprep.subr.mxu0 0.0
        %3210 = vmatpush1.msra.mxu0 0.0
        %3211 = vmatprep.subr.mxu0 0.0
        %3212 = vmatpush1.msra.mxu0 0.0
        %3213 = vmatprep.subr.mxu0 0.0
        %3214 = vmatpush1.msra.mxu0 0.0
        %3215 = vmatprep.subr.mxu0 0.0
        %3216 = vmatpush1.msra.mxu0 0.0
        %3217 = vmatprep.subr.mxu0 0.0
        %3218 = vmatpush1.msra.mxu0 0.0
        %3219 = vmatprep.subr.mxu0 0.0
        %3220 = vmatpush1.msra.mxu0 0.0
        %3221 = vmatprep.subr.mxu0 0.0
        %3222 = vmatpush1.msra.mxu0 0.0
        %3223 = vmatprep.subr.mxu0 0.0
        %3224 = vmatpush1.msra.mxu0 0.0
        %3225 = vmatprep.subr.mxu0 0.0
        %3226 = vmatpush1.msra.mxu0 %v3200
        %3227 = vmatprep.subr.mxu0 0.0
        %3228 = vmatpush1.msra.mxu0 %v3199
        %3229 = vmatprep.subr.mxu0 0.0
        %3230 = vmatpush1.msra.mxu0 %v3198
        %3231 = vmatprep.subr.mxu0 0.0
        %3232 = vmatpush1.msra.mxu0 %v3197
        %3233 = vmatprep.subr.mxu0 0.0
        %3234 = vmatpush2.msra.mxu0 0.0
        %3235 = vmatprep.subr.mxu0 0.0
        %3236 = vmatpush2.msra.mxu0 0.0
        %3237 = vmatprep.subr.mxu0 0.0
        %3238 = vmatpush2.msra.mxu0 0.0
        %3239 = vmatprep.subr.mxu0 0.0
        %3240 = vmatpush2.msra.mxu0 0.0
        %3241 = vmatprep.subr.mxu0 0.0
        %3242 = vmatpush2.msra.mxu0 0.0
        %3243 = vmatprep.subr.mxu0 0.0
        %3244 = vmatpush2.msra.mxu0 0.0
        %3245 = vmatprep.subr.mxu0 0.0
        %3246 = vmatpush2.msra.mxu0 0.0
        %3247 = vmatprep.subr.mxu0 0.0
        %3248 = vmatpush2.msra.mxu0 0.0
        %3249 = vmatprep.subr.mxu0 0.0
        %3250 = vmatpush2.msra.mxu0 0.0
        %3251 = vmatprep.subr.mxu0 0.0
        %3252 = vmatpush2.msra.mxu0 0.0
        %3253 = vmatprep.subr.mxu0 0.0
        %3254 = vmatpush2.msra.mxu0 0.0
        %3255 = vmatprep.subr.mxu0 0.0
        %3256 = vmatpush2.msra.mxu0 0.0
        %3257 = vmatprep.subr.mxu0 0.0
        %3258 = vmatpush2.msra.mxu0 0.0
        %3259 = vmatprep.subr.mxu0 0.0
        %3260 = vmatpush2.msra.mxu0 0.0
        %3261 = vmatprep.subr.mxu0 0.0
        %3262 = vmatpush2.msra.mxu0 0.0
        %3263 = vmatprep.subr.mxu0 0.0
        %3264 = vmatpush2.msra.mxu0 0.0
        %3265 = vmatprep.mubr.f32.mxu0 0.0
        %3266 = vmatmul.mubr.f32.gmra.mxu0 %v2737
        %v3267 = vpop.f32.mrf.mxu0
        %v3268 = vadd.f32 0.0, %v3267
        %v3269 = vpop.f32.mrf.mxu0
        %3270 = vdwg.mxu0
        %s3271 = scalar_lea.vmem %s8, 288
        %v3272 = vld [vmem:[%s3271] sm:$0xff]
        %v3273 = vld [vmem:[%s3271 + $0x8] sm:$0xff]
        %v3274 = vld [vmem:[%s3271 + $0x10] sm:$0xff]
        %v3275 = vld [vmem:[%s3271 + $0x18] sm:$0xff]
        %3276 = vmatprep.subr.mxu0 0.0
        %3277 = vmatpush1.msra.mxu0 0.0
        %3278 = vmatprep.subr.mxu0 0.0
        %3279 = vmatpush1.msra.mxu0 0.0
        %3280 = vmatprep.subr.mxu0 0.0
        %3281 = vmatpush1.msra.mxu0 0.0
        %3282 = vmatprep.subr.mxu0 0.0
        %3283 = vmatpush1.msra.mxu0 0.0
        %3284 = vmatprep.subr.mxu0 0.0
        %3285 = vmatpush1.msra.mxu0 0.0
        %3286 = vmatprep.subr.mxu0 0.0
        %3287 = vmatpush1.msra.mxu0 0.0
        %3288 = vmatprep.subr.mxu0 0.0
        %3289 = vmatpush1.msra.mxu0 0.0
        %3290 = vmatprep.subr.mxu0 0.0
        %3291 = vmatpush1.msra.mxu0 0.0
        %3292 = vmatprep.subr.mxu0 0.0
        %3293 = vmatpush1.msra.mxu0 0.0
        %3294 = vmatprep.subr.mxu0 0.0
        %3295 = vmatpush1.msra.mxu0 0.0
        %3296 = vmatprep.subr.mxu0 0.0
        %3297 = vmatpush1.msra.mxu0 0.0
        %3298 = vmatprep.subr.mxu0 0.0
        %3299 = vmatpush1.msra.mxu0 0.0
        %3300 = vmatprep.subr.mxu0 0.0
        %3301 = vmatpush1.msra.mxu0 %v3275
        %3302 = vmatprep.subr.mxu0 0.0
        %3303 = vmatpush1.msra.mxu0 %v3274
        %3304 = vmatprep.subr.mxu0 0.0
        %3305 = vmatpush1.msra.mxu0 %v3273
        %3306 = vmatprep.subr.mxu0 0.0
        %3307 = vmatpush1.msra.mxu0 %v3272
        %3308 = vmatprep.subr.mxu0 0.0
        %3309 = vmatpush2.msra.mxu0 0.0
        %3310 = vmatprep.subr.mxu0 0.0
        %3311 = vmatpush2.msra.mxu0 0.0
        %3312 = vmatprep.subr.mxu0 0.0
        %3313 = vmatpush2.msra.mxu0 0.0
        %3314 = vmatprep.subr.mxu0 0.0
        %3315 = vmatpush2.msra.mxu0 0.0
        %3316 = vmatprep.subr.mxu0 0.0
        %3317 = vmatpush2.msra.mxu0 0.0
        %3318 = vmatprep.subr.mxu0 0.0
        %3319 = vmatpush2.msra.mxu0 0.0
        %3320 = vmatprep.subr.mxu0 0.0
        %3321 = vmatpush2.msra.mxu0 0.0
        %3322 = vmatprep.subr.mxu0 0.0
        %3323 = vmatpush2.msra.mxu0 0.0
        %3324 = vmatprep.subr.mxu0 0.0
        %3325 = vmatpush2.msra.mxu0 0.0
        %3326 = vmatprep.subr.mxu0 0.0
        %3327 = vmatpush2.msra.mxu0 0.0
        %3328 = vmatprep.subr.mxu0 0.0
        %3329 = vmatpush2.msra.mxu0 0.0
        %3330 = vmatprep.subr.mxu0 0.0
        %3331 = vmatpush2.msra.mxu0 0.0
        %3332 = vmatprep.subr.mxu0 0.0
        %3333 = vmatpush2.msra.mxu0 0.0
        %3334 = vmatprep.subr.mxu0 0.0
        %3335 = vmatpush2.msra.mxu0 0.0
        %3336 = vmatprep.subr.mxu0 0.0
        %3337 = vmatpush2.msra.mxu0 0.0
        %3338 = vmatprep.subr.mxu0 0.0
        %3339 = vmatpush2.msra.mxu0 0.0
        %3340 = vmatprep.mubr.f32.mxu0 0.0
        %3341 = vmatmul.mubr.f32.gmra.mxu0 %v2737
        %v3342 = vpop.f32.mrf.mxu0
        %v3343 = vadd.f32 0.0, %v3342
        %v3344 = vpop.f32.mrf.mxu0
        %3345 = vdwg.mxu0
        %v3347 = vsel %vm2959, %v3193, 0
        %v3350 = vsel %vm2959, %v3268, 0
        %3352 = vmatprep.subr.mxu0 0.0
        %3353 = vmatpush1.xpose.msra.mxu0 0.0
        %3354 = vmatprep.subr.mxu0 0.0
        %3355 = vmatpush1.xpose.msra.mxu0 0.0
        %3356 = vmatprep.subr.mxu0 0.0
        %3357 = vmatpush1.xpose.msra.mxu0 0.0
        %3358 = vmatprep.subr.mxu0 0.0
        %3359 = vmatpush1.xpose.msra.mxu0 0.0
        %3360 = vmatprep.subr.mxu0 0.0
        %3361 = vmatpush1.xpose.msra.mxu0 0.0
        %3362 = vmatprep.subr.mxu0 0.0
        %3363 = vmatpush1.xpose.msra.mxu0 0.0
        %3364 = vmatprep.subr.mxu0 0.0
        %3365 = vmatpush1.xpose.msra.mxu0 0.0
        %3366 = vmatprep.subr.mxu0 0.0
        %3367 = vmatpush1.xpose.msra.mxu0 0.0
        %3368 = vmatprep.subr.mxu0 0.0
        %3369 = vmatpush1.xpose.msra.mxu0 0.0
        %3370 = vmatprep.subr.mxu0 0.0
        %3371 = vmatpush1.xpose.msra.mxu0 0.0
        %3372 = vmatprep.subr.mxu0 0.0
        %3373 = vmatpush1.xpose.msra.mxu0 0.0
        %3374 = vmatprep.subr.mxu0 0.0
        %3375 = vmatpush1.xpose.msra.mxu0 0.0
        %3376 = vmatprep.subr.mxu0 0.0
        %3377 = vmatpush1.xpose.msra.mxu0 0.0
        %3378 = vmatprep.subr.mxu0 0.0
        %3379 = vmatpush1.xpose.msra.mxu0 0.0
        %3380 = vmatprep.subr.mxu0 0.0
        %3381 = vmatpush1.xpose.msra.mxu0 0.0
        %3382 = vmatprep.subr.mxu0 0.0
        %3383 = vmatpush1.xpose.msra.mxu0 %v3350
        %3384 = vmatprep.subr.mxu0 0.0
        %3385 = vmatpush2.xpose.msra.mxu0 0.0
        %3386 = vmatprep.subr.mxu0 0.0
        %3387 = vmatpush2.xpose.msra.mxu0 0.0
        %3388 = vmatprep.subr.mxu0 0.0
        %3389 = vmatpush2.xpose.msra.mxu0 0.0
        %3390 = vmatprep.subr.mxu0 0.0
        %3391 = vmatpush2.xpose.msra.mxu0 0.0
        %3392 = vmatprep.subr.mxu0 0.0
        %3393 = vmatpush2.xpose.msra.mxu0 0.0
        %3394 = vmatprep.subr.mxu0 0.0
        %3395 = vmatpush2.xpose.msra.mxu0 0.0
        %3396 = vmatprep.subr.mxu0 0.0
        %3397 = vmatpush2.xpose.msra.mxu0 0.0
        %3398 = vmatprep.subr.mxu0 0.0
        %3399 = vmatpush2.xpose.msra.mxu0 0.0
        %3400 = vmatprep.subr.mxu0 0.0
        %3401 = vmatpush2.xpose.msra.mxu0 0.0
        %3402 = vmatprep.subr.mxu0 0.0
        %3403 = vmatpush2.xpose.msra.mxu0 0.0
        %3404 = vmatprep.subr.mxu0 0.0
        %3405 = vmatpush2.xpose.msra.mxu0 0.0
        %3406 = vmatprep.subr.mxu0 0.0
        %3407 = vmatpush2.xpose.msra.mxu0 0.0
        %3408 = vmatprep.subr.mxu0 0.0
        %3409 = vmatpush2.xpose.msra.mxu0 0.0
        %3410 = vmatprep.subr.mxu0 0.0
        %3411 = vmatpush2.xpose.msra.mxu0 0.0
        %3412 = vmatprep.subr.mxu0 0.0
        %3413 = vmatpush2.xpose.msra.mxu0 0.0
        %3414 = vmatprep.subr.mxu0 0.0
        %3415 = vmatpush2.xpose.msra.mxu0 0.0
        %3416 = vmatprep.mubr.f32.mxu0 0.0
        %3417 = vmatmul.mubr.f32.gmra.mxu0 %v3347
        %v3418 = vpop.f32.mrf.mxu0
        %v3419 = vadd.f32 0.0, %v3418
        %v3420 = vpop.f32.mrf.mxu0
        %3421 = vdwg.mxu0
        %v3422 = vmul.f32 %v3419, 0.17677669
        %v3423 = vsel %vm2959, %v3422, -inf
        %3424 = vmax.xlane.f32.xlu0 %v3423
        %v3425 = vpop.xlane.xlu0 %3424
        %v3426 = vsub.f32 %v3422, %v3425
        %v3427 = vmul.f32 %v3426, 1.442695
        %v3428 = vpow.pop %v3427
        %v3429 = vsel %vm2959, %v3428, 0.0
        %3430 = vadd.xlane.f32.xlu0 %v3429
        %v3431 = vpop.xlane.xlu0 %3430
        %v3432 = vrcp.pop %v3431
        %v3433 = vmul.f32 %v3428, %v3432
        %v3435 = vsel %vm2959, %v3433, 0
        %3437 = vmatprep.subr.mxu0 0.0
        %3438 = vmatpush1.msra.mxu0 0.0
        %3439 = vmatprep.subr.mxu0 0.0
        %3440 = vmatpush1.msra.mxu0 0.0
        %3441 = vmatprep.subr.mxu0 0.0
        %3442 = vmatpush1.msra.mxu0 0.0
        %3443 = vmatprep.subr.mxu0 0.0
        %3444 = vmatpush1.msra.mxu0 0.0
        %3445 = vmatprep.subr.mxu0 0.0
        %3446 = vmatpush1.msra.mxu0 0.0
        %3447 = vmatprep.subr.mxu0 0.0
        %3448 = vmatpush1.msra.mxu0 0.0
        %3449 = vmatprep.subr.mxu0 0.0
        %3450 = vmatpush1.msra.mxu0 0.0
        %3451 = vmatprep.subr.mxu0 0.0
        %3452 = vmatpush1.msra.mxu0 0.0
        %3453 = vmatprep.subr.mxu0 0.0
        %3454 = vmatpush1.msra.mxu0 0.0
        %3455 = vmatprep.subr.mxu0 0.0
        %3456 = vmatpush1.msra.mxu0 0.0
        %3457 = vmatprep.subr.mxu0 0.0
        %3458 = vmatpush1.msra.mxu0 0.0
        %3459 = vmatprep.subr.mxu0 0.0
        %3460 = vmatpush1.msra.mxu0 0.0
        %3461 = vmatprep.subr.mxu0 0.0
        %3462 = vmatpush1.msra.mxu0 0.0
        %3463 = vmatprep.subr.mxu0 0.0
        %3464 = vmatpush1.msra.mxu0 0.0
        %3465 = vmatprep.subr.mxu0 0.0
        %3466 = vmatpush1.msra.mxu0 0.0
        %3467 = vmatprep.subr.mxu0 0.0
        %3468 = vmatpush1.msra.mxu0 %v3343
        %3469 = vmatprep.subr.mxu0 0.0
        %3470 = vmatpush2.msra.mxu0 0.0
        %3471 = vmatprep.subr.mxu0 0.0
        %3472 = vmatpush2.msra.mxu0 0.0
        %3473 = vmatprep.subr.mxu0 0.0
        %3474 = vmatpush2.msra.mxu0 0.0
        %3475 = vmatprep.subr.mxu0 0.0
        %3476 = vmatpush2.msra.mxu0 0.0
        %3477 = vmatprep.subr.mxu0 0.0
        %3478 = vmatpush2.msra.mxu0 0.0
        %3479 = vmatprep.subr.mxu0 0.0
        %3480 = vmatpush2.msra.mxu0 0.0
        %3481 = vmatprep.subr.mxu0 0.0
        %3482 = vmatpush2.msra.mxu0 0.0
        %3483 = vmatprep.subr.mxu0 0.0
        %3484 = vmatpush2.msra.mxu0 0.0
        %3485 = vmatprep.subr.mxu0 0.0
        %3486 = vmatpush2.msra.mxu0 0.0
        %3487 = vmatprep.subr.mxu0 0.0
        %3488 = vmatpush2.msra.mxu0 0.0
        %3489 = vmatprep.subr.mxu0 0.0
        %3490 = vmatpush2.msra.mxu0 0.0
        %3491 = vmatprep.subr.mxu0 0.0
        %3492 = vmatpush2.msra.mxu0 0.0
        %3493 = vmatprep.subr.mxu0 0.0
        %3494 = vmatpush2.msra.mxu0 0.0
        %3495 = vmatprep.subr.mxu0 0.0
        %3496 = vmatpush2.msra.mxu0 0.0
        %3497 = vmatprep.subr.mxu0 0.0
        %3498 = vmatpush2.msra.mxu0 0.0
        %3499 = vmatprep.subr.mxu0 0.0
        %3500 = vmatpush2.msra.mxu0 0.0
        %3501 = vmatprep.mubr.f32.mxu0 0.0
        %3502 = vmatmul.mubr.f32.gmra.mxu0 %v3435
        %v3503 = vpop.f32.mrf.mxu0
        %v3504 = vadd.f32 0.0, %v3503
        %v3505 = vpop.f32.mrf.mxu0
        %3506 = vdwg.mxu0
        %s3507 = scalar_lea.vmem %s8, 64
        %v3508 = vld [vmem:[%s3507] sm:$0xff]
        %v3509 = vld [vmem:[%s3507 + $0x8] sm:$0xff]
        %v3510 = vld [vmem:[%s3507 + $0x10] sm:$0xff]
        %v3511 = vld [vmem:[%s3507 + $0x18] sm:$0xff]
        %3512 = vmatprep.subr.mxu0 0.0
        %3513 = vmatpush1.msra.mxu0 0.0
        %3514 = vmatprep.subr.mxu0 0.0
        %3515 = vmatpush1.msra.mxu0 0.0
        %3516 = vmatprep.subr.mxu0 0.0
        %3517 = vmatpush1.msra.mxu0 0.0
        %3518 = vmatprep.subr.mxu0 0.0
        %3519 = vmatpush1.msra.mxu0 0.0
        %3520 = vmatprep.subr.mxu0 0.0
        %3521 = vmatpush1.msra.mxu0 0.0
        %3522 = vmatprep.subr.mxu0 0.0
        %3523 = vmatpush1.msra.mxu0 0.0
        %3524 = vmatprep.subr.mxu0 0.0
        %3525 = vmatpush1.msra.mxu0 0.0
        %3526 = vmatprep.subr.mxu0 0.0
        %3527 = vmatpush1.msra.mxu0 0.0
        %3528 = vmatprep.subr.mxu0 0.0
        %3529 = vmatpush1.msra.mxu0 0.0
        %3530 = vmatprep.subr.mxu0 0.0
        %3531 = vmatpush1.msra.mxu0 0.0
        %3532 = vmatprep.subr.mxu0 0.0
        %3533 = vmatpush1.msra.mxu0 0.0
        %3534 = vmatprep.subr.mxu0 0.0
        %3535 = vmatpush1.msra.mxu0 0.0
        %3536 = vmatprep.subr.mxu0 0.0
        %3537 = vmatpush1.msra.mxu0 %v3511
        %3538 = vmatprep.subr.mxu0 0.0
        %3539 = vmatpush1.msra.mxu0 %v3510
        %3540 = vmatprep.subr.mxu0 0.0
        %3541 = vmatpush1.msra.mxu0 %v3509
        %3542 = vmatprep.subr.mxu0 0.0
        %3543 = vmatpush1.msra.mxu0 %v3508
        %3544 = vmatprep.subr.mxu0 0.0
        %3545 = vmatpush2.msra.mxu0 0.0
        %3546 = vmatprep.subr.mxu0 0.0
        %3547 = vmatpush2.msra.mxu0 0.0
        %3548 = vmatprep.subr.mxu0 0.0
        %3549 = vmatpush2.msra.mxu0 0.0
        %3550 = vmatprep.subr.mxu0 0.0
        %3551 = vmatpush2.msra.mxu0 0.0
        %3552 = vmatprep.subr.mxu0 0.0
        %3553 = vmatpush2.msra.mxu0 0.0
        %3554 = vmatprep.subr.mxu0 0.0
        %3555 = vmatpush2.msra.mxu0 0.0
        %3556 = vmatprep.subr.mxu0 0.0
        %3557 = vmatpush2.msra.mxu0 0.0
        %3558 = vmatprep.subr.mxu0 0.0
        %3559 = vmatpush2.msra.mxu0 0.0
        %3560 = vmatprep.subr.mxu0 0.0
        %3561 = vmatpush2.msra.mxu0 0.0
        %3562 = vmatprep.subr.mxu0 0.0
        %3563 = vmatpush2.msra.mxu0 0.0
        %3564 = vmatprep.subr.mxu0 0.0
        %3565 = vmatpush2.msra.mxu0 0.0
        %3566 = vmatprep.subr.mxu0 0.0
        %3567 = vmatpush2.msra.mxu0 0.0
        %3568 = vmatprep.subr.mxu0 0.0
        %3569 = vmatpush2.msra.mxu0 0.0
        %3570 = vmatprep.subr.mxu0 0.0
        %3571 = vmatpush2.msra.mxu0 0.0
        %3572 = vmatprep.subr.mxu0 0.0
        %3573 = vmatpush2.msra.mxu0 0.0
        %3574 = vmatprep.subr.mxu0 0.0
        %3575 = vmatpush2.msra.mxu0 0.0
        %3576 = vmatprep.mubr.f32.mxu0 0.0
        %3577 = vmatmul.mubr.f32.gmra.mxu0 %v2737
        %v3578 = vpop.f32.mrf.mxu0
        %v3579 = vadd.f32 0.0, %v3578
        %v3580 = vpop.f32.mrf.mxu0
        %3581 = vdwg.mxu0
        %s3582 = scalar_lea.vmem %s8, 192
        %v3583 = vld [vmem:[%s3582] sm:$0xff]
        %v3584 = vld [vmem:[%s3582 + $0x8] sm:$0xff]
        %v3585 = vld [vmem:[%s3582 + $0x10] sm:$0xff]
        %v3586 = vld [vmem:[%s3582 + $0x18] sm:$0xff]
        %3587 = vmatprep.subr.mxu0 0.0
        %3588 = vmatpush1.msra.mxu0 0.0
        %3589 = vmatprep.subr.mxu0 0.0
        %3590 = vmatpush1.msra.mxu0 0.0
        %3591 = vmatprep.subr.mxu0 0.0
        %3592 = vmatpush1.msra.mxu0 0.0
        %3593 = vmatprep.subr.mxu0 0.0
        %3594 = vmatpush1.msra.mxu0 0.0
        %3595 = vmatprep.subr.mxu0 0.0
        %3596 = vmatpush1.msra.mxu0 0.0
        %3597 = vmatprep.subr.mxu0 0.0
        %3598 = vmatpush1.msra.mxu0 0.0
        %3599 = vmatprep.subr.mxu0 0.0
        %3600 = vmatpush1.msra.mxu0 0.0
        %3601 = vmatprep.subr.mxu0 0.0
        %3602 = vmatpush1.msra.mxu0 0.0
        %3603 = vmatprep.subr.mxu0 0.0
        %3604 = vmatpush1.msra.mxu0 0.0
        %3605 = vmatprep.subr.mxu0 0.0
        %3606 = vmatpush1.msra.mxu0 0.0
        %3607 = vmatprep.subr.mxu0 0.0
        %3608 = vmatpush1.msra.mxu0 0.0
        %3609 = vmatprep.subr.mxu0 0.0
        %3610 = vmatpush1.msra.mxu0 0.0
        %3611 = vmatprep.subr.mxu0 0.0
        %3612 = vmatpush1.msra.mxu0 %v3586
        %3613 = vmatprep.subr.mxu0 0.0
        %3614 = vmatpush1.msra.mxu0 %v3585
        %3615 = vmatprep.subr.mxu0 0.0
        %3616 = vmatpush1.msra.mxu0 %v3584
        %3617 = vmatprep.subr.mxu0 0.0
        %3618 = vmatpush1.msra.mxu0 %v3583
        %3619 = vmatprep.subr.mxu0 0.0
        %3620 = vmatpush2.msra.mxu0 0.0
        %3621 = vmatprep.subr.mxu0 0.0
        %3622 = vmatpush2.msra.mxu0 0.0
        %3623 = vmatprep.subr.mxu0 0.0
        %3624 = vmatpush2.msra.mxu0 0.0
        %3625 = vmatprep.subr.mxu0 0.0
        %3626 = vmatpush2.msra.mxu0 0.0
        %3627 = vmatprep.subr.mxu0 0.0
        %3628 = vmatpush2.msra.mxu0 0.0
        %3629 = vmatprep.subr.mxu0 0.0
        %3630 = vmatpush2.msra.mxu0 0.0
        %3631 = vmatprep.subr.mxu0 0.0
        %3632 = vmatpush2.msra.mxu0 0.0
        %3633 = vmatprep.subr.mxu0 0.0
        %3634 = vmatpush2.msra.mxu0 0.0
        %3635 = vmatprep.subr.mxu0 0.0
        %3636 = vmatpush2.msra.mxu0 0.0
        %3637 = vmatprep.subr.mxu0 0.0
        %3638 = vmatpush2.msra.mxu0 0.0
        %3639 = vmatprep.subr.mxu0 0.0
        %3640 = vmatpush2.msra.mxu0 0.0
        %3641 = vmatprep.subr.mxu0 0.0
        %3642 = vmatpush2.msra.mxu0 0.0
        %3643 = vmatprep.subr.mxu0 0.0
        %3644 = vmatpush2.msra.mxu0 0.0
        %3645 = vmatprep.subr.mxu0 0.0
        %3646 = vmatpush2.msra.mxu0 0.0
        %3647 = vmatprep.subr.mxu0 0.0
        %3648 = vmatpush2.msra.mxu0 0.0
        %3649 = vmatprep.subr.mxu0 0.0
        %3650 = vmatpush2.msra.mxu0 0.0
        %3651 = vmatprep.mubr.f32.mxu0 0.0
        %3652 = vmatmul.mubr.f32.gmra.mxu0 %v2737
        %v3653 = vpop.f32.mrf.mxu0
        %v3654 = vadd.f32 0.0, %v3653
        %v3655 = vpop.f32.mrf.mxu0
        %3656 = vdwg.mxu0
        %s3657 = scalar_lea.vmem %s8, 320
        %v3658 = vld [vmem:[%s3657] sm:$0xff]
        %v3659 = vld [vmem:[%s3657 + $0x8] sm:$0xff]
        %v3660 = vld [vmem:[%s3657 + $0x10] sm:$0xff]
        %v3661 = vld [vmem:[%s3657 + $0x18] sm:$0xff]
        %3662 = vmatprep.subr.mxu0 0.0
        %3663 = vmatpush1.msra.mxu0 0.0
        %3664 = vmatprep.subr.mxu0 0.0
        %3665 = vmatpush1.msra.mxu0 0.0
        %3666 = vmatprep.subr.mxu0 0.0
        %3667 = vmatpush1.msra.mxu0 0.0
        %3668 = vmatprep.subr.mxu0 0.0
        %3669 = vmatpush1.msra.mxu0 0.0
        %3670 = vmatprep.subr.mxu0 0.0
        %3671 = vmatpush1.msra.mxu0 0.0
        %3672 = vmatprep.subr.mxu0 0.0
        %3673 = vmatpush1.msra.mxu0 0.0
        %3674 = vmatprep.subr.mxu0 0.0
        %3675 = vmatpush1.msra.mxu0 0.0
        %3676 = vmatprep.subr.mxu0 0.0
        %3677 = vmatpush1.msra.mxu0 0.0
        %3678 = vmatprep.subr.mxu0 0.0
        %3679 = vmatpush1.msra.mxu0 0.0
        %3680 = vmatprep.subr.mxu0 0.0
        %3681 = vmatpush1.msra.mxu0 0.0
        %3682 = vmatprep.subr.mxu0 0.0
        %3683 = vmatpush1.msra.mxu0 0.0
        %3684 = vmatprep.subr.mxu0 0.0
        %3685 = vmatpush1.msra.mxu0 0.0
        %3686 = vmatprep.subr.mxu0 0.0
        %3687 = vmatpush1.msra.mxu0 %v3661
        %3688 = vmatprep.subr.mxu0 0.0
        %3689 = vmatpush1.msra.mxu0 %v3660
        %3690 = vmatprep.subr.mxu0 0.0
        %3691 = vmatpush1.msra.mxu0 %v3659
        %3692 = vmatprep.subr.mxu0 0.0
        %3693 = vmatpush1.msra.mxu0 %v3658
        %3694 = vmatprep.subr.mxu0 0.0
        %3695 = vmatpush2.msra.mxu0 0.0
        %3696 = vmatprep.subr.mxu0 0.0
        %3697 = vmatpush2.msra.mxu0 0.0
        %3698 = vmatprep.subr.mxu0 0.0
        %3699 = vmatpush2.msra.mxu0 0.0
        %3700 = vmatprep.subr.mxu0 0.0
        %3701 = vmatpush2.msra.mxu0 0.0
        %3702 = vmatprep.subr.mxu0 0.0
        %3703 = vmatpush2.msra.mxu0 0.0
        %3704 = vmatprep.subr.mxu0 0.0
        %3705 = vmatpush2.msra.mxu0 0.0
        %3706 = vmatprep.subr.mxu0 0.0
        %3707 = vmatpush2.msra.mxu0 0.0
        %3708 = vmatprep.subr.mxu0 0.0
        %3709 = vmatpush2.msra.mxu0 0.0
        %3710 = vmatprep.subr.mxu0 0.0
        %3711 = vmatpush2.msra.mxu0 0.0
        %3712 = vmatprep.subr.mxu0 0.0
        %3713 = vmatpush2.msra.mxu0 0.0
        %3714 = vmatprep.subr.mxu0 0.0
        %3715 = vmatpush2.msra.mxu0 0.0
        %3716 = vmatprep.subr.mxu0 0.0
        %3717 = vmatpush2.msra.mxu0 0.0
        %3718 = vmatprep.subr.mxu0 0.0
        %3719 = vmatpush2.msra.mxu0 0.0
        %3720 = vmatprep.subr.mxu0 0.0
        %3721 = vmatpush2.msra.mxu0 0.0
        %3722 = vmatprep.subr.mxu0 0.0
        %3723 = vmatpush2.msra.mxu0 0.0
        %3724 = vmatprep.subr.mxu0 0.0
        %3725 = vmatpush2.msra.mxu0 0.0
        %3726 = vmatprep.mubr.f32.mxu0 0.0
        %3727 = vmatmul.mubr.f32.gmra.mxu0 %v2737
        %v3728 = vpop.f32.mrf.mxu0
        %v3729 = vadd.f32 0.0, %v3728
        %v3730 = vpop.f32.mrf.mxu0
        %3731 = vdwg.mxu0
        %v3733 = vsel %vm2959, %v3579, 0
        %v3736 = vsel %vm2959, %v3654, 0
        %3738 = vmatprep.subr.mxu0 0.0
        %3739 = vmatpush1.xpose.msra.mxu0 0.0
        %3740 = vmatprep.subr.mxu0 0.0
        %3741 = vmatpush1.xpose.msra.mxu0 0.0
        %3742 = vmatprep.subr.mxu0 0.0
        %3743 = vmatpush1.xpose.msra.mxu0 0.0
        %3744 = vmatprep.subr.mxu0 0.0
        %3745 = vmatpush1.xpose.msra.mxu0 0.0
        %3746 = vmatprep.subr.mxu0 0.0
        %3747 = vmatpush1.xpose.msra.mxu0 0.0
        %3748 = vmatprep.subr.mxu0 0.0
        %3749 = vmatpush1.xpose.msra.mxu0 0.0
        %3750 = vmatprep.subr.mxu0 0.0
        %3751 = vmatpush1.xpose.msra.mxu0 0.0
        %3752 = vmatprep.subr.mxu0 0.0
        %3753 = vmatpush1.xpose.msra.mxu0 0.0
        %3754 = vmatprep.subr.mxu0 0.0
        %3755 = vmatpush1.xpose.msra.mxu0 0.0
        %3756 = vmatprep.subr.mxu0 0.0
        %3757 = vmatpush1.xpose.msra.mxu0 0.0
        %3758 = vmatprep.subr.mxu0 0.0
        %3759 = vmatpush1.xpose.msra.mxu0 0.0
        %3760 = vmatprep.subr.mxu0 0.0
        %3761 = vmatpush1.xpose.msra.mxu0 0.0
        %3762 = vmatprep.subr.mxu0 0.0
        %3763 = vmatpush1.xpose.msra.mxu0 0.0
        %3764 = vmatprep.subr.mxu0 0.0
        %3765 = vmatpush1.xpose.msra.mxu0 0.0
        %3766 = vmatprep.subr.mxu0 0.0
        %3767 = vmatpush1.xpose.msra.mxu0 0.0
        %3768 = vmatprep.subr.mxu0 0.0
        %3769 = vmatpush1.xpose.msra.mxu0 %v3736
        %3770 = vmatprep.subr.mxu0 0.0
        %3771 = vmatpush2.xpose.msra.mxu0 0.0
        %3772 = vmatprep.subr.mxu0 0.0
        %3773 = vmatpush2.xpose.msra.mxu0 0.0
        %3774 = vmatprep.subr.mxu0 0.0
        %3775 = vmatpush2.xpose.msra.mxu0 0.0
        %3776 = vmatprep.subr.mxu0 0.0
        %3777 = vmatpush2.xpose.msra.mxu0 0.0
        %3778 = vmatprep.subr.mxu0 0.0
        %3779 = vmatpush2.xpose.msra.mxu0 0.0
        %3780 = vmatprep.subr.mxu0 0.0
        %3781 = vmatpush2.xpose.msra.mxu0 0.0
        %3782 = vmatprep.subr.mxu0 0.0
        %3783 = vmatpush2.xpose.msra.mxu0 0.0
        %3784 = vmatprep.subr.mxu0 0.0
        %3785 = vmatpush2.xpose.msra.mxu0 0.0
        %3786 = vmatprep.subr.mxu0 0.0
        %3787 = vmatpush2.xpose.msra.mxu0 0.0
        %3788 = vmatprep.subr.mxu0 0.0
        %3789 = vmatpush2.xpose.msra.mxu0 0.0
        %3790 = vmatprep.subr.mxu0 0.0
        %3791 = vmatpush2.xpose.msra.mxu0 0.0
        %3792 = vmatprep.subr.mxu0 0.0
        %3793 = vmatpush2.xpose.msra.mxu0 0.0
        %3794 = vmatprep.subr.mxu0 0.0
        %3795 = vmatpush2.xpose.msra.mxu0 0.0
        %3796 = vmatprep.subr.mxu0 0.0
        %3797 = vmatpush2.xpose.msra.mxu0 0.0
        %3798 = vmatprep.subr.mxu0 0.0
        %3799 = vmatpush2.xpose.msra.mxu0 0.0
        %3800 = vmatprep.subr.mxu0 0.0
        %3801 = vmatpush2.xpose.msra.mxu0 0.0
        %3802 = vmatprep.mubr.f32.mxu0 0.0
        %3803 = vmatmul.mubr.f32.gmra.mxu0 %v3733
        %v3804 = vpop.f32.mrf.mxu0
        %v3805 = vadd.f32 0.0, %v3804
        %v3806 = vpop.f32.mrf.mxu0
        %3807 = vdwg.mxu0
        %v3808 = vmul.f32 %v3805, 0.17677669
        %v3809 = vsel %vm2959, %v3808, -inf
        %3810 = vmax.xlane.f32.xlu0 %v3809
        %v3811 = vpop.xlane.xlu0 %3810
        %v3812 = vsub.f32 %v3808, %v3811
        %v3813 = vmul.f32 %v3812, 1.442695
        %v3814 = vpow.pop %v3813
        %v3815 = vsel %vm2959, %v3814, 0.0
        %3816 = vadd.xlane.f32.xlu0 %v3815
        %v3817 = vpop.xlane.xlu0 %3816
        %v3818 = vrcp.pop %v3817
        %v3819 = vmul.f32 %v3814, %v3818
        %v3821 = vsel %vm2959, %v3819, 0
        %3823 = vmatprep.subr.mxu0 0.0
        %3824 = vmatpush1.msra.mxu0 0.0
        %3825 = vmatprep.subr.mxu0 0.0
        %3826 = vmatpush1.msra.mxu0 0.0
        %3827 = vmatprep.subr.mxu0 0.0
        %3828 = vmatpush1.msra.mxu0 0.0
        %3829 = vmatprep.subr.mxu0 0.0
        %3830 = vmatpush1.msra.mxu0 0.0
        %3831 = vmatprep.subr.mxu0 0.0
        %3832 = vmatpush1.msra.mxu0 0.0
        %3833 = vmatprep.subr.mxu0 0.0
        %3834 = vmatpush1.msra.mxu0 0.0
        %3835 = vmatprep.subr.mxu0 0.0
        %3836 = vmatpush1.msra.mxu0 0.0
        %3837 = vmatprep.subr.mxu0 0.0
        %3838 = vmatpush1.msra.mxu0 0.0
        %3839 = vmatprep.subr.mxu0 0.0
        %3840 = vmatpush1.msra.mxu0 0.0
        %3841 = vmatprep.subr.mxu0 0.0
        %3842 = vmatpush1.msra.mxu0 0.0
        %3843 = vmatprep.subr.mxu0 0.0
        %3844 = vmatpush1.msra.mxu0 0.0
        %3845 = vmatprep.subr.mxu0 0.0
        %3846 = vmatpush1.msra.mxu0 0.0
        %3847 = vmatprep.subr.mxu0 0.0
        %3848 = vmatpush1.msra.mxu0 0.0
        %3849 = vmatprep.subr.mxu0 0.0
        %3850 = vmatpush1.msra.mxu0 0.0
        %3851 = vmatprep.subr.mxu0 0.0
        %3852 = vmatpush1.msra.mxu0 0.0
        %3853 = vmatprep.subr.mxu0 0.0
        %3854 = vmatpush1.msra.mxu0 %v3729
        %3855 = vmatprep.subr.mxu0 0.0
        %3856 = vmatpush2.msra.mxu0 0.0
        %3857 = vmatprep.subr.mxu0 0.0
        %3858 = vmatpush2.msra.mxu0 0.0
        %3859 = vmatprep.subr.mxu0 0.0
        %3860 = vmatpush2.msra.mxu0 0.0
        %3861 = vmatprep.subr.mxu0 0.0
        %3862 = vmatpush2.msra.mxu0 0.0
        %3863 = vmatprep.subr.mxu0 0.0
        %3864 = vmatpush2.msra.mxu0 0.0
        %3865 = vmatprep.subr.mxu0 0.0
        %3866 = vmatpush2.msra.mxu0 0.0
        %3867 = vmatprep.subr.mxu0 0.0
        %3868 = vmatpush2.msra.mxu0 0.0
        %3869 = vmatprep.subr.mxu0 0.0
        %3870 = vmatpush2.msra.mxu0 0.0
        %3871 = vmatprep.subr.mxu0 0.0
        %3872 = vmatpush2.msra.mxu0 0.0
        %3873 = vmatprep.subr.mxu0 0.0
        %3874 = vmatpush2.msra.mxu0 0.0
        %3875 = vmatprep.subr.mxu0 0.0
        %3876 = vmatpush2.msra.mxu0 0.0
        %3877 = vmatprep.subr.mxu0 0.0
        %3878 = vmatpush2.msra.mxu0 0.0
        %3879 = vmatprep.subr.mxu0 0.0
        %3880 = vmatpush2.msra.mxu0 0.0
        %3881 = vmatprep.subr.mxu0 0.0
        %3882 = vmatpush2.msra.mxu0 0.0
        %3883 = vmatprep.subr.mxu0 0.0
        %3884 = vmatpush2.msra.mxu0 0.0
        %3885 = vmatprep.subr.mxu0 0.0
        %3886 = vmatpush2.msra.mxu0 0.0
        %3887 = vmatprep.mubr.f32.mxu0 0.0
        %3888 = vmatmul.mubr.f32.gmra.mxu0 %v3821
        %v3889 = vpop.f32.mrf.mxu0
        %v3890 = vadd.f32 0.0, %v3889
        %v3891 = vpop.f32.mrf.mxu0
        %3892 = vdwg.mxu0
        %s3893 = scalar_lea.vmem %s8, 96
        %v3894 = vld [vmem:[%s3893] sm:$0xff]
        %v3895 = vld [vmem:[%s3893 + $0x8] sm:$0xff]
        %v3896 = vld [vmem:[%s3893 + $0x10] sm:$0xff]
        %v3897 = vld [vmem:[%s3893 + $0x18] sm:$0xff]
        %3898 = vmatprep.subr.mxu0 0.0
        %3899 = vmatpush1.msra.mxu0 0.0
        %3900 = vmatprep.subr.mxu0 0.0
        %3901 = vmatpush1.msra.mxu0 0.0
        %3902 = vmatprep.subr.mxu0 0.0
        %3903 = vmatpush1.msra.mxu0 0.0
        %3904 = vmatprep.subr.mxu0 0.0
        %3905 = vmatpush1.msra.mxu0 0.0
        %3906 = vmatprep.subr.mxu0 0.0
        %3907 = vmatpush1.msra.mxu0 0.0
        %3908 = vmatprep.subr.mxu0 0.0
        %3909 = vmatpush1.msra.mxu0 0.0
        %3910 = vmatprep.subr.mxu0 0.0
        %3911 = vmatpush1.msra.mxu0 0.0
        %3912 = vmatprep.subr.mxu0 0.0
        %3913 = vmatpush1.msra.mxu0 0.0
        %3914 = vmatprep.subr.mxu0 0.0
        %3915 = vmatpush1.msra.mxu0 0.0
        %3916 = vmatprep.subr.mxu0 0.0
        %3917 = vmatpush1.msra.mxu0 0.0
        %3918 = vmatprep.subr.mxu0 0.0
        %3919 = vmatpush1.msra.mxu0 0.0
        %3920 = vmatprep.subr.mxu0 0.0
        %3921 = vmatpush1.msra.mxu0 0.0
        %3922 = vmatprep.subr.mxu0 0.0
        %3923 = vmatpush1.msra.mxu0 %v3897
        %3924 = vmatprep.subr.mxu0 0.0
        %3925 = vmatpush1.msra.mxu0 %v3896
        %3926 = vmatprep.subr.mxu0 0.0
        %3927 = vmatpush1.msra.mxu0 %v3895
        %3928 = vmatprep.subr.mxu0 0.0
        %3929 = vmatpush1.msra.mxu0 %v3894
        %3930 = vmatprep.subr.mxu0 0.0
        %3931 = vmatpush2.msra.mxu0 0.0
        %3932 = vmatprep.subr.mxu0 0.0
        %3933 = vmatpush2.msra.mxu0 0.0
        %3934 = vmatprep.subr.mxu0 0.0
        %3935 = vmatpush2.msra.mxu0 0.0
        %3936 = vmatprep.subr.mxu0 0.0
        %3937 = vmatpush2.msra.mxu0 0.0
        %3938 = vmatprep.subr.mxu0 0.0
        %3939 = vmatpush2.msra.mxu0 0.0
        %3940 = vmatprep.subr.mxu0 0.0
        %3941 = vmatpush2.msra.mxu0 0.0
        %3942 = vmatprep.subr.mxu0 0.0
        %3943 = vmatpush2.msra.mxu0 0.0
        %3944 = vmatprep.subr.mxu0 0.0
        %3945 = vmatpush2.msra.mxu0 0.0
        %3946 = vmatprep.subr.mxu0 0.0
        %3947 = vmatpush2.msra.mxu0 0.0
        %3948 = vmatprep.subr.mxu0 0.0
        %3949 = vmatpush2.msra.mxu0 0.0
        %3950 = vmatprep.subr.mxu0 0.0
        %3951 = vmatpush2.msra.mxu0 0.0
        %3952 = vmatprep.subr.mxu0 0.0
        %3953 = vmatpush2.msra.mxu0 0.0
        %3954 = vmatprep.subr.mxu0 0.0
        %3955 = vmatpush2.msra.mxu0 0.0
        %3956 = vmatprep.subr.mxu0 0.0
        %3957 = vmatpush2.msra.mxu0 0.0
        %3958 = vmatprep.subr.mxu0 0.0
        %3959 = vmatpush2.msra.mxu0 0.0
        %3960 = vmatprep.subr.mxu0 0.0
        %3961 = vmatpush2.msra.mxu0 0.0
        %3962 = vmatprep.mubr.f32.mxu0 0.0
        %3963 = vmatmul.mubr.f32.gmra.mxu0 %v2737
        %v3964 = vpop.f32.mrf.mxu0
        %v3965 = vadd.f32 0.0, %v3964
        %v3966 = vpop.f32.mrf.mxu0
        %3967 = vdwg.mxu0
        %s3968 = scalar_lea.vmem %s8, 224
        %v3969 = vld [vmem:[%s3968] sm:$0xff]
        %v3970 = vld [vmem:[%s3968 + $0x8] sm:$0xff]
        %v3971 = vld [vmem:[%s3968 + $0x10] sm:$0xff]
        %v3972 = vld [vmem:[%s3968 + $0x18] sm:$0xff]
        %3973 = vmatprep.subr.mxu0 0.0
        %3974 = vmatpush1.msra.mxu0 0.0
        %3975 = vmatprep.subr.mxu0 0.0
        %3976 = vmatpush1.msra.mxu0 0.0
        %3977 = vmatprep.subr.mxu0 0.0
        %3978 = vmatpush1.msra.mxu0 0.0
        %3979 = vmatprep.subr.mxu0 0.0
        %3980 = vmatpush1.msra.mxu0 0.0
        %3981 = vmatprep.subr.mxu0 0.0
        %3982 = vmatpush1.msra.mxu0 0.0
        %3983 = vmatprep.subr.mxu0 0.0
        %3984 = vmatpush1.msra.mxu0 0.0
        %3985 = vmatprep.subr.mxu0 0.0
        %3986 = vmatpush1.msra.mxu0 0.0
        %3987 = vmatprep.subr.mxu0 0.0
        %3988 = vmatpush1.msra.mxu0 0.0
        %3989 = vmatprep.subr.mxu0 0.0
        %3990 = vmatpush1.msra.mxu0 0.0
        %3991 = vmatprep.subr.mxu0 0.0
        %3992 = vmatpush1.msra.mxu0 0.0
        %3993 = vmatprep.subr.mxu0 0.0
        %3994 = vmatpush1.msra.mxu0 0.0
        %3995 = vmatprep.subr.mxu0 0.0
        %3996 = vmatpush1.msra.mxu0 0.0
        %3997 = vmatprep.subr.mxu0 0.0
        %3998 = vmatpush1.msra.mxu0 %v3972
        %3999 = vmatprep.subr.mxu0 0.0
        %4000 = vmatpush1.msra.mxu0 %v3971
        %4001 = vmatprep.subr.mxu0 0.0
        %4002 = vmatpush1.msra.mxu0 %v3970
        %4003 = vmatprep.subr.mxu0 0.0
        %4004 = vmatpush1.msra.mxu0 %v3969
        %4005 = vmatprep.subr.mxu0 0.0
        %4006 = vmatpush2.msra.mxu0 0.0
        %4007 = vmatprep.subr.mxu0 0.0
        %4008 = vmatpush2.msra.mxu0 0.0
        %4009 = vmatprep.subr.mxu0 0.0
        %4010 = vmatpush2.msra.mxu0 0.0
        %4011 = vmatprep.subr.mxu0 0.0
        %4012 = vmatpush2.msra.mxu0 0.0
        %4013 = vmatprep.subr.mxu0 0.0
        %4014 = vmatpush2.msra.mxu0 0.0
        %4015 = vmatprep.subr.mxu0 0.0
        %4016 = vmatpush2.msra.mxu0 0.0
        %4017 = vmatprep.subr.mxu0 0.0
        %4018 = vmatpush2.msra.mxu0 0.0
        %4019 = vmatprep.subr.mxu0 0.0
        %4020 = vmatpush2.msra.mxu0 0.0
        %4021 = vmatprep.subr.mxu0 0.0
        %4022 = vmatpush2.msra.mxu0 0.0
        %4023 = vmatprep.subr.mxu0 0.0
        %4024 = vmatpush2.msra.mxu0 0.0
        %4025 = vmatprep.subr.mxu0 0.0
        %4026 = vmatpush2.msra.mxu0 0.0
        %4027 = vmatprep.subr.mxu0 0.0
        %4028 = vmatpush2.msra.mxu0 0.0
        %4029 = vmatprep.subr.mxu0 0.0
        %4030 = vmatpush2.msra.mxu0 0.0
        %4031 = vmatprep.subr.mxu0 0.0
        %4032 = vmatpush2.msra.mxu0 0.0
        %4033 = vmatprep.subr.mxu0 0.0
        %4034 = vmatpush2.msra.mxu0 0.0
        %4035 = vmatprep.subr.mxu0 0.0
        %4036 = vmatpush2.msra.mxu0 0.0
        %4037 = vmatprep.mubr.f32.mxu0 0.0
        %4038 = vmatmul.mubr.f32.gmra.mxu0 %v2737
        %v4039 = vpop.f32.mrf.mxu0
        %v4040 = vadd.f32 0.0, %v4039
        %v4041 = vpop.f32.mrf.mxu0
        %4042 = vdwg.mxu0
        %s4043 = scalar_lea.vmem %s8, 352
        %v4044 = vld [vmem:[%s4043] sm:$0xff]
        %v4045 = vld [vmem:[%s4043 + $0x8] sm:$0xff]
        %v4046 = vld [vmem:[%s4043 + $0x10] sm:$0xff]
        %v4047 = vld [vmem:[%s4043 + $0x18] sm:$0xff]
        %4048 = vmatprep.subr.mxu0 0.0
        %4049 = vmatpush1.msra.mxu0 0.0
        %4050 = vmatprep.subr.mxu0 0.0
        %4051 = vmatpush1.msra.mxu0 0.0
        %4052 = vmatprep.subr.mxu0 0.0
        %4053 = vmatpush1.msra.mxu0 0.0
        %4054 = vmatprep.subr.mxu0 0.0
        %4055 = vmatpush1.msra.mxu0 0.0
        %4056 = vmatprep.subr.mxu0 0.0
        %4057 = vmatpush1.msra.mxu0 0.0
        %4058 = vmatprep.subr.mxu0 0.0
        %4059 = vmatpush1.msra.mxu0 0.0
        %4060 = vmatprep.subr.mxu0 0.0
        %4061 = vmatpush1.msra.mxu0 0.0
        %4062 = vmatprep.subr.mxu0 0.0
        %4063 = vmatpush1.msra.mxu0 0.0
        %4064 = vmatprep.subr.mxu0 0.0
        %4065 = vmatpush1.msra.mxu0 0.0
        %4066 = vmatprep.subr.mxu0 0.0
        %4067 = vmatpush1.msra.mxu0 0.0
        %4068 = vmatprep.subr.mxu0 0.0
        %4069 = vmatpush1.msra.mxu0 0.0
        %4070 = vmatprep.subr.mxu0 0.0
        %4071 = vmatpush1.msra.mxu0 0.0
        %4072 = vmatprep.subr.mxu0 0.0
        %4073 = vmatpush1.msra.mxu0 %v4047
        %4074 = vmatprep.subr.mxu0 0.0
        %4075 = vmatpush1.msra.mxu0 %v4046
        %4076 = vmatprep.subr.mxu0 0.0
        %4077 = vmatpush1.msra.mxu0 %v4045
        %4078 = vmatprep.subr.mxu0 0.0
        %4079 = vmatpush1.msra.mxu0 %v4044
        %4080 = vmatprep.subr.mxu0 0.0
        %4081 = vmatpush2.msra.mxu0 0.0
        %4082 = vmatprep.subr.mxu0 0.0
        %4083 = vmatpush2.msra.mxu0 0.0
        %4084 = vmatprep.subr.mxu0 0.0
        %4085 = vmatpush2.msra.mxu0 0.0
        %4086 = vmatprep.subr.mxu0 0.0
        %4087 = vmatpush2.msra.mxu0 0.0
        %4088 = vmatprep.subr.mxu0 0.0
        %4089 = vmatpush2.msra.mxu0 0.0
        %4090 = vmatprep.subr.mxu0 0.0
        %4091 = vmatpush2.msra.mxu0 0.0
        %4092 = vmatprep.subr.mxu0 0.0
        %4093 = vmatpush2.msra.mxu0 0.0
        %4094 = vmatprep.subr.mxu0 0.0
        %4095 = vmatpush2.msra.mxu0 0.0
        %4096 = vmatprep.subr.mxu0 0.0
        %4097 = vmatpush2.msra.mxu0 0.0
        %4098 = vmatprep.subr.mxu0 0.0
        %4099 = vmatpush2.msra.mxu0 0.0
        %4100 = vmatprep.subr.mxu0 0.0
        %4101 = vmatpush2.msra.mxu0 0.0
        %4102 = vmatprep.subr.mxu0 0.0
        %4103 = vmatpush2.msra.mxu0 0.0
        %4104 = vmatprep.subr.mxu0 0.0
        %4105 = vmatpush2.msra.mxu0 0.0
        %4106 = vmatprep.subr.mxu0 0.0
        %4107 = vmatpush2.msra.mxu0 0.0
        %4108 = vmatprep.subr.mxu0 0.0
        %4109 = vmatpush2.msra.mxu0 0.0
        %4110 = vmatprep.subr.mxu0 0.0
        %4111 = vmatpush2.msra.mxu0 0.0
        %4112 = vmatprep.mubr.f32.mxu0 0.0
        %4113 = vmatmul.mubr.f32.gmra.mxu0 %v2737
        %v4114 = vpop.f32.mrf.mxu0
        %v4115 = vadd.f32 0.0, %v4114
        %v4116 = vpop.f32.mrf.mxu0
        %4117 = vdwg.mxu0
        %v4119 = vsel %vm2959, %v3965, 0
        %v4122 = vsel %vm2959, %v4040, 0
        %4124 = vmatprep.subr.mxu0 0.0
        %4125 = vmatpush1.xpose.msra.mxu0 0.0
        %4126 = vmatprep.subr.mxu0 0.0
        %4127 = vmatpush1.xpose.msra.mxu0 0.0
        %4128 = vmatprep.subr.mxu0 0.0
        %4129 = vmatpush1.xpose.msra.mxu0 0.0
        %4130 = vmatprep.subr.mxu0 0.0
        %4131 = vmatpush1.xpose.msra.mxu0 0.0
        %4132 = vmatprep.subr.mxu0 0.0
        %4133 = vmatpush1.xpose.msra.mxu0 0.0
        %4134 = vmatprep.subr.mxu0 0.0
        %4135 = vmatpush1.xpose.msra.mxu0 0.0
        %4136 = vmatprep.subr.mxu0 0.0
        %4137 = vmatpush1.xpose.msra.mxu0 0.0
        %4138 = vmatprep.subr.mxu0 0.0
        %4139 = vmatpush1.xpose.msra.mxu0 0.0
        %4140 = vmatprep.subr.mxu0 0.0
        %4141 = vmatpush1.xpose.msra.mxu0 0.0
        %4142 = vmatprep.subr.mxu0 0.0
        %4143 = vmatpush1.xpose.msra.mxu0 0.0
        %4144 = vmatprep.subr.mxu0 0.0
        %4145 = vmatpush1.xpose.msra.mxu0 0.0
        %4146 = vmatprep.subr.mxu0 0.0
        %4147 = vmatpush1.xpose.msra.mxu0 0.0
        %4148 = vmatprep.subr.mxu0 0.0
        %4149 = vmatpush1.xpose.msra.mxu0 0.0
        %4150 = vmatprep.subr.mxu0 0.0
        %4151 = vmatpush1.xpose.msra.mxu0 0.0
        %4152 = vmatprep.subr.mxu0 0.0
        %4153 = vmatpush1.xpose.msra.mxu0 0.0
        %4154 = vmatprep.subr.mxu0 0.0
        %4155 = vmatpush1.xpose.msra.mxu0 %v4122
        %4156 = vmatprep.subr.mxu0 0.0
        %4157 = vmatpush2.xpose.msra.mxu0 0.0
        %4158 = vmatprep.subr.mxu0 0.0
        %4159 = vmatpush2.xpose.msra.mxu0 0.0
        %4160 = vmatprep.subr.mxu0 0.0
        %4161 = vmatpush2.xpose.msra.mxu0 0.0
        %4162 = vmatprep.subr.mxu0 0.0
        %4163 = vmatpush2.xpose.msra.mxu0 0.0
        %4164 = vmatprep.subr.mxu0 0.0
        %4165 = vmatpush2.xpose.msra.mxu0 0.0
        %4166 = vmatprep.subr.mxu0 0.0
        %4167 = vmatpush2.xpose.msra.mxu0 0.0
        %4168 = vmatprep.subr.mxu0 0.0
        %4169 = vmatpush2.xpose.msra.mxu0 0.0
        %4170 = vmatprep.subr.mxu0 0.0
        %4171 = vmatpush2.xpose.msra.mxu0 0.0
        %4172 = vmatprep.subr.mxu0 0.0
        %4173 = vmatpush2.xpose.msra.mxu0 0.0
        %4174 = vmatprep.subr.mxu0 0.0
        %4175 = vmatpush2.xpose.msra.mxu0 0.0
        %4176 = vmatprep.subr.mxu0 0.0
        %4177 = vmatpush2.xpose.msra.mxu0 0.0
        %4178 = vmatprep.subr.mxu0 0.0
        %4179 = vmatpush2.xpose.msra.mxu0 0.0
        %4180 = vmatprep.subr.mxu0 0.0
        %4181 = vmatpush2.xpose.msra.mxu0 0.0
        %4182 = vmatprep.subr.mxu0 0.0
        %4183 = vmatpush2.xpose.msra.mxu0 0.0
        %4184 = vmatprep.subr.mxu0 0.0
        %4185 = vmatpush2.xpose.msra.mxu0 0.0
        %4186 = vmatprep.subr.mxu0 0.0
        %4187 = vmatpush2.xpose.msra.mxu0 0.0
        %4188 = vmatprep.mubr.f32.mxu0 0.0
        %4189 = vmatmul.mubr.f32.gmra.mxu0 %v4119
        %v4190 = vpop.f32.mrf.mxu0
        %v4191 = vadd.f32 0.0, %v4190
        %v4192 = vpop.f32.mrf.mxu0
        %4193 = vdwg.mxu0
        %v4194 = vmul.f32 %v4191, 0.17677669
        %v4195 = vsel %vm2959, %v4194, -inf
        %4196 = vmax.xlane.f32.xlu0 %v4195
        %v4197 = vpop.xlane.xlu0 %4196
        %v4198 = vsub.f32 %v4194, %v4197
        %v4199 = vmul.f32 %v4198, 1.442695
        %v4200 = vpow.pop %v4199
        %v4201 = vsel %vm2959, %v4200, 0.0
        %4202 = vadd.xlane.f32.xlu0 %v4201
        %v4203 = vpop.xlane.xlu0 %4202
        %v4204 = vrcp.pop %v4203
        %v4205 = vmul.f32 %v4200, %v4204
        %v4207 = vsel %vm2959, %v4205, 0
        %4209 = vmatprep.subr.mxu0 0.0
        %4210 = vmatpush1.msra.mxu0 0.0
        %4211 = vmatprep.subr.mxu0 0.0
        %4212 = vmatpush1.msra.mxu0 0.0
        %4213 = vmatprep.subr.mxu0 0.0
        %4214 = vmatpush1.msra.mxu0 0.0
        %4215 = vmatprep.subr.mxu0 0.0
        %4216 = vmatpush1.msra.mxu0 0.0
        %4217 = vmatprep.subr.mxu0 0.0
        %4218 = vmatpush1.msra.mxu0 0.0
        %4219 = vmatprep.subr.mxu0 0.0
        %4220 = vmatpush1.msra.mxu0 0.0
        %4221 = vmatprep.subr.mxu0 0.0
        %4222 = vmatpush1.msra.mxu0 0.0
        %4223 = vmatprep.subr.mxu0 0.0
        %4224 = vmatpush1.msra.mxu0 0.0
        %4225 = vmatprep.subr.mxu0 0.0
        %4226 = vmatpush1.msra.mxu0 0.0
        %4227 = vmatprep.subr.mxu0 0.0
        %4228 = vmatpush1.msra.mxu0 0.0
        %4229 = vmatprep.subr.mxu0 0.0
        %4230 = vmatpush1.msra.mxu0 0.0
        %4231 = vmatprep.subr.mxu0 0.0
        %4232 = vmatpush1.msra.mxu0 0.0
        %4233 = vmatprep.subr.mxu0 0.0
        %4234 = vmatpush1.msra.mxu0 0.0
        %4235 = vmatprep.subr.mxu0 0.0
        %4236 = vmatpush1.msra.mxu0 0.0
        %4237 = vmatprep.subr.mxu0 0.0
        %4238 = vmatpush1.msra.mxu0 0.0
        %4239 = vmatprep.subr.mxu0 0.0
        %4240 = vmatpush1.msra.mxu0 %v4115
        %4241 = vmatprep.subr.mxu0 0.0
        %4242 = vmatpush2.msra.mxu0 0.0
        %4243 = vmatprep.subr.mxu0 0.0
        %4244 = vmatpush2.msra.mxu0 0.0
        %4245 = vmatprep.subr.mxu0 0.0
        %4246 = vmatpush2.msra.mxu0 0.0
        %4247 = vmatprep.subr.mxu0 0.0
        %4248 = vmatpush2.msra.mxu0 0.0
        %4249 = vmatprep.subr.mxu0 0.0
        %4250 = vmatpush2.msra.mxu0 0.0
        %4251 = vmatprep.subr.mxu0 0.0
        %4252 = vmatpush2.msra.mxu0 0.0
        %4253 = vmatprep.subr.mxu0 0.0
        %4254 = vmatpush2.msra.mxu0 0.0
        %4255 = vmatprep.subr.mxu0 0.0
        %4256 = vmatpush2.msra.mxu0 0.0
        %4257 = vmatprep.subr.mxu0 0.0
        %4258 = vmatpush2.msra.mxu0 0.0
        %4259 = vmatprep.subr.mxu0 0.0
        %4260 = vmatpush2.msra.mxu0 0.0
        %4261 = vmatprep.subr.mxu0 0.0
        %4262 = vmatpush2.msra.mxu0 0.0
        %4263 = vmatprep.subr.mxu0 0.0
        %4264 = vmatpush2.msra.mxu0 0.0
        %4265 = vmatprep.subr.mxu0 0.0
        %4266 = vmatpush2.msra.mxu0 0.0
        %4267 = vmatprep.subr.mxu0 0.0
        %4268 = vmatpush2.msra.mxu0 0.0
        %4269 = vmatprep.subr.mxu0 0.0
        %4270 = vmatpush2.msra.mxu0 0.0
        %4271 = vmatprep.subr.mxu0 0.0
        %4272 = vmatpush2.msra.mxu0 0.0
        %4273 = vmatprep.mubr.f32.mxu0 0.0
        %4274 = vmatmul.mubr.f32.gmra.mxu0 %v4207
        %v4275 = vpop.f32.mrf.mxu0
        %v4276 = vadd.f32 0.0, %v4275
        %v4277 = vpop.f32.mrf.mxu0
        %4278 = vdwg.mxu0
        %4280 = vrot.lane.b32.xlu0 %v3504, 8
        %v4281 = vpop.permute.xlu0 %4280
        %4284 = vrot.lane.b32.xlu0 %v3890, 16
        %v4285 = vpop.permute.xlu0 %4284
        %4288 = vrot.lane.b32.xlu0 %v4276, 24
        %v4289 = vpop.permute.xlu0 %4288
        %v4291 = vsel %vm2959, %v3118, %v4281
        %v4292 = vsel %vm2261, %v4291, %v4285
        %vm4293 = vcmask 195584
        %v4294 = vsel %vm4293, %v4292, %v4289
        %v4295 = vld [vmem:[%s7 + $0x3] sm:$0x1]
        %v4296 = vld [vmem:[%s7 + $0x4] sm:$0x1]
        %v4297 = vsel %vm1390, %v4294, 0.0
        %4298 = vadd.xlane.f32.xlu0 %v4297
        %v4299 = vpop.xlane.xlu0 %4298
        %v4300 = vrcp.pop 32.0
        %v4301 = vmul.f32 %v4299, %v4300
        %v4302 = vsub.f32 %v4294, %v4301
        %v4303 = vmul.f32 %v4302, %v4302
        %v4304 = vsel %vm1390, %v4303, 0.0
        %4305 = vadd.xlane.f32.xlu0 %v4304
        %v4306 = vpop.xlane.xlu0 %4305
        %v4307 = vmul.f32 %v4306, %v4300
        %v4308 = vadd.f32 %v4307, 1e-05
        %v4309 = vrsqrt.pop %v4308
        %v4310 = vmul.f32 %v4302, %v4309
        %v4311 = vlaneseq
        %v4312 = vshrl.u32 %v4311, 7
        %v4313 = vsub.s32 0, %v4312
        %v4314 = vrot.slane %v4295, %v4313
        %v4315 = vmul.f32 %v4310, %v4314
        %v4316 = vlaneseq
        %v4317 = vshrl.u32 %v4316, 7
        %v4318 = vsub.s32 0, %v4317
        %v4319 = vrot.slane %v4296, %v4318
        %v4320 = vadd.f32 %v4315, %v4319
        %v4321 = vadd.f32 %v2729, %v4320
        %v4322 = vld [vmem:[%s7 + $0x5] sm:$0x1]
        %v4323 = vld [vmem:[%s7 + $0x6] sm:$0x1]
        %v4324 = vsel %vm1390, %v4321, 0.0
        %4325 = vadd.xlane.f32.xlu0 %v4324
        %v4326 = vpop.xlane.xlu0 %4325
        %v4327 = vmul.f32 %v4326, %v4300
        %v4328 = vsub.f32 %v4321, %v4327
        %v4329 = vmul.f32 %v4328, %v4328
        %v4330 = vsel %vm1390, %v4329, 0.0
        %4331 = vadd.xlane.f32.xlu0 %v4330
        %v4332 = vpop.xlane.xlu0 %4331
        %v4333 = vmul.f32 %v4332, %v4300
        %v4334 = vadd.f32 %v4333, 1e-05
        %v4335 = vrsqrt.pop %v4334
        %v4336 = vmul.f32 %v4328, %v4335
        %v4337 = vlaneseq
        %v4338 = vshrl.u32 %v4337, 7
        %v4339 = vsub.s32 0, %v4338
        %v4340 = vrot.slane %v4322, %v4339
        %v4341 = vmul.f32 %v4336, %v4340
        %v4342 = vlaneseq
        %v4343 = vshrl.u32 %v4342, 7
        %v4344 = vsub.s32 0, %v4343
        %v4345 = vrot.slane %v4323, %v4344
        %v4346 = vadd.f32 %v4341, %v4345
        %v4347 = vld [vmem:[%s9] sm:$0xff]
        %v4348 = vld [vmem:[%s9 + $0x8] sm:$0xff]
        %v4349 = vld [vmem:[%s9 + $0x10] sm:$0xff]
        %v4350 = vld [vmem:[%s9 + $0x18] sm:$0xff]
        %v4351 = vld [vmem:[%s9 + $0x20] sm:$0x1]
        %v4352 = vlaneseq
        %v4353 = vshrl.u32 %v4352, 7
        %v4354 = vsub.s32 0, %v4353
        %v4355 = vrot.slane %v4351, %v4354
        %v4357 = vsel %vm1390, %v4346, 0
        %4359 = vmatprep.subr.mxu0 0.0
        %4360 = vmatpush1.msra.mxu0 0.0
        %4361 = vmatprep.subr.mxu0 0.0
        %4362 = vmatpush1.msra.mxu0 0.0
        %4363 = vmatprep.subr.mxu0 0.0
        %4364 = vmatpush1.msra.mxu0 0.0
        %4365 = vmatprep.subr.mxu0 0.0
        %4366 = vmatpush1.msra.mxu0 0.0
        %4367 = vmatprep.subr.mxu0 0.0
        %4368 = vmatpush1.msra.mxu0 0.0
        %4369 = vmatprep.subr.mxu0 0.0
        %4370 = vmatpush1.msra.mxu0 0.0
        %4371 = vmatprep.subr.mxu0 0.0
        %4372 = vmatpush1.msra.mxu0 0.0
        %4373 = vmatprep.subr.mxu0 0.0
        %4374 = vmatpush1.msra.mxu0 0.0
        %4375 = vmatprep.subr.mxu0 0.0
        %4376 = vmatpush1.msra.mxu0 0.0
        %4377 = vmatprep.subr.mxu0 0.0
        %4378 = vmatpush1.msra.mxu0 0.0
        %4379 = vmatprep.subr.mxu0 0.0
        %4380 = vmatpush1.msra.mxu0 0.0
        %4381 = vmatprep.subr.mxu0 0.0
        %4382 = vmatpush1.msra.mxu0 0.0
        %4383 = vmatprep.subr.mxu0 0.0
        %4384 = vmatpush1.msra.mxu0 %v4350
        %4385 = vmatprep.subr.mxu0 0.0
        %4386 = vmatpush1.msra.mxu0 %v4349
        %4387 = vmatprep.subr.mxu0 0.0
        %4388 = vmatpush1.msra.mxu0 %v4348
        %4389 = vmatprep.subr.mxu0 0.0
        %4390 = vmatpush1.msra.mxu0 %v4347
        %4391 = vmatprep.subr.mxu0 0.0
        %4392 = vmatpush2.msra.mxu0 0.0
        %4393 = vmatprep.subr.mxu0 0.0
        %4394 = vmatpush2.msra.mxu0 0.0
        %4395 = vmatprep.subr.mxu0 0.0
        %4396 = vmatpush2.msra.mxu0 0.0
        %4397 = vmatprep.subr.mxu0 0.0
        %4398 = vmatpush2.msra.mxu0 0.0
        %4399 = vmatprep.subr.mxu0 0.0
        %4400 = vmatpush2.msra.mxu0 0.0
        %4401 = vmatprep.subr.mxu0 0.0
        %4402 = vmatpush2.msra.mxu0 0.0
        %4403 = vmatprep.subr.mxu0 0.0
        %4404 = vmatpush2.msra.mxu0 0.0
        %4405 = vmatprep.subr.mxu0 0.0
        %4406 = vmatpush2.msra.mxu0 0.0
        %4407 = vmatprep.subr.mxu0 0.0
        %4408 = vmatpush2.msra.mxu0 0.0
        %4409 = vmatprep.subr.mxu0 0.0
        %4410 = vmatpush2.msra.mxu0 0.0
        %4411 = vmatprep.subr.mxu0 0.0
        %4412 = vmatpush2.msra.mxu0 0.0
        %4413 = vmatprep.subr.mxu0 0.0
        %4414 = vmatpush2.msra.mxu0 0.0
        %4415 = vmatprep.subr.mxu0 0.0
        %4416 = vmatpush2.msra.mxu0 0.0
        %4417 = vmatprep.subr.mxu0 0.0
        %4418 = vmatpush2.msra.mxu0 0.0
        %4419 = vmatprep.subr.mxu0 0.0
        %4420 = vmatpush2.msra.mxu0 0.0
        %4421 = vmatprep.subr.mxu0 0.0
        %4422 = vmatpush2.msra.mxu0 0.0
        %4423 = vmatprep.mubr.f32.mxu0 0.0
        %4424 = vmatmul.mubr.f32.gmra.mxu0 %v4357
        %v4425 = vpop.f32.mrf.mxu0
        %v4426 = vadd.f32 %v4355, %v4425
        %v4427 = vpop.f32.mrf.mxu0
        %4428 = vdwg.mxu0
        %v4429 = vmax.f32 %v4426, 0.0
        %v4430 = vld [vmem:[%s7 + $0x40] sm:$0xff]
        %v4431 = vld [vmem:[%s7 + $0x48] sm:$0xff]
        %v4432 = vld [vmem:[%s7 + $0x50] sm:$0xff]
        %v4433 = vld [vmem:[%s7 + $0x58] sm:$0xff]
        %v4434 = vld [vmem:[%s7 + $0x60] sm:$0xff]
        %v4435 = vld [vmem:[%s7 + $0x68] sm:$0xff]
        %v4436 = vld [vmem:[%s7 + $0x70] sm:$0xff]
        %v4437 = vld [vmem:[%s7 + $0x78] sm:$0xff]
        %v4438 = vld [vmem:[%s7 + $0x9] sm:$0x1]
        %v4439 = vlaneseq
        %v4440 = vshrl.u32 %v4439, 7
        %v4441 = vsub.s32 0, %v4440
        %v4442 = vrot.slane %v4438, %v4441
        %v4444 = vsel %vm424, %v4429, 0
        %4446 = vmatprep.subr.mxu0 0.0
        %4447 = vmatpush1.msra.mxu0 0.0
        %4448 = vmatprep.subr.mxu0 0.0
        %4449 = vmatpush1.msra.mxu0 0.0
        %4450 = vmatprep.subr.mxu0 0.0
        %4451 = vmatpush1.msra.mxu0 0.0
        %4452 = vmatprep.subr.mxu0 0.0
        %4453 = vmatpush1.msra.mxu0 0.0
        %4454 = vmatprep.subr.mxu0 0.0
        %4455 = vmatpush1.msra.mxu0 0.0
        %4456 = vmatprep.subr.mxu0 0.0
        %4457 = vmatpush1.msra.mxu0 0.0
        %4458 = vmatprep.subr.mxu0 0.0
        %4459 = vmatpush1.msra.mxu0 0.0
        %4460 = vmatprep.subr.mxu0 0.0
        %4461 = vmatpush1.msra.mxu0 0.0
        %4462 = vmatprep.subr.mxu0 0.0
        %4463 = vmatpush1.msra.mxu0 %v4437
        %4464 = vmatprep.subr.mxu0 0.0
        %4465 = vmatpush1.msra.mxu0 %v4436
        %4466 = vmatprep.subr.mxu0 0.0
        %4467 = vmatpush1.msra.mxu0 %v4435
        %4468 = vmatprep.subr.mxu0 0.0
        %4469 = vmatpush1.msra.mxu0 %v4434
        %4470 = vmatprep.subr.mxu0 0.0
        %4471 = vmatpush1.msra.mxu0 %v4433
        %4472 = vmatprep.subr.mxu0 0.0
        %4473 = vmatpush1.msra.mxu0 %v4432
        %4474 = vmatprep.subr.mxu0 0.0
        %4475 = vmatpush1.msra.mxu0 %v4431
        %4476 = vmatprep.subr.mxu0 0.0
        %4477 = vmatpush1.msra.mxu0 %v4430
        %4478 = vmatprep.subr.mxu0 0.0
        %4479 = vmatpush2.msra.mxu0 0.0
        %4480 = vmatprep.subr.mxu0 0.0
        %4481 = vmatpush2.msra.mxu0 0.0
        %4482 = vmatprep.subr.mxu0 0.0
        %4483 = vmatpush2.msra.mxu0 0.0
        %4484 = vmatprep.subr.mxu0 0.0
        %4485 = vmatpush2.msra.mxu0 0.0
        %4486 = vmatprep.subr.mxu0 0.0
        %4487 = vmatpush2.msra.mxu0 0.0
        %4488 = vmatprep.subr.mxu0 0.0
        %4489 = vmatpush2.msra.mxu0 0.0
        %4490 = vmatprep.subr.mxu0 0.0
        %4491 = vmatpush2.msra.mxu0 0.0
        %4492 = vmatprep.subr.mxu0 0.0
        %4493 = vmatpush2.msra.mxu0 0.0
        %4494 = vmatprep.subr.mxu0 0.0
        %4495 = vmatpush2.msra.mxu0 0.0
        %4496 = vmatprep.subr.mxu0 0.0
        %4497 = vmatpush2.msra.mxu0 0.0
        %4498 = vmatprep.subr.mxu0 0.0
        %4499 = vmatpush2.msra.mxu0 0.0
        %4500 = vmatprep.subr.mxu0 0.0
        %4501 = vmatpush2.msra.mxu0 0.0
        %4502 = vmatprep.subr.mxu0 0.0
        %4503 = vmatpush2.msra.mxu0 0.0
        %4504 = vmatprep.subr.mxu0 0.0
        %4505 = vmatpush2.msra.mxu0 0.0
        %4506 = vmatprep.subr.mxu0 0.0
        %4507 = vmatpush2.msra.mxu0 0.0
        %4508 = vmatprep.subr.mxu0 0.0
        %4509 = vmatpush2.msra.mxu0 0.0
        %4510 = vmatprep.mubr.f32.mxu0 0.0
        %4511 = vmatmul.mubr.f32.gmra.mxu0 %v4444
        %v4512 = vpop.f32.mrf.mxu0
        %v4513 = vadd.f32 %v4442, %v4512
        %v4514 = vpop.f32.mrf.mxu0
        %4515 = vdwg.mxu0
        %v4516 = vadd.f32 %v4346, %v4513
        %v4517 = vld [vmem:[%s7 + $0x7] sm:$0x1]
        %v4518 = vld [vmem:[%s7 + $0x8] sm:$0x1]
        %v4519 = vsel %vm1390, %v4516, 0.0
        %4520 = vadd.xlane.f32.xlu0 %v4519
        %v4521 = vpop.xlane.xlu0 %4520
        %v4522 = vmul.f32 %v4521, %v4300
        %v4523 = vsub.f32 %v4516, %v4522
        %v4524 = vmul.f32 %v4523, %v4523
        %v4525 = vsel %vm1390, %v4524, 0.0
        %4526 = vadd.xlane.f32.xlu0 %v4525
        %v4527 = vpop.xlane.xlu0 %4526
        %v4528 = vmul.f32 %v4527, %v4300
        %v4529 = vadd.f32 %v4528, 1e-05
        %v4530 = vrsqrt.pop %v4529
        %v4531 = vmul.f32 %v4523, %v4530
        %v4532 = vlaneseq
        %v4533 = vshrl.u32 %v4532, 7
        %v4534 = vsub.s32 0, %v4533
        %v4535 = vrot.slane %v4517, %v4534
        %v4536 = vmul.f32 %v4531, %v4535
        %v4537 = vlaneseq
        %v4538 = vshrl.u32 %v4537, 7
        %v4539 = vsub.s32 0, %v4538
        %v4540 = vrot.slane %v4518, %v4539
        %v4541 = vadd.f32 %v4536, %v4540
        %v4542 = vsel %vm1390, %v4541, 0.0
        %v4543 = vrot.slane %v4542, 4
        %v4544 = vadd.f32 %v4542, %v4543
        %v4545 = vrot.slane %v4544, 2
        %v4546 = vadd.f32 %v4544, %v4545
        %v4547 = vrot.slane %v4546, 1
        %v4548 = vadd.f32 %v4546, %v4547
        %v4549 = vrcp.pop 8.0
        %v4550 = vmul.f32 %v4548, %v4549
        %v4551 = vld [vmem:[%s7 + $0x18] sm:$0xff]
        %v4552 = vld [vmem:[%s7 + $0x20] sm:$0xff]
        %v4553 = vld [vmem:[%s7 + $0x28] sm:$0xff]
        %v4554 = vld [vmem:[%s7 + $0x30] sm:$0xff]
        %v4555 = vld [vmem:[%s7 + $0xa] sm:$0x1]
        %v4557 = vsel %vm1390, %v4550, 0
        %4559 = vmatprep.subr.mxu0 0.0
        %4560 = vmatpush1.msra.mxu0 0.0
        %4561 = vmatprep.subr.mxu0 0.0
        %4562 = vmatpush1.msra.mxu0 0.0
        %4563 = vmatprep.subr.mxu0 0.0
        %4564 = vmatpush1.msra.mxu0 0.0
        %4565 = vmatprep.subr.mxu0 0.0
        %4566 = vmatpush1.msra.mxu0 0.0
        %4567 = vmatprep.subr.mxu0 0.0
        %4568 = vmatpush1.msra.mxu0 0.0
        %4569 = vmatprep.subr.mxu0 0.0
        %4570 = vmatpush1.msra.mxu0 0.0
        %4571 = vmatprep.subr.mxu0 0.0
        %4572 = vmatpush1.msra.mxu0 0.0
        %4573 = vmatprep.subr.mxu0 0.0
        %4574 = vmatpush1.msra.mxu0 0.0
        %4575 = vmatprep.subr.mxu0 0.0
        %4576 = vmatpush1.msra.mxu0 0.0
        %4577 = vmatprep.subr.mxu0 0.0
        %4578 = vmatpush1.msra.mxu0 0.0
        %4579 = vmatprep.subr.mxu0 0.0
        %4580 = vmatpush1.msra.mxu0 0.0
        %4581 = vmatprep.subr.mxu0 0.0
        %4582 = vmatpush1.msra.mxu0 0.0
        %4583 = vmatprep.subr.mxu0 0.0
        %4584 = vmatpush1.msra.mxu0 %v4554
        %4585 = vmatprep.subr.mxu0 0.0
        %4586 = vmatpush1.msra.mxu0 %v4553
        %4587 = vmatprep.subr.mxu0 0.0
        %4588 = vmatpush1.msra.mxu0 %v4552
        %4589 = vmatprep.subr.mxu0 0.0
        %4590 = vmatpush1.msra.mxu0 %v4551
        %4591 = vmatprep.subr.mxu0 0.0
        %4592 = vmatpush2.msra.mxu0 0.0
        %4593 = vmatprep.subr.mxu0 0.0
        %4594 = vmatpush2.msra.mxu0 0.0
        %4595 = vmatprep.subr.mxu0 0.0
        %4596 = vmatpush2.msra.mxu0 0.0
        %4597 = vmatprep.subr.mxu0 0.0
        %4598 = vmatpush2.msra.mxu0 0.0
        %4599 = vmatprep.subr.mxu0 0.0
        %4600 = vmatpush2.msra.mxu0 0.0
        %4601 = vmatprep.subr.mxu0 0.0
        %4602 = vmatpush2.msra.mxu0 0.0
        %4603 = vmatprep.subr.mxu0 0.0
        %4604 = vmatpush2.msra.mxu0 0.0
        %4605 = vmatprep.subr.mxu0 0.0
        %4606 = vmatpush2.msra.mxu0 0.0
        %4607 = vmatprep.subr.mxu0 0.0
        %4608 = vmatpush2.msra.mxu0 0.0
        %4609 = vmatprep.subr.mxu0 0.0
        %4610 = vmatpush2.msra.mxu0 0.0
        %4611 = vmatprep.subr.mxu0 0.0
        %4612 = vmatpush2.msra.mxu0 0.0
        %4613 = vmatprep.subr.mxu0 0.0
        %4614 = vmatpush2.msra.mxu0 0.0
        %4615 = vmatprep.subr.mxu0 0.0
        %4616 = vmatpush2.msra.mxu0 0.0
        %4617 = vmatprep.subr.mxu0 0.0
        %4618 = vmatpush2.msra.mxu0 0.0
        %4619 = vmatprep.subr.mxu0 0.0
        %4620 = vmatpush2.msra.mxu0 0.0
        %4621 = vmatprep.subr.mxu0 0.0
        %4622 = vmatpush2.msra.mxu0 0.0
        %4623 = vmatprep.mubr.f32.mxu0 0.0
        %4624 = vmatmul.mubr.f32.gmra.mxu0 %v4557
        %v4625 = vpop.f32.mrf.mxu0
        %v4626 = vadd.f32 %v4555, %v4625
        %v4627 = vpop.f32.mrf.mxu0
        %4628 = vdwg.mxu0
        %vm4629 = vcmask 32768
        %4630 = vst.msk [vmem:[%s366] sm:$0x1] %vm4629, %v4626
        %s4631 = sand.u32 %s248, 1
        %s4632 = scalar_lea.sflag [#allocation4], %s4631
        %s4633 = sand.u32 %s248, 1
        %s4634 = scalar_lea.vmem [#allocation5], %s4633
        // Predicated region
        $region65: #{convtran_forward.1} parent=59 // pred_check
          %p4635 = pneg %p258
        $region66: #{convtran_forward.1} parent=59 // pred_check_branch
          %4637 = sbr.rel (%p4635) target = $region68
        $region67: #{convtran_forward.1} parent=59 // pred_region
          %s4639 = ssub.s32 16, 16
          %4640 = vsyncadd %s4632, %s4639
          %s4641 = smul.addr %s25, 16
          %s4642 = scalar_lea.hbm %s10, %s4641
          %s4644 = sshll.u32 %s4634, 4
          %s4645 = int_to_ptr.vmem [resolvable:$true] %s4644
          %4647 = dma.vmem_to_hbm [thread:$0]  %s4645, 16, %s4642, %s4632
        $region68: #{convtran_forward.1} parent=59 // pred_fallthru
          _
      $region60: #{convtran_forward.1} parent=5 // pred_fallthru
        _
      %p4648 = scmp.le.s32.totalorder 2, %s20
      // Predicated region
      $region69: #{convtran_forward.1} parent=5 // pred_check
        %p4649 = pneg %p4648
      $region70: #{convtran_forward.1} parent=5 // pred_check_branch
        %4651 = sbr.rel (%p4649) target = $region72
      $region71: #{convtran_forward.1} parent=5 // pred_region
        %s4652 = ssub.s32 %s20, 2
        // Predicated region
        $region73: #{convtran_forward.1} parent=71 // pred_check
          %p4653 = pneg %p264
        $region74: #{convtran_forward.1} parent=71 // pred_check_branch
          %4655 = sbr.rel (%p4653) target = $region76
        $region75: #{convtran_forward.1} parent=71 // pred_region
          %s4656 = sand.u32 %s249, 1
          %s4657 = scalar_lea.sflag [#allocation4], %s4656
          %s4658 = sand.u32 %s249, 1
          %s4659 = scalar_lea.vmem [#allocation5], %s4658
          %4660 = dma.done %s4657, 16
        $region76: #{convtran_forward.1} parent=71 // pred_fallthru
          _
      $region72: #{convtran_forward.1} parent=5 // pred_fallthru
        _
    $region6: #{convtran_forward.1} parent=1 // loop_footer
      %s24 = sadd.s32 1, %s20
    $region7: #{convtran_forward.1} parent=1 // loop_footer_branch
      %19 = sbr.rel target = $region3
    $region8: #{convtran_forward.1} parent=1 // loop_exit
      _
    %4661 = vsyncpa [#allocation3], 1
    %s4662 = scalar_lea.sflag [#allocation3], 1
    %4663 = vsyncpa %s4662, 1
    %4664 = vsyncpa [#allocation4], 1
    %s4665 = scalar_lea.sflag [#allocation4], 1
    %4666 = vsyncpa %s4665, 1

</llo_original>
